<compile_context>
chip_gen: v7x
topology: tpu7x:2x2x1
jax: 0.10.0
libtpu: 0.0.40
codegen_flags: <defaults>
</compile_context>

<pallas_src>
import numpy as np

import jax
import jax.numpy as jnp
from jax import lax
from jax.experimental import pallas as pl
from jax.experimental.pallas import tpu as pltpu

KSIZE = 7
PAD = 3
KK = KSIZE * KSIZE
BN_EPS = 1e-5


def _vmem_limit_bytes():
    """Scoped-VMEM limit per generation: ~half of physical, capped at 96 MiB."""
    try:
        cap = pltpu.get_tpu_info().vmem_capacity_bytes
    except Exception:
        cap = 64 * 1024 * 1024  # conservative (v7x-class) default
    return 96 * 1024 * 1024 if cap >= 96 * 1024 * 1024 else 32 * 1024 * 1024


def _pick_tile(total, row_bytes, budget_bytes):
    """Rows per block: the whole axis if it fits the budget, else a multiple of 8."""
    if total <= 8 or total * row_bytes <= budget_bytes:
        return total
    t = int(budget_bytes // max(row_bytes, 1)) // 8 * 8
    return max(8, min(t, (total // 8) * 8))


def _conv_masks(H, W):
    """(49, H*W) float32 validity masks for each 7x7 tap (zero padding)."""
    masks = np.zeros((KK, H, W), np.float32)
    k = 0
    for kh in range(KSIZE):
        dh = kh - PAD
        for kw in range(KSIZE):
            dw = kw - PAD
            ii = np.arange(H)[:, None] + dh
            jj = np.arange(W)[None, :] + dw
            masks[k] = ((ii >= 0) & (ii < H) & (jj >= 0) & (jj < W)).astype(np.float32)
            k += 1
    return masks.reshape(KK, H * W)


def _make_pool_conv_kernel(H, W, C, n_tile, c_tile):
    HW = H * W
    num_cb = -(-C // c_tile)

    def kernel(x_ref, wma_ref, wmm_ref, conv_ref, sum_acc, max_acc):
        # x_ref: (n_tile, c_tile, HW);  wma/wmm_ref: (49, HW) weight*mask tables
        # (1/C folded into wma);  conv_ref: (n_tile, HW) pre-BN attention map;
        # sum_acc/max_acc: (n_tile, HW) f32 VMEM scratch, live across the C axis.
        cb = pl.program_id(1)

        @pl.when(cb == 0)
        def _init():
            sum_acc[...] = jnp.zeros_like(sum_acc)
            max_acc[...] = jnp.full_like(max_acc, -jnp.inf)

        # --- channel mean/max pooling, full-vreg blocks over (samples, HW) ----
        xb = x_ref[...].astype(jnp.float32)                  # (n_tile, c_tile, HW)
        if C % c_tile != 0:
            # Only traced when the last C block is partial: mask padded channels.
            valid = jnp.minimum(C - cb * c_tile, c_tile)
            cidx = lax.broadcasted_iota(jnp.int32, (c_tile, HW), 0)
            m = (cidx < valid)[None]
            xb_s = jnp.where(m, xb, 0.0)
            xb_m = jnp.where(m, xb, -jnp.inf)
        else:
            xb_s, xb_m = xb, xb
        sum_acc[...] += jnp.sum(xb_s, axis=1)
        max_acc[...] = jnp.maximum(max_acc[...], jnp.max(xb_m, axis=1))

        # --- finalize: 7x7 conv (2 -> 1 ch, pad 3, no bias) via lane rolls ----
        # out[f] needs in[f + dh*W + dw]; one lane roll of the flattened map
        # gives that and the precomputed mask zeroes row-wrap / border taps.
        # Rolls go to the XLU slot, FMAs to the VPU; roughly balanced on v6e/v7x.
        @pl.when(cb == num_cb - 1)
        def _finish():
            s = sum_acc[...]                                  # channel sum
            mx = max_acc[...]                                 # channel max
            acc = jnp.zeros((n_tile, HW), jnp.float32)
            k = 0
            for kh in range(KSIZE):
                dh = kh - PAD
                for kw in range(KSIZE):
                    dw = kw - PAD
                    shift = (-(dh * W + dw)) % HW
                    rs = pltpu.roll(s, shift, axis=1) if shift else s
                    rm = pltpu.roll(mx, shift, axis=1) if shift else mx
                    acc = acc + wma_ref[pl.ds(k, 1), :] * rs + wmm_ref[pl.ds(k, 1), :] * rm
                    k += 1
            conv_ref[...] = acc

    return kernel


def _gate_kernel(x_ref, g_ref, o_ref):
    # x_ref/o_ref: (c_tile, HW); g_ref: (1, HW) gate in x.dtype -> broadcast mul.
    o_ref[...] = x_ref[...] * g_ref[...]


@jax.jit
def spatial_attention(x, conv_w, bn_gamma, bn_beta):
    """x: (N,C,H,W); conv_w: (1,2,7,7); bn_gamma/bn_beta: (1,)."""
    N, C, H, W = x.shape
    HW = H * W
    x3 = x.reshape(N, C, HW)                                  # lane-dense layout
    itemsize = x.dtype.itemsize
    vmem_limit = _vmem_limit_bytes()

    # Fold conv weights (and 1/C for the mean channel) into per-tap edge masks.
    masks = jnp.asarray(_conv_masks(H, W))                    # (49, HW)
    w = conv_w.reshape(2, KK).astype(jnp.float32)
    wma = masks * (w[0] / C)[:, None]                         # avg-channel taps
    wmm = masks * w[1][:, None]                               # max-channel taps

    # ---- Pass A: pooling + 7x7 conv -> (N, HW) ----------------------------
    n_tile = N if N <= 8 else 8                               # samples per sublane group
    c_tile_a = _pick_tile(C, n_tile * HW * itemsize, vmem_limit // 6)
    conv = pl.pallas_call(
        _make_pool_conv_kernel(H, W, C, n_tile, c_tile_a),
        out_shape=jax.ShapeDtypeStruct((N, HW), jnp.float32),
        grid=(pl.cdiv(N, n_tile), pl.cdiv(C, c_tile_a)),
        in_specs=[
            pl.BlockSpec((n_tile, c_tile_a, HW), lambda nb, cb: (nb, cb, 0)),
            # Constant index maps: fetched once, never re-DMA'd across the grid.
            pl.BlockSpec((KK, HW), lambda nb, cb: (0, 0)),
            pl.BlockSpec((KK, HW), lambda nb, cb: (0, 0)),
        ],
        out_specs=pl.BlockSpec((n_tile, HW), lambda nb, cb: (nb, 0)),
        scratch_shapes=[
            pltpu.VMEM((n_tile, HW), jnp.float32),            # channel-sum accum
            pltpu.VMEM((n_tile, HW), jnp.float32),            # channel-max accum
        ],
        compiler_params=pltpu.CompilerParams(
            dimension_semantics=("parallel", "arbitrary"),
            vmem_limit_bytes=vmem_limit),
    )(x3, wma, wmm)

    # ---- BatchNorm2d(1) training-mode batch stats (global over N*H*W) -----
    # Finalized on the tiny conv map between the passes and folded, together
    # with the sigmoid, into a single precomputed gate (one small XLA op).
    mean = jnp.mean(conv)
    var = jnp.mean(jnp.square(conv - mean))                   # biased variance
    a = bn_gamma.astype(jnp.float32)[0] * lax.rsqrt(var + BN_EPS)
    b = bn_beta.astype(jnp.float32)[0] - mean * a
    gate = jax.nn.sigmoid(conv * a + b).astype(x.dtype).reshape(N, 1, HW)

    # ---- Pass B: out = x * gate, tiled over (N, C) -------------------------
    c_tile_b = _pick_tile(C, HW * itemsize, vmem_limit // 6)
    out3 = pl.pallas_call(
        _gate_kernel,
        out_shape=jax.ShapeDtypeStruct((N, C, HW), x.dtype),
        grid=(N, pl.cdiv(C, c_tile_b)),
        in_specs=[
            pl.BlockSpec((None, c_tile_b, HW), lambda n, c: (n, c, 0)),
            pl.BlockSpec((None, 1, HW), lambda n, c: (n, 0, 0)),
        ],
        out_specs=pl.BlockSpec((None, c_tile_b, HW), lambda n, c: (n, c, 0)),
        compiler_params=pltpu.CompilerParams(
            dimension_semantics=("parallel", "parallel"),
            vmem_limit_bytes=vmem_limit),
    )(x3, gate)

    return out3.reshape(N, C, H, W)


def spatial_attention_ref(x, conv_w, gamma, beta):
    """Pure-JAX reference matching the PyTorch forward (training-mode BN)."""
    avg = jnp.mean(x, axis=1, keepdims=True)
    mx = jnp.max(x, axis=1, keepdims=True)
    pooled = jnp.concatenate([avg, mx], axis=1)
    conv = lax.conv_general_dilated(
        pooled, conv_w, window_strides=(1, 1),
        padding=((PAD, PAD), (PAD, PAD)),
        dimension_numbers=("NCHW", "OIHW", "NCHW"))
    mean = jnp.mean(conv)
    var = jnp.mean(jnp.square(conv - mean))
    bn = (conv - mean) / jnp.sqrt(var + BN_EPS) * gamma[0] + beta[0]
    return x * jax.nn.sigmoid(bn)


if __name__ == "__main__":
    key = jax.random.PRNGKey(0)
    kx, kw, kg, kb = jax.random.split(key, 4)

    N, C, H, W = 2, 4, 16, 16
    x = jax.random.normal(kx, (N, C, H, W), jnp.float32)

    # Shapes match nn.Conv2d(2, 1, 7, padding=3, bias=False) and nn.BatchNorm2d(1).
    conv_w = jax.random.normal(kw, (1, 2, KSIZE, KSIZE), jnp.float32) * 0.1
    bn_gamma = 1.0 + 0.1 * jax.random.normal(kg, (1,), jnp.float32)
    bn_beta = 0.1 * jax.random.normal(kb, (1,), jnp.float32)

    out = jax.block_until_ready(spatial_attention(x, conv_w, bn_gamma, bn_beta))
    ref = spatial_attention_ref(x, conv_w, bn_gamma, bn_beta)

    assert out.shape == x.shape and out.dtype == x.dtype
    err = float(jnp.max(jnp.abs(out - ref)))
    assert err < 1e-4, err
    print("KERNEL_OK")
</pallas_src>

<mosaic_0001>
module attributes {stable_mosaic.version = 11 : i64} {
  func.func @_gate_kernel(%arg0: i32, %arg1: i32, %arg2: memref<1x4x256xf32, #tpu.memory_space<vmem>>, %arg3: memref<1x1x256xf32, #tpu.memory_space<vmem>>, %arg4: memref<1x4x256xf32, #tpu.memory_space<vmem>>) attributes {dimension_semantics = [#tpu.dimension_semantics<parallel>, #tpu.dimension_semantics<parallel>], iteration_bounds = array<i64: 2, 1>, scalar_prefetch = 0 : i64, scratch_operands = 0 : i64, tpu.core_type = #tpu.core_type<tc>, window_params = [{transform_indices = @transform_0, window_bounds = array<i64: 1, 4, 256>}, {transform_indices = @transform_1, window_bounds = array<i64: 1, 1, 256>}, {transform_indices = @transform_2, window_bounds = array<i64: 1, 4, 256>}]} {
    %c0 = arith.constant 0 : index
    %c0_0 = arith.constant 0 : index
    %c0_1 = arith.constant 0 : index
    %0 = vector.load %arg2[%c0, %c0_0, %c0_1] : memref<1x4x256xf32, #tpu.memory_space<vmem>>, vector<1x4x256xf32>
    %1 = vector.shape_cast %0 : vector<1x4x256xf32> to vector<4x256xf32>
    %c0_2 = arith.constant 0 : index
    %c0_3 = arith.constant 0 : index
    %c0_4 = arith.constant 0 : index
    %2 = vector.load %arg3[%c0_2, %c0_3, %c0_4] : memref<1x1x256xf32, #tpu.memory_space<vmem>>, vector<1x1x256xf32>
    %3 = vector.shape_cast %2 : vector<1x1x256xf32> to vector<1x256xf32>
    %4 = vector.broadcast %3 : vector<1x256xf32> to vector<4x256xf32>
    %5 = arith.mulf %1, %4 : vector<4x256xf32>
    %c0_5 = arith.constant 0 : index
    %c0_6 = arith.constant 0 : index
    %c0_7 = arith.constant 0 : index
    %6 = vector.load %arg4[%c0_5, %c0_6, %c0_7] : memref<1x4x256xf32, #tpu.memory_space<vmem>>, vector<1x4x256xf32>
    %7 = vector.shape_cast %6 : vector<1x4x256xf32> to vector<4x256xf32>
    %8 = vector.shape_cast %5 : vector<4x256xf32> to vector<1x4x256xf32>
    tpu.vector_store %arg4[%c0_5, %c0_6, %c0_7], %8 {strides = array<i32>} : memref<1x4x256xf32, #tpu.memory_space<vmem>>, vector<1x4x256xf32>,
    return
  }
  func.func @transform_0(%arg0: i32, %arg1: i32) -> (i32, i32, i32) {
    %c0_i32 = arith.constant 0 : i32
    %c0_i32_0 = arith.constant 0 : i32
    return %arg0, %arg1, %c0_i32 : i32, i32, i32
  }
  func.func @transform_1(%arg0: i32, %arg1: i32) -> (i32, i32, i32) {
    %c0_i32 = arith.constant 0 : i32
    %c0_i32_0 = arith.constant 0 : i32
    %c0_i32_1 = arith.constant 0 : i32
    return %arg0, %c0_i32, %c0_i32_0 : i32, i32, i32
  }
  func.func @transform_2(%arg0: i32, %arg1: i32) -> (i32, i32, i32) {
    %c0_i32 = arith.constant 0 : i32
    %c0_i32_0 = arith.constant 0 : i32
    return %arg0, %arg1, %c0_i32 : i32, i32, i32
  }
}

module attributes {stable_mosaic.version = 11 : i64} {
  func.func @kernel(%arg0: i32, %arg1: i32, %arg2: memref<2x4x256xf32, #tpu.memory_space<vmem>>, %arg3: memref<49x256xf32, #tpu.memory_space<vmem>>, %arg4: memref<49x256xf32, #tpu.memory_space<vmem>>, %arg5: memref<2x256xf32, #tpu.memory_space<vmem>>, %arg6: memref<2x256xf32, #tpu.memory_space<vmem>>, %arg7: memref<2x256xf32, #tpu.memory_space<vmem>>) attributes {dimension_semantics = [#tpu.dimension_semantics<parallel>, #tpu.dimension_semantics<arbitrary>], iteration_bounds = array<i64: 1, 1>, scalar_prefetch = 0 : i64, scratch_operands = 2 : i64, tpu.core_type = #tpu.core_type<tc>, window_params = [{transform_indices = @transform_0, window_bounds = array<i64: 2, 4, 256>}, {pipeline_mode = #tpu.pipeline_mode<synchronous>, transform_indices = @transform_1, window_bounds = array<i64: 49, 256>}, {pipeline_mode = #tpu.pipeline_mode<synchronous>, transform_indices = @transform_2, window_bounds = array<i64: 49, 256>}, {transform_indices = @transform_3, window_bounds = array<i64: 2, 256>}]} {
    %c0_i32 = arith.constant 0 : i32
    %0 = arith.cmpi eq, %arg1, %c0_i32 : i32
    %1 = arith.extui %0 : i1 to i32
    %c0_i32_0 = arith.constant 0 : i32
    %2 = arith.cmpi ne, %1, %c0_i32_0 : i32
    scf.if %2 {
      %cst_14 = arith.constant 0.000000e+00 : f32
      %15 = vector.broadcast %cst_14 : f32 to vector<2x256xf32>
      %c0_15 = arith.constant 0 : index
      %c0_16 = arith.constant 0 : index
      %16 = vector.load %arg6[%c0_15, %c0_16] : memref<2x256xf32, #tpu.memory_space<vmem>>, vector<2x256xf32>
      tpu.vector_store %arg6[%c0_15, %c0_16], %15 {strides = array<i32>} : memref<2x256xf32, #tpu.memory_space<vmem>>, vector<2x256xf32>,
      %cst_17 = arith.constant 0xFF800000 : f32
      %17 = vector.broadcast %cst_17 : f32 to vector<2x256xf32>
      %c0_18 = arith.constant 0 : index
      %c0_19 = arith.constant 0 : index
      %18 = vector.load %arg7[%c0_18, %c0_19] : memref<2x256xf32, #tpu.memory_space<vmem>>, vector<2x256xf32>
      tpu.vector_store %arg7[%c0_18, %c0_19], %17 {strides = array<i32>} : memref<2x256xf32, #tpu.memory_space<vmem>>, vector<2x256xf32>,
    } else {
    }
    %c0 = arith.constant 0 : index
    %c0_1 = arith.constant 0 : index
    %c0_2 = arith.constant 0 : index
    %3 = vector.load %arg2[%c0, %c0_1, %c0_2] : memref<2x4x256xf32, #tpu.memory_space<vmem>>, vector<2x4x256xf32>
    %c0_3 = arith.constant 0 : index
    %c0_4 = arith.constant 0 : index
    %4 = vector.load %arg6[%c0_3, %c0_4] : memref<2x256xf32, #tpu.memory_space<vmem>>, vector<2x256xf32>
    %cst = arith.constant dense<0.000000e+00> : vector<2x256xf32>
    %5 = vector.multi_reduction <add>, %3, %cst [1] : vector<2x4x256xf32> to vector<2x256xf32>
    %6 = arith.addf %4, %5 : vector<2x256xf32>
    %c0_5 = arith.constant 0 : index
    %c0_6 = arith.constant 0 : index
    %7 = vector.load %arg6[%c0_5, %c0_6] : memref<2x256xf32, #tpu.memory_space<vmem>>, vector<2x256xf32>
    tpu.vector_store %arg6[%c0_5, %c0_6], %6 {strides = array<i32>} : memref<2x256xf32, #tpu.memory_space<vmem>>, vector<2x256xf32>,
    %c0_7 = arith.constant 0 : index
    %c0_8 = arith.constant 0 : index
    %8 = vector.load %arg7[%c0_7, %c0_8] : memref<2x256xf32, #tpu.memory_space<vmem>>, vector<2x256xf32>
    %cst_9 = arith.constant dense<0xFF800000> : vector<2x256xf32>
    %9 = vector.multi_reduction <maximumf>, %3, %cst_9 [1] : vector<2x4x256xf32> to vector<2x256xf32>
    %10 = arith.maximumf %8, %9 : vector<2x256xf32>
    %c0_10 = arith.constant 0 : index
    %c0_11 = arith.constant 0 : index
    %11 = vector.load %arg7[%c0_10, %c0_11] : memref<2x256xf32, #tpu.memory_space<vmem>>, vector<2x256xf32>
    tpu.vector_store %arg7[%c0_10, %c0_11], %10 {strides = array<i32>} : memref<2x256xf32, #tpu.memory_space<vmem>>, vector<2x256xf32>,
    %c0_i32_12 = arith.constant 0 : i32
    %12 = arith.cmpi eq, %arg1, %c0_i32_12 : i32
    %13 = arith.extui %12 : i1 to i32
    %c0_i32_13 = arith.constant 0 : i32
    %14 = arith.cmpi ne, %13, %c0_i32_13 : i32
    scf.if %14 {
      %c0_14 = arith.constant 0 : index
      %c0_15 = arith.constant 0 : index
      %15 = vector.load %arg6[%c0_14, %c0_15] : memref<2x256xf32, #tpu.memory_space<vmem>>, vector<2x256xf32>
      %c0_16 = arith.constant 0 : index
      %c0_17 = arith.constant 0 : index
      %16 = vector.load %arg7[%c0_16, %c0_17] : memref<2x256xf32, #tpu.memory_space<vmem>>, vector<2x256xf32>
      %cst_18 = arith.constant 0.000000e+00 : f32
      %17 = vector.broadcast %cst_18 : f32 to vector<2x256xf32>
      %c51_i32 = arith.constant 51 : i32
      %18 = tpu.dynamic_rotate %15 by %c51_i32 dim 1 : vector<2x256xf32>, i32 -> vector<2x256xf32>
      %c51_i32_19 = arith.constant 51 : i32
      %19 = tpu.dynamic_rotate %16 by %c51_i32_19 dim 1 : vector<2x256xf32>, i32 -> vector<2x256xf32>
      %c0_20 = arith.constant 0 : index
      %c0_21 = arith.constant 0 : index
      %20 = vector.load %arg3[%c0_20, %c0_21] : memref<49x256xf32, #tpu.memory_space<vmem>>, vector<1x256xf32>
      %21 = vector.broadcast %20 : vector<1x256xf32> to vector<2x256xf32>
      %22 = arith.mulf %21, %18 : vector<2x256xf32>
      %23 = arith.addf %17, %22 : vector<2x256xf32>
      %c0_22 = arith.constant 0 : index
      %c0_23 = arith.constant 0 : index
      %24 = vector.load %arg4[%c0_22, %c0_23] : memref<49x256xf32, #tpu.memory_space<vmem>>, vector<1x256xf32>
      %25 = vector.broadcast %24 : vector<1x256xf32> to vector<2x256xf32>
      %26 = arith.mulf %25, %19 : vector<2x256xf32>
      %27 = arith.addf %23, %26 : vector<2x256xf32>
      %c50_i32 = arith.constant 50 : i32
      %28 = tpu.dynamic_rotate %15 by %c50_i32 dim 1 : vector<2x256xf32>, i32 -> vector<2x256xf32>
      %c50_i32_24 = arith.constant 50 : i32
      %29 = tpu.dynamic_rotate %16 by %c50_i32_24 dim 1 : vector<2x256xf32>, i32 -> vector<2x256xf32>
      %c1 = arith.constant 1 : index
      %c0_25 = arith.constant 0 : index
      %30 = vector.load %arg3[%c1, %c0_25] : memref<49x256xf32, #tpu.memory_space<vmem>>, vector<1x256xf32>
      %31 = vector.broadcast %30 : vector<1x256xf32> to vector<2x256xf32>
      %32 = arith.mulf %31, %28 : vector<2x256xf32>
      %33 = arith.addf %27, %32 : vector<2x256xf32>
      %c1_26 = arith.constant 1 : index
      %c0_27 = arith.constant 0 : index
      %34 = vector.load %arg4[%c1_26, %c0_27] : memref<49x256xf32, #tpu.memory_space<vmem>>, vector<1x256xf32>
      %35 = vector.broadcast %34 : vector<1x256xf32> to vector<2x256xf32>
      %36 = arith.mulf %35, %29 : vector<2x256xf32>
      %37 = arith.addf %33, %36 : vector<2x256xf32>
      %c49_i32 = arith.constant 49 : i32
      %38 = tpu.dynamic_rotate %15 by %c49_i32 dim 1 : vector<2x256xf32>, i32 -> vector<2x256xf32>
      %c49_i32_28 = arith.constant 49 : i32
      %39 = tpu.dynamic_rotate %16 by %c49_i32_28 dim 1 : vector<2x256xf32>, i32 -> vector<2x256xf32>
      %c2 = arith.constant 2 : index
      %c0_29 = arith.constant 0 : index
      %40 = vector.load %arg3[%c2, %c0_29] : memref<49x256xf32, #tpu.memory_space<vmem>>, vector<1x256xf32>
      %41 = vector.broadcast %40 : vector<1x256xf32> to vector<2x256xf32>
      %42 = arith.mulf %41, %38 : vector<2x256xf32>
      %43 = arith.addf %37, %42 : vector<2x256xf32>
      %c2_30 = arith.constant 2 : index
      %c0_31 = arith.constant 0 : index
      %44 = vector.load %arg4[%c2_30, %c0_31] : memref<49x256xf32, #tpu.memory_space<vmem>>, vector<1x256xf32>
      %45 = vector.broadcast %44 : vector<1x256xf32> to vector<2x256xf32>
      %46 = arith.mulf %45, %39 : vector<2x256xf32>
      %47 = arith.addf %43, %46 : vector<2x256xf32>
      %c48_i32 = arith.constant 48 : i32
      %48 = tpu.dynamic_rotate %15 by %c48_i32 dim 1 : vector<2x256xf32>, i32 -> vector<2x256xf32>
      %c48_i32_32 = arith.constant 48 : i32
      %49 = tpu.dynamic_rotate %16 by %c48_i32_32 dim 1 : vector<2x256xf32>, i32 -> vector<2x256xf32>
      %c3 = arith.constant 3 : index
      %c0_33 = arith.constant 0 : index
      %50 = vector.load %arg3[%c3, %c0_33] : memref<49x256xf32, #tpu.memory_space<vmem>>, vector<1x256xf32>
      %51 = vector.broadcast %50 : vector<1x256xf32> to vector<2x256xf32>
      %52 = arith.mulf %51, %48 : vector<2x256xf32>
      %53 = arith.addf %47, %52 : vector<2x256xf32>
      %c3_34 = arith.constant 3 : index
      %c0_35 = arith.constant 0 : index
      %54 = vector.load %arg4[%c3_34, %c0_35] : memref<49x256xf32, #tpu.memory_space<vmem>>, vector<1x256xf32>
      %55 = vector.broadcast %54 : vector<1x256xf32> to vector<2x256xf32>
      %56 = arith.mulf %55, %49 : vector<2x256xf32>
      %57 = arith.addf %53, %56 : vector<2x256xf32>
      %c47_i32 = arith.constant 47 : i32
      %58 = tpu.dynamic_rotate %15 by %c47_i32 dim 1 : vector<2x256xf32>, i32 -> vector<2x256xf32>
      %c47_i32_36 = arith.constant 47 : i32
      %59 = tpu.dynamic_rotate %16 by %c47_i32_36 dim 1 : vector<2x256xf32>, i32 -> vector<2x256xf32>
      %c4 = arith.constant 4 : index
      %c0_37 = arith.constant 0 : index
      %60 = vector.load %arg3[%c4, %c0_37] : memref<49x256xf32, #tpu.memory_space<vmem>>, vector<1x256xf32>
      %61 = vector.broadcast %60 : vector<1x256xf32> to vector<2x256xf32>
      %62 = arith.mulf %61, %58 : vector<2x256xf32>
      %63 = arith.addf %57, %62 : vector<2x256xf32>
      %c4_38 = arith.constant 4 : index
      %c0_39 = arith.constant 0 : index
      %64 = vector.load %arg4[%c4_38, %c0_39] : memref<49x256xf32, #tpu.memory_space<vmem>>, vector<1x256xf32>
      %65 = vector.broadcast %64 : vector<1x256xf32> to vector<2x256xf32>
      %66 = arith.mulf %65, %59 : vector<2x256xf32>
      %67 = arith.addf %63, %66 : vector<2x256xf32>
      %c46_i32 = arith.constant 46 : i32
      %68 = tpu.dynamic_rotate %15 by %c46_i32 dim 1 : vector<2x256xf32>, i32 -> vector<2x256xf32>
      %c46_i32_40 = arith.constant 46 : i32
      %69 = tpu.dynamic_rotate %16 by %c46_i32_40 dim 1 : vector<2x256xf32>, i32 -> vector<2x256xf32>
      %c5 = arith.constant 5 : index
      %c0_41 = arith.constant 0 : index
      %70 = vector.load %arg3[%c5, %c0_41] : memref<49x256xf32, #tpu.memory_space<vmem>>, vector<1x256xf32>
      %71 = vector.broadcast %70 : vector<1x256xf32> to vector<2x256xf32>
      %72 = arith.mulf %71, %68 : vector<2x256xf32>
      %73 = arith.addf %67, %72 : vector<2x256xf32>
      %c5_42 = arith.constant 5 : index
      %c0_43 = arith.constant 0 : index
      %74 = vector.load %arg4[%c5_42, %c0_43] : memref<49x256xf32, #tpu.memory_space<vmem>>, vector<1x256xf32>
      %75 = vector.broadcast %74 : vector<1x256xf32> to vector<2x256xf32>
      %76 = arith.mulf %75, %69 : vector<2x256xf32>
      %77 = arith.addf %73, %76 : vector<2x256xf32>
      %c45_i32 = arith.constant 45 : i32
      %78 = tpu.dynamic_rotate %15 by %c45_i32 dim 1 : vector<2x256xf32>, i32 -> vector<2x256xf32>
      %c45_i32_44 = arith.constant 45 : i32
      %79 = tpu.dynamic_rotate %16 by %c45_i32_44 dim 1 : vector<2x256xf32>, i32 -> vector<2x256xf32>
      %c6 = arith.constant 6 : index
      %c0_45 = arith.constant 0 : index
      %80 = vector.load %arg3[%c6, %c0_45] : memref<49x256xf32, #tpu.memory_space<vmem>>, vector<1x256xf32>
      %81 = vector.broadcast %80 : vector<1x256xf32> to vector<2x256xf32>
      %82 = arith.mulf %81, %78 : vector<2x256xf32>
      %83 = arith.addf %77, %82 : vector<2x256xf32>
      %c6_46 = arith.constant 6 : index
      %c0_47 = arith.constant 0 : index
      %84 = vector.load %arg4[%c6_46, %c0_47] : memref<49x256xf32, #tpu.memory_space<vmem>>, vector<1x256xf32>
      %85 = vector.broadcast %84 : vector<1x256xf32> to vector<2x256xf32>
      %86 = arith.mulf %85, %79 : vector<2x256xf32>
      %87 = arith.addf %83, %86 : vector<2x256xf32>
      %c35_i32 = arith.constant 35 : i32
      %88 = tpu.dynamic_rotate %15 by %c35_i32 dim 1 : vector<2x256xf32>, i32 -> vector<2x256xf32>
      %c35_i32_48 = arith.constant 35 : i32
      %89 = tpu.dynamic_rotate %16 by %c35_i32_48 dim 1 : vector<2x256xf32>, i32 -> vector<2x256xf32>
      %c7 = arith.constant 7 : index
      %c0_49 = arith.constant 0 : index
      %90 = vector.load %arg3[%c7, %c0_49] : memref<49x256xf32, #tpu.memory_space<vmem>>, vector<1x256xf32>
      %91 = vector.broadcast %90 : vector<1x256xf32> to vector<2x256xf32>
      %92 = arith.mulf %91, %88 : vector<2x256xf32>
      %93 = arith.addf %87, %92 : vector<2x256xf32>
      %c7_50 = arith.constant 7 : index
      %c0_51 = arith.constant 0 : index
      %94 = vector.load %arg4[%c7_50, %c0_51] : memref<49x256xf32, #tpu.memory_space<vmem>>, vector<1x256xf32>
      %95 = vector.broadcast %94 : vector<1x256xf32> to vector<2x256xf32>
      %96 = arith.mulf %95, %89 : vector<2x256xf32>
      %97 = arith.addf %93, %96 : vector<2x256xf32>
      %c34_i32 = arith.constant 34 : i32
      %98 = tpu.dynamic_rotate %15 by %c34_i32 dim 1 : vector<2x256xf32>, i32 -> vector<2x256xf32>
      %c34_i32_52 = arith.constant 34 : i32
      %99 = tpu.dynamic_rotate %16 by %c34_i32_52 dim 1 : vector<2x256xf32>, i32 -> vector<2x256xf32>
      %c8 = arith.constant 8 : index
      %c0_53 = arith.constant 0 : index
      %100 = vector.load %arg3[%c8, %c0_53] : memref<49x256xf32, #tpu.memory_space<vmem>>, vector<1x256xf32>
      %101 = vector.broadcast %100 : vector<1x256xf32> to vector<2x256xf32>
      %102 = arith.mulf %101, %98 : vector<2x256xf32>
      %103 = arith.addf %97, %102 : vector<2x256xf32>
      %c8_54 = arith.constant 8 : index
      %c0_55 = arith.constant 0 : index
      %104 = vector.load %arg4[%c8_54, %c0_55] : memref<49x256xf32, #tpu.memory_space<vmem>>, vector<1x256xf32>
      %105 = vector.broadcast %104 : vector<1x256xf32> to vector<2x256xf32>
      %106 = arith.mulf %105, %99 : vector<2x256xf32>
      %107 = arith.addf %103, %106 : vector<2x256xf32>
      %c33_i32 = arith.constant 33 : i32
      %108 = tpu.dynamic_rotate %15 by %c33_i32 dim 1 : vector<2x256xf32>, i32 -> vector<2x256xf32>
      %c33_i32_56 = arith.constant 33 : i32
      %109 = tpu.dynamic_rotate %16 by %c33_i32_56 dim 1 : vector<2x256xf32>, i32 -> vector<2x256xf32>
      %c9 = arith.constant 9 : index
      %c0_57 = arith.constant 0 : index
      %110 = vector.load %arg3[%c9, %c0_57] : memref<49x256xf32, #tpu.memory_space<vmem>>, vector<1x256xf32>
      %111 = vector.broadcast %110 : vector<1x256xf32> to vector<2x256xf32>
      %112 = arith.mulf %111, %108 : vector<2x256xf32>
      %113 = arith.addf %107, %112 : vector<2x256xf32>
      %c9_58 = arith.constant 9 : index
      %c0_59 = arith.constant 0 : index
      %114 = vector.load %arg4[%c9_58, %c0_59] : memref<49x256xf32, #tpu.memory_space<vmem>>, vector<1x256xf32>
      %115 = vector.broadcast %114 : vector<1x256xf32> to vector<2x256xf32>
      %116 = arith.mulf %115, %109 : vector<2x256xf32>
      %117 = arith.addf %113, %116 : vector<2x256xf32>
      %c32_i32 = arith.constant 32 : i32
      %118 = tpu.dynamic_rotate %15 by %c32_i32 dim 1 : vector<2x256xf32>, i32 -> vector<2x256xf32>
      %c32_i32_60 = arith.constant 32 : i32
      %119 = tpu.dynamic_rotate %16 by %c32_i32_60 dim 1 : vector<2x256xf32>, i32 -> vector<2x256xf32>
      %c10 = arith.constant 10 : index
      %c0_61 = arith.constant 0 : index
      %120 = vector.load %arg3[%c10, %c0_61] : memref<49x256xf32, #tpu.memory_space<vmem>>, vector<1x256xf32>
      %121 = vector.broadcast %120 : vector<1x256xf32> to vector<2x256xf32>
      %122 = arith.mulf %121, %118 : vector<2x256xf32>
      %123 = arith.addf %117, %122 : vector<2x256xf32>
      %c10_62 = arith.constant 10 : index
      %c0_63 = arith.constant 0 : index
      %124 = vector.load %arg4[%c10_62, %c0_63] : memref<49x256xf32, #tpu.memory_space<vmem>>, vector<1x256xf32>
      %125 = vector.broadcast %124 : vector<1x256xf32> to vector<2x256xf32>
      %126 = arith.mulf %125, %119 : vector<2x256xf32>
      %127 = arith.addf %123, %126 : vector<2x256xf32>
      %c31_i32 = arith.constant 31 : i32
      %128 = tpu.dynamic_rotate %15 by %c31_i32 dim 1 : vector<2x256xf32>, i32 -> vector<2x256xf32>
      %c31_i32_64 = arith.constant 31 : i32
      %129 = tpu.dynamic_rotate %16 by %c31_i32_64 dim 1 : vector<2x256xf32>, i32 -> vector<2x256xf32>
      %c11 = arith.constant 11 : index
      %c0_65 = arith.constant 0 : index
      %130 = vector.load %arg3[%c11, %c0_65] : memref<49x256xf32, #tpu.memory_space<vmem>>, vector<1x256xf32>
      %131 = vector.broadcast %130 : vector<1x256xf32> to vector<2x256xf32>
      %132 = arith.mulf %131, %128 : vector<2x256xf32>
      %133 = arith.addf %127, %132 : vector<2x256xf32>
      %c11_66 = arith.constant 11 : index
      %c0_67 = arith.constant 0 : index
      %134 = vector.load %arg4[%c11_66, %c0_67] : memref<49x256xf32, #tpu.memory_space<vmem>>, vector<1x256xf32>
      %135 = vector.broadcast %134 : vector<1x256xf32> to vector<2x256xf32>
      %136 = arith.mulf %135, %129 : vector<2x256xf32>
      %137 = arith.addf %133, %136 : vector<2x256xf32>
      %c30_i32 = arith.constant 30 : i32
      %138 = tpu.dynamic_rotate %15 by %c30_i32 dim 1 : vector<2x256xf32>, i32 -> vector<2x256xf32>
      %c30_i32_68 = arith.constant 30 : i32
      %139 = tpu.dynamic_rotate %16 by %c30_i32_68 dim 1 : vector<2x256xf32>, i32 -> vector<2x256xf32>
      %c12 = arith.constant 12 : index
      %c0_69 = arith.constant 0 : index
      %140 = vector.load %arg3[%c12, %c0_69] : memref<49x256xf32, #tpu.memory_space<vmem>>, vector<1x256xf32>
      %141 = vector.broadcast %140 : vector<1x256xf32> to vector<2x256xf32>
      %142 = arith.mulf %141, %138 : vector<2x256xf32>
      %143 = arith.addf %137, %142 : vector<2x256xf32>
      %c12_70 = arith.constant 12 : index
      %c0_71 = arith.constant 0 : index
      %144 = vector.load %arg4[%c12_70, %c0_71] : memref<49x256xf32, #tpu.memory_space<vmem>>, vector<1x256xf32>
      %145 = vector.broadcast %144 : vector<1x256xf32> to vector<2x256xf32>
      %146 = arith.mulf %145, %139 : vector<2x256xf32>
      %147 = arith.addf %143, %146 : vector<2x256xf32>
      %c29_i32 = arith.constant 29 : i32
      %148 = tpu.dynamic_rotate %15 by %c29_i32 dim 1 : vector<2x256xf32>, i32 -> vector<2x256xf32>
      %c29_i32_72 = arith.constant 29 : i32
      %149 = tpu.dynamic_rotate %16 by %c29_i32_72 dim 1 : vector<2x256xf32>, i32 -> vector<2x256xf32>
      %c13 = arith.constant 13 : index
      %c0_73 = arith.constant 0 : index
      %150 = vector.load %arg3[%c13, %c0_73] : memref<49x256xf32, #tpu.memory_space<vmem>>, vector<1x256xf32>
      %151 = vector.broadcast %150 : vector<1x256xf32> to vector<2x256xf32>
      %152 = arith.mulf %151, %148 : vector<2x256xf32>
      %153 = arith.addf %147, %152 : vector<2x256xf32>
      %c13_74 = arith.constant 13 : index
      %c0_75 = arith.constant 0 : index
      %154 = vector.load %arg4[%c13_74, %c0_75] : memref<49x256xf32, #tpu.memory_space<vmem>>, vector<1x256xf32>
      %155 = vector.broadcast %154 : vector<1x256xf32> to vector<2x256xf32>
      %156 = arith.mulf %155, %149 : vector<2x256xf32>
      %157 = arith.addf %153, %156 : vector<2x256xf32>
      %c19_i32 = arith.constant 19 : i32
      %158 = tpu.dynamic_rotate %15 by %c19_i32 dim 1 : vector<2x256xf32>, i32 -> vector<2x256xf32>
      %c19_i32_76 = arith.constant 19 : i32
      %159 = tpu.dynamic_rotate %16 by %c19_i32_76 dim 1 : vector<2x256xf32>, i32 -> vector<2x256xf32>
      %c14 = arith.constant 14 : index
      %c0_77 = arith.constant 0 : index
      %160 = vector.load %arg3[%c14, %c0_77] : memref<49x256xf32, #tpu.memory_space<vmem>>, vector<1x256xf32>
      %161 = vector.broadcast %160 : vector<1x256xf32> to vector<2x256xf32>
      %162 = arith.mulf %161, %158 : vector<2x256xf32>
      %163 = arith.addf %157, %162 : vector<2x256xf32>
      %c14_78 = arith.constant 14 : index
      %c0_79 = arith.constant 0 : index
      %164 = vector.load %arg4[%c14_78, %c0_79] : memref<49x256xf32, #tpu.memory_space<vmem>>, vector<1x256xf32>
      %165 = vector.broadcast %164 : vector<1x256xf32> to vector<2x256xf32>
      %166 = arith.mulf %165, %159 : vector<2x256xf32>
      %167 = arith.addf %163, %166 : vector<2x256xf32>
      %c18_i32 = arith.constant 18 : i32
      %168 = tpu.dynamic_rotate %15 by %c18_i32 dim 1 : vector<2x256xf32>, i32 -> vector<2x256xf32>
      %c18_i32_80 = arith.constant 18 : i32
      %169 = tpu.dynamic_rotate %16 by %c18_i32_80 dim 1 : vector<2x256xf32>, i32 -> vector<2x256xf32>
      %c15 = arith.constant 15 : index
      %c0_81 = arith.constant 0 : index
      %170 = vector.load %arg3[%c15, %c0_81] : memref<49x256xf32, #tpu.memory_space<vmem>>, vector<1x256xf32>
      %171 = vector.broadcast %170 : vector<1x256xf32> to vector<2x256xf32>
      %172 = arith.mulf %171, %168 : vector<2x256xf32>
      %173 = arith.addf %167, %172 : vector<2x256xf32>
      %c15_82 = arith.constant 15 : index
      %c0_83 = arith.constant 0 : index
      %174 = vector.load %arg4[%c15_82, %c0_83] : memref<49x256xf32, #tpu.memory_space<vmem>>, vector<1x256xf32>
      %175 = vector.broadcast %174 : vector<1x256xf32> to vector<2x256xf32>
      %176 = arith.mulf %175, %169 : vector<2x256xf32>
      %177 = arith.addf %173, %176 : vector<2x256xf32>
      %c17_i32 = arith.constant 17 : i32
      %178 = tpu.dynamic_rotate %15 by %c17_i32 dim 1 : vector<2x256xf32>, i32 -> vector<2x256xf32>
      %c17_i32_84 = arith.constant 17 : i32
      %179 = tpu.dynamic_rotate %16 by %c17_i32_84 dim 1 : vector<2x256xf32>, i32 -> vector<2x256xf32>
      %c16 = arith.constant 16 : index
      %c0_85 = arith.constant 0 : index
      %180 = vector.load %arg3[%c16, %c0_85] : memref<49x256xf32, #tpu.memory_space<vmem>>, vector<1x256xf32>
      %181 = vector.broadcast %180 : vector<1x256xf32> to vector<2x256xf32>
      %182 = arith.mulf %181, %178 : vector<2x256xf32>
      %183 = arith.addf %177, %182 : vector<2x256xf32>
      %c16_86 = arith.constant 16 : index
      %c0_87 = arith.constant 0 : index
      %184 = vector.load %arg4[%c16_86, %c0_87] : memref<49x256xf32, #tpu.memory_space<vmem>>, vector<1x256xf32>
      %185 = vector.broadcast %184 : vector<1x256xf32> to vector<2x256xf32>
      %186 = arith.mulf %185, %179 : vector<2x256xf32>
      %187 = arith.addf %183, %186 : vector<2x256xf32>
      %c16_i32 = arith.constant 16 : i32
      %188 = tpu.dynamic_rotate %15 by %c16_i32 dim 1 : vector<2x256xf32>, i32 -> vector<2x256xf32>
      %c16_i32_88 = arith.constant 16 : i32
      %189 = tpu.dynamic_rotate %16 by %c16_i32_88 dim 1 : vector<2x256xf32>, i32 -> vector<2x256xf32>
      %c17 = arith.constant 17 : index
      %c0_89 = arith.constant 0 : index
      %190 = vector.load %arg3[%c17, %c0_89] : memref<49x256xf32, #tpu.memory_space<vmem>>, vector<1x256xf32>
      %191 = vector.broadcast %190 : vector<1x256xf32> to vector<2x256xf32>
      %192 = arith.mulf %191, %188 : vector<2x256xf32>
      %193 = arith.addf %187, %192 : vector<2x256xf32>
      %c17_90 = arith.constant 17 : index
      %c0_91 = arith.constant 0 : index
      %194 = vector.load %arg4[%c17_90, %c0_91] : memref<49x256xf32, #tpu.memory_space<vmem>>, vector<1x256xf32>
      %195 = vector.broadcast %194 : vector<1x256xf32> to vector<2x256xf32>
      %196 = arith.mulf %195, %189 : vector<2x256xf32>
      %197 = arith.addf %193, %196 : vector<2x256xf32>
      %c15_i32 = arith.constant 15 : i32
      %198 = tpu.dynamic_rotate %15 by %c15_i32 dim 1 : vector<2x256xf32>, i32 -> vector<2x256xf32>
      %c15_i32_92 = arith.constant 15 : i32
      %199 = tpu.dynamic_rotate %16 by %c15_i32_92 dim 1 : vector<2x256xf32>, i32 -> vector<2x256xf32>
      %c18 = arith.constant 18 : index
      %c0_93 = arith.constant 0 : index
      %200 = vector.load %arg3[%c18, %c0_93] : memref<49x256xf32, #tpu.memory_space<vmem>>, vector<1x256xf32>
      %201 = vector.broadcast %200 : vector<1x256xf32> to vector<2x256xf32>
      %202 = arith.mulf %201, %198 : vector<2x256xf32>
      %203 = arith.addf %197, %202 : vector<2x256xf32>
      %c18_94 = arith.constant 18 : index
      %c0_95 = arith.constant 0 : index
      %204 = vector.load %arg4[%c18_94, %c0_95] : memref<49x256xf32, #tpu.memory_space<vmem>>, vector<1x256xf32>
      %205 = vector.broadcast %204 : vector<1x256xf32> to vector<2x256xf32>
      %206 = arith.mulf %205, %199 : vector<2x256xf32>
      %207 = arith.addf %203, %206 : vector<2x256xf32>
      %c14_i32 = arith.constant 14 : i32
      %208 = tpu.dynamic_rotate %15 by %c14_i32 dim 1 : vector<2x256xf32>, i32 -> vector<2x256xf32>
      %c14_i32_96 = arith.constant 14 : i32
      %209 = tpu.dynamic_rotate %16 by %c14_i32_96 dim 1 : vector<2x256xf32>, i32 -> vector<2x256xf32>
      %c19 = arith.constant 19 : index
      %c0_97 = arith.constant 0 : index
      %210 = vector.load %arg3[%c19, %c0_97] : memref<49x256xf32, #tpu.memory_space<vmem>>, vector<1x256xf32>
      %211 = vector.broadcast %210 : vector<1x256xf32> to vector<2x256xf32>
      %212 = arith.mulf %211, %208 : vector<2x256xf32>
      %213 = arith.addf %207, %212 : vector<2x256xf32>
      %c19_98 = arith.constant 19 : index
      %c0_99 = arith.constant 0 : index
      %214 = vector.load %arg4[%c19_98, %c0_99] : memref<49x256xf32, #tpu.memory_space<vmem>>, vector<1x256xf32>
      %215 = vector.broadcast %214 : vector<1x256xf32> to vector<2x256xf32>
      %216 = arith.mulf %215, %209 : vector<2x256xf32>
      %217 = arith.addf %213, %216 : vector<2x256xf32>
      %c13_i32 = arith.constant 13 : i32
      %218 = tpu.dynamic_rotate %15 by %c13_i32 dim 1 : vector<2x256xf32>, i32 -> vector<2x256xf32>
      %c13_i32_100 = arith.constant 13 : i32
      %219 = tpu.dynamic_rotate %16 by %c13_i32_100 dim 1 : vector<2x256xf32>, i32 -> vector<2x256xf32>
      %c20 = arith.constant 20 : index
      %c0_101 = arith.constant 0 : index
      %220 = vector.load %arg3[%c20, %c0_101] : memref<49x256xf32, #tpu.memory_space<vmem>>, vector<1x256xf32>
      %221 = vector.broadcast %220 : vector<1x256xf32> to vector<2x256xf32>
      %222 = arith.mulf %221, %218 : vector<2x256xf32>
      %223 = arith.addf %217, %222 : vector<2x256xf32>
      %c20_102 = arith.constant 20 : index
      %c0_103 = arith.constant 0 : index
      %224 = vector.load %arg4[%c20_102, %c0_103] : memref<49x256xf32, #tpu.memory_space<vmem>>, vector<1x256xf32>
      %225 = vector.broadcast %224 : vector<1x256xf32> to vector<2x256xf32>
      %226 = arith.mulf %225, %219 : vector<2x256xf32>
      %227 = arith.addf %223, %226 : vector<2x256xf32>
      %c3_i32 = arith.constant 3 : i32
      %228 = tpu.dynamic_rotate %15 by %c3_i32 dim 1 : vector<2x256xf32>, i32 -> vector<2x256xf32>
      %c3_i32_104 = arith.constant 3 : i32
      %229 = tpu.dynamic_rotate %16 by %c3_i32_104 dim 1 : vector<2x256xf32>, i32 -> vector<2x256xf32>
      %c21 = arith.constant 21 : index
      %c0_105 = arith.constant 0 : index
      %230 = vector.load %arg3[%c21, %c0_105] : memref<49x256xf32, #tpu.memory_space<vmem>>, vector<1x256xf32>
      %231 = vector.broadcast %230 : vector<1x256xf32> to vector<2x256xf32>
      %232 = arith.mulf %231, %228 : vector<2x256xf32>
      %233 = arith.addf %227, %232 : vector<2x256xf32>
      %c21_106 = arith.constant 21 : index
      %c0_107 = arith.constant 0 : index
      %234 = vector.load %arg4[%c21_106, %c0_107] : memref<49x256xf32, #tpu.memory_space<vmem>>, vector<1x256xf32>
      %235 = vector.broadcast %234 : vector<1x256xf32> to vector<2x256xf32>
      %236 = arith.mulf %235, %229 : vector<2x256xf32>
      %237 = arith.addf %233, %236 : vector<2x256xf32>
      %c2_i32 = arith.constant 2 : i32
      %238 = tpu.dynamic_rotate %15 by %c2_i32 dim 1 : vector<2x256xf32>, i32 -> vector<2x256xf32>
      %c2_i32_108 = arith.constant 2 : i32
      %239 = tpu.dynamic_rotate %16 by %c2_i32_108 dim 1 : vector<2x256xf32>, i32 -> vector<2x256xf32>
      %c22 = arith.constant 22 : index
      %c0_109 = arith.constant 0 : index
      %240 = vector.load %arg3[%c22, %c0_109] : memref<49x256xf32, #tpu.memory_space<vmem>>, vector<1x256xf32>
      %241 = vector.broadcast %240 : vector<1x256xf32> to vector<2x256xf32>
      %242 = arith.mulf %241, %238 : vector<2x256xf32>
      %243 = arith.addf %237, %242 : vector<2x256xf32>
      %c22_110 = arith.constant 22 : index
      %c0_111 = arith.constant 0 : index
      %244 = vector.load %arg4[%c22_110, %c0_111] : memref<49x256xf32, #tpu.memory_space<vmem>>, vector<1x256xf32>
      %245 = vector.broadcast %244 : vector<1x256xf32> to vector<2x256xf32>
      %246 = arith.mulf %245, %239 : vector<2x256xf32>
      %247 = arith.addf %243, %246 : vector<2x256xf32>
      %c1_i32 = arith.constant 1 : i32
      %248 = tpu.dynamic_rotate %15 by %c1_i32 dim 1 : vector<2x256xf32>, i32 -> vector<2x256xf32>
      %c1_i32_112 = arith.constant 1 : i32
      %249 = tpu.dynamic_rotate %16 by %c1_i32_112 dim 1 : vector<2x256xf32>, i32 -> vector<2x256xf32>
      %c23 = arith.constant 23 : index
      %c0_113 = arith.constant 0 : index
      %250 = vector.load %arg3[%c23, %c0_113] : memref<49x256xf32, #tpu.memory_space<vmem>>, vector<1x256xf32>
      %251 = vector.broadcast %250 : vector<1x256xf32> to vector<2x256xf32>
      %252 = arith.mulf %251, %248 : vector<2x256xf32>
      %253 = arith.addf %247, %252 : vector<2x256xf32>
      %c23_114 = arith.constant 23 : index
      %c0_115 = arith.constant 0 : index
      %254 = vector.load %arg4[%c23_114, %c0_115] : memref<49x256xf32, #tpu.memory_space<vmem>>, vector<1x256xf32>
      %255 = vector.broadcast %254 : vector<1x256xf32> to vector<2x256xf32>
      %256 = arith.mulf %255, %249 : vector<2x256xf32>
      %257 = arith.addf %253, %256 : vector<2x256xf32>
      %c24 = arith.constant 24 : index
      %c0_116 = arith.constant 0 : index
      %258 = vector.load %arg3[%c24, %c0_116] : memref<49x256xf32, #tpu.memory_space<vmem>>, vector<1x256xf32>
      %259 = vector.broadcast %258 : vector<1x256xf32> to vector<2x256xf32>
      %260 = arith.mulf %259, %15 : vector<2x256xf32>
      %261 = arith.addf %257, %260 : vector<2x256xf32>
      %c24_117 = arith.constant 24 : index
      %c0_118 = arith.constant 0 : index
      %262 = vector.load %arg4[%c24_117, %c0_118] : memref<49x256xf32, #tpu.memory_space<vmem>>, vector<1x256xf32>
      %263 = vector.broadcast %262 : vector<1x256xf32> to vector<2x256xf32>
      %264 = arith.mulf %263, %16 : vector<2x256xf32>
      %265 = arith.addf %261, %264 : vector<2x256xf32>
      %c255_i32 = arith.constant 255 : i32
      %266 = tpu.dynamic_rotate %15 by %c255_i32 dim 1 : vector<2x256xf32>, i32 -> vector<2x256xf32>
      %c255_i32_119 = arith.constant 255 : i32
      %267 = tpu.dynamic_rotate %16 by %c255_i32_119 dim 1 : vector<2x256xf32>, i32 -> vector<2x256xf32>
      %c25 = arith.constant 25 : index
      %c0_120 = arith.constant 0 : index
      %268 = vector.load %arg3[%c25, %c0_120] : memref<49x256xf32, #tpu.memory_space<vmem>>, vector<1x256xf32>
      %269 = vector.broadcast %268 : vector<1x256xf32> to vector<2x256xf32>
      %270 = arith.mulf %269, %266 : vector<2x256xf32>
      %271 = arith.addf %265, %270 : vector<2x256xf32>
      %c25_121 = arith.constant 25 : index
      %c0_122 = arith.constant 0 : index
      %272 = vector.load %arg4[%c25_121, %c0_122] : memref<49x256xf32, #tpu.memory_space<vmem>>, vector<1x256xf32>
      %273 = vector.broadcast %272 : vector<1x256xf32> to vector<2x256xf32>
      %274 = arith.mulf %273, %267 : vector<2x256xf32>
      %275 = arith.addf %271, %274 : vector<2x256xf32>
      %c254_i32 = arith.constant 254 : i32
      %276 = tpu.dynamic_rotate %15 by %c254_i32 dim 1 : vector<2x256xf32>, i32 -> vector<2x256xf32>
      %c254_i32_123 = arith.constant 254 : i32
      %277 = tpu.dynamic_rotate %16 by %c254_i32_123 dim 1 : vector<2x256xf32>, i32 -> vector<2x256xf32>
      %c26 = arith.constant 26 : index
      %c0_124 = arith.constant 0 : index
      %278 = vector.load %arg3[%c26, %c0_124] : memref<49x256xf32, #tpu.memory_space<vmem>>, vector<1x256xf32>
      %279 = vector.broadcast %278 : vector<1x256xf32> to vector<2x256xf32>
      %280 = arith.mulf %279, %276 : vector<2x256xf32>
      %281 = arith.addf %275, %280 : vector<2x256xf32>
      %c26_125 = arith.constant 26 : index
      %c0_126 = arith.constant 0 : index
      %282 = vector.load %arg4[%c26_125, %c0_126] : memref<49x256xf32, #tpu.memory_space<vmem>>, vector<1x256xf32>
      %283 = vector.broadcast %282 : vector<1x256xf32> to vector<2x256xf32>
      %284 = arith.mulf %283, %277 : vector<2x256xf32>
      %285 = arith.addf %281, %284 : vector<2x256xf32>
      %c253_i32 = arith.constant 253 : i32
      %286 = tpu.dynamic_rotate %15 by %c253_i32 dim 1 : vector<2x256xf32>, i32 -> vector<2x256xf32>
      %c253_i32_127 = arith.constant 253 : i32
      %287 = tpu.dynamic_rotate %16 by %c253_i32_127 dim 1 : vector<2x256xf32>, i32 -> vector<2x256xf32>
      %c27 = arith.constant 27 : index
      %c0_128 = arith.constant 0 : index
      %288 = vector.load %arg3[%c27, %c0_128] : memref<49x256xf32, #tpu.memory_space<vmem>>, vector<1x256xf32>
      %289 = vector.broadcast %288 : vector<1x256xf32> to vector<2x256xf32>
      %290 = arith.mulf %289, %286 : vector<2x256xf32>
      %291 = arith.addf %285, %290 : vector<2x256xf32>
      %c27_129 = arith.constant 27 : index
      %c0_130 = arith.constant 0 : index
      %292 = vector.load %arg4[%c27_129, %c0_130] : memref<49x256xf32, #tpu.memory_space<vmem>>, vector<1x256xf32>
      %293 = vector.broadcast %292 : vector<1x256xf32> to vector<2x256xf32>
      %294 = arith.mulf %293, %287 : vector<2x256xf32>
      %295 = arith.addf %291, %294 : vector<2x256xf32>
      %c243_i32 = arith.constant 243 : i32
      %296 = tpu.dynamic_rotate %15 by %c243_i32 dim 1 : vector<2x256xf32>, i32 -> vector<2x256xf32>
      %c243_i32_131 = arith.constant 243 : i32
      %297 = tpu.dynamic_rotate %16 by %c243_i32_131 dim 1 : vector<2x256xf32>, i32 -> vector<2x256xf32>
      %c28 = arith.constant 28 : index
      %c0_132 = arith.constant 0 : index
      %298 = vector.load %arg3[%c28, %c0_132] : memref<49x256xf32, #tpu.memory_space<vmem>>, vector<1x256xf32>
      %299 = vector.broadcast %298 : vector<1x256xf32> to vector<2x256xf32>
      %300 = arith.mulf %299, %296 : vector<2x256xf32>
      %301 = arith.addf %295, %300 : vector<2x256xf32>
      %c28_133 = arith.constant 28 : index
      %c0_134 = arith.constant 0 : index
      %302 = vector.load %arg4[%c28_133, %c0_134] : memref<49x256xf32, #tpu.memory_space<vmem>>, vector<1x256xf32>
      %303 = vector.broadcast %302 : vector<1x256xf32> to vector<2x256xf32>
      %304 = arith.mulf %303, %297 : vector<2x256xf32>
      %305 = arith.addf %301, %304 : vector<2x256xf32>
      %c242_i32 = arith.constant 242 : i32
      %306 = tpu.dynamic_rotate %15 by %c242_i32 dim 1 : vector<2x256xf32>, i32 -> vector<2x256xf32>
      %c242_i32_135 = arith.constant 242 : i32
      %307 = tpu.dynamic_rotate %16 by %c242_i32_135 dim 1 : vector<2x256xf32>, i32 -> vector<2x256xf32>
      %c29 = arith.constant 29 : index
      %c0_136 = arith.constant 0 : index
      %308 = vector.load %arg3[%c29, %c0_136] : memref<49x256xf32, #tpu.memory_space<vmem>>, vector<1x256xf32>
      %309 = vector.broadcast %308 : vector<1x256xf32> to vector<2x256xf32>
      %310 = arith.mulf %309, %306 : vector<2x256xf32>
      %311 = arith.addf %305, %310 : vector<2x256xf32>
      %c29_137 = arith.constant 29 : index
      %c0_138 = arith.constant 0 : index
      %312 = vector.load %arg4[%c29_137, %c0_138] : memref<49x256xf32, #tpu.memory_space<vmem>>, vector<1x256xf32>
      %313 = vector.broadcast %312 : vector<1x256xf32> to vector<2x256xf32>
      %314 = arith.mulf %313, %307 : vector<2x256xf32>
      %315 = arith.addf %311, %314 : vector<2x256xf32>
      %c241_i32 = arith.constant 241 : i32
      %316 = tpu.dynamic_rotate %15 by %c241_i32 dim 1 : vector<2x256xf32>, i32 -> vector<2x256xf32>
      %c241_i32_139 = arith.constant 241 : i32
      %317 = tpu.dynamic_rotate %16 by %c241_i32_139 dim 1 : vector<2x256xf32>, i32 -> vector<2x256xf32>
      %c30 = arith.constant 30 : index
      %c0_140 = arith.constant 0 : index
      %318 = vector.load %arg3[%c30, %c0_140] : memref<49x256xf32, #tpu.memory_space<vmem>>, vector<1x256xf32>
      %319 = vector.broadcast %318 : vector<1x256xf32> to vector<2x256xf32>
      %320 = arith.mulf %319, %316 : vector<2x256xf32>
      %321 = arith.addf %315, %320 : vector<2x256xf32>
      %c30_141 = arith.constant 30 : index
      %c0_142 = arith.constant 0 : index
      %322 = vector.load %arg4[%c30_141, %c0_142] : memref<49x256xf32, #tpu.memory_space<vmem>>, vector<1x256xf32>
      %323 = vector.broadcast %322 : vector<1x256xf32> to vector<2x256xf32>
      %324 = arith.mulf %323, %317 : vector<2x256xf32>
      %325 = arith.addf %321, %324 : vector<2x256xf32>
      %c240_i32 = arith.constant 240 : i32
      %326 = tpu.dynamic_rotate %15 by %c240_i32 dim 1 : vector<2x256xf32>, i32 -> vector<2x256xf32>
      %c240_i32_143 = arith.constant 240 : i32
      %327 = tpu.dynamic_rotate %16 by %c240_i32_143 dim 1 : vector<2x256xf32>, i32 -> vector<2x256xf32>
      %c31 = arith.constant 31 : index
      %c0_144 = arith.constant 0 : index
      %328 = vector.load %arg3[%c31, %c0_144] : memref<49x256xf32, #tpu.memory_space<vmem>>, vector<1x256xf32>
      %329 = vector.broadcast %328 : vector<1x256xf32> to vector<2x256xf32>
      %330 = arith.mulf %329, %326 : vector<2x256xf32>
      %331 = arith.addf %325, %330 : vector<2x256xf32>
      %c31_145 = arith.constant 31 : index
      %c0_146 = arith.constant 0 : index
      %332 = vector.load %arg4[%c31_145, %c0_146] : memref<49x256xf32, #tpu.memory_space<vmem>>, vector<1x256xf32>
      %333 = vector.broadcast %332 : vector<1x256xf32> to vector<2x256xf32>
      %334 = arith.mulf %333, %327 : vector<2x256xf32>
      %335 = arith.addf %331, %334 : vector<2x256xf32>
      %c239_i32 = arith.constant 239 : i32
      %336 = tpu.dynamic_rotate %15 by %c239_i32 dim 1 : vector<2x256xf32>, i32 -> vector<2x256xf32>
      %c239_i32_147 = arith.constant 239 : i32
      %337 = tpu.dynamic_rotate %16 by %c239_i32_147 dim 1 : vector<2x256xf32>, i32 -> vector<2x256xf32>
      %c32 = arith.constant 32 : index
      %c0_148 = arith.constant 0 : index
      %338 = vector.load %arg3[%c32, %c0_148] : memref<49x256xf32, #tpu.memory_space<vmem>>, vector<1x256xf32>
      %339 = vector.broadcast %338 : vector<1x256xf32> to vector<2x256xf32>
      %340 = arith.mulf %339, %336 : vector<2x256xf32>
      %341 = arith.addf %335, %340 : vector<2x256xf32>
      %c32_149 = arith.constant 32 : index
      %c0_150 = arith.constant 0 : index
      %342 = vector.load %arg4[%c32_149, %c0_150] : memref<49x256xf32, #tpu.memory_space<vmem>>, vector<1x256xf32>
      %343 = vector.broadcast %342 : vector<1x256xf32> to vector<2x256xf32>
      %344 = arith.mulf %343, %337 : vector<2x256xf32>
      %345 = arith.addf %341, %344 : vector<2x256xf32>
      %c238_i32 = arith.constant 238 : i32
      %346 = tpu.dynamic_rotate %15 by %c238_i32 dim 1 : vector<2x256xf32>, i32 -> vector<2x256xf32>
      %c238_i32_151 = arith.constant 238 : i32
      %347 = tpu.dynamic_rotate %16 by %c238_i32_151 dim 1 : vector<2x256xf32>, i32 -> vector<2x256xf32>
      %c33 = arith.constant 33 : index
      %c0_152 = arith.constant 0 : index
      %348 = vector.load %arg3[%c33, %c0_152] : memref<49x256xf32, #tpu.memory_space<vmem>>, vector<1x256xf32>
      %349 = vector.broadcast %348 : vector<1x256xf32> to vector<2x256xf32>
      %350 = arith.mulf %349, %346 : vector<2x256xf32>
      %351 = arith.addf %345, %350 : vector<2x256xf32>
      %c33_153 = arith.constant 33 : index
      %c0_154 = arith.constant 0 : index
      %352 = vector.load %arg4[%c33_153, %c0_154] : memref<49x256xf32, #tpu.memory_space<vmem>>, vector<1x256xf32>
      %353 = vector.broadcast %352 : vector<1x256xf32> to vector<2x256xf32>
      %354 = arith.mulf %353, %347 : vector<2x256xf32>
      %355 = arith.addf %351, %354 : vector<2x256xf32>
      %c237_i32 = arith.constant 237 : i32
      %356 = tpu.dynamic_rotate %15 by %c237_i32 dim 1 : vector<2x256xf32>, i32 -> vector<2x256xf32>
      %c237_i32_155 = arith.constant 237 : i32
      %357 = tpu.dynamic_rotate %16 by %c237_i32_155 dim 1 : vector<2x256xf32>, i32 -> vector<2x256xf32>
      %c34 = arith.constant 34 : index
      %c0_156 = arith.constant 0 : index
      %358 = vector.load %arg3[%c34, %c0_156] : memref<49x256xf32, #tpu.memory_space<vmem>>, vector<1x256xf32>
      %359 = vector.broadcast %358 : vector<1x256xf32> to vector<2x256xf32>
      %360 = arith.mulf %359, %356 : vector<2x256xf32>
      %361 = arith.addf %355, %360 : vector<2x256xf32>
      %c34_157 = arith.constant 34 : index
      %c0_158 = arith.constant 0 : index
      %362 = vector.load %arg4[%c34_157, %c0_158] : memref<49x256xf32, #tpu.memory_space<vmem>>, vector<1x256xf32>
      %363 = vector.broadcast %362 : vector<1x256xf32> to vector<2x256xf32>
      %364 = arith.mulf %363, %357 : vector<2x256xf32>
      %365 = arith.addf %361, %364 : vector<2x256xf32>
      %c227_i32 = arith.constant 227 : i32
      %366 = tpu.dynamic_rotate %15 by %c227_i32 dim 1 : vector<2x256xf32>, i32 -> vector<2x256xf32>
      %c227_i32_159 = arith.constant 227 : i32
      %367 = tpu.dynamic_rotate %16 by %c227_i32_159 dim 1 : vector<2x256xf32>, i32 -> vector<2x256xf32>
      %c35 = arith.constant 35 : index
      %c0_160 = arith.constant 0 : index
      %368 = vector.load %arg3[%c35, %c0_160] : memref<49x256xf32, #tpu.memory_space<vmem>>, vector<1x256xf32>
      %369 = vector.broadcast %368 : vector<1x256xf32> to vector<2x256xf32>
      %370 = arith.mulf %369, %366 : vector<2x256xf32>
      %371 = arith.addf %365, %370 : vector<2x256xf32>
      %c35_161 = arith.constant 35 : index
      %c0_162 = arith.constant 0 : index
      %372 = vector.load %arg4[%c35_161, %c0_162] : memref<49x256xf32, #tpu.memory_space<vmem>>, vector<1x256xf32>
      %373 = vector.broadcast %372 : vector<1x256xf32> to vector<2x256xf32>
      %374 = arith.mulf %373, %367 : vector<2x256xf32>
      %375 = arith.addf %371, %374 : vector<2x256xf32>
      %c226_i32 = arith.constant 226 : i32
      %376 = tpu.dynamic_rotate %15 by %c226_i32 dim 1 : vector<2x256xf32>, i32 -> vector<2x256xf32>
      %c226_i32_163 = arith.constant 226 : i32
      %377 = tpu.dynamic_rotate %16 by %c226_i32_163 dim 1 : vector<2x256xf32>, i32 -> vector<2x256xf32>
      %c36 = arith.constant 36 : index
      %c0_164 = arith.constant 0 : index
      %378 = vector.load %arg3[%c36, %c0_164] : memref<49x256xf32, #tpu.memory_space<vmem>>, vector<1x256xf32>
      %379 = vector.broadcast %378 : vector<1x256xf32> to vector<2x256xf32>
      %380 = arith.mulf %379, %376 : vector<2x256xf32>
      %381 = arith.addf %375, %380 : vector<2x256xf32>
      %c36_165 = arith.constant 36 : index
      %c0_166 = arith.constant 0 : index
      %382 = vector.load %arg4[%c36_165, %c0_166] : memref<49x256xf32, #tpu.memory_space<vmem>>, vector<1x256xf32>
      %383 = vector.broadcast %382 : vector<1x256xf32> to vector<2x256xf32>
      %384 = arith.mulf %383, %377 : vector<2x256xf32>
      %385 = arith.addf %381, %384 : vector<2x256xf32>
      %c225_i32 = arith.constant 225 : i32
      %386 = tpu.dynamic_rotate %15 by %c225_i32 dim 1 : vector<2x256xf32>, i32 -> vector<2x256xf32>
      %c225_i32_167 = arith.constant 225 : i32
      %387 = tpu.dynamic_rotate %16 by %c225_i32_167 dim 1 : vector<2x256xf32>, i32 -> vector<2x256xf32>
      %c37 = arith.constant 37 : index
      %c0_168 = arith.constant 0 : index
      %388 = vector.load %arg3[%c37, %c0_168] : memref<49x256xf32, #tpu.memory_space<vmem>>, vector<1x256xf32>
      %389 = vector.broadcast %388 : vector<1x256xf32> to vector<2x256xf32>
      %390 = arith.mulf %389, %386 : vector<2x256xf32>
      %391 = arith.addf %385, %390 : vector<2x256xf32>
      %c37_169 = arith.constant 37 : index
      %c0_170 = arith.constant 0 : index
      %392 = vector.load %arg4[%c37_169, %c0_170] : memref<49x256xf32, #tpu.memory_space<vmem>>, vector<1x256xf32>
      %393 = vector.broadcast %392 : vector<1x256xf32> to vector<2x256xf32>
      %394 = arith.mulf %393, %387 : vector<2x256xf32>
      %395 = arith.addf %391, %394 : vector<2x256xf32>
      %c224_i32 = arith.constant 224 : i32
      %396 = tpu.dynamic_rotate %15 by %c224_i32 dim 1 : vector<2x256xf32>, i32 -> vector<2x256xf32>
      %c224_i32_171 = arith.constant 224 : i32
      %397 = tpu.dynamic_rotate %16 by %c224_i32_171 dim 1 : vector<2x256xf32>, i32 -> vector<2x256xf32>
      %c38 = arith.constant 38 : index
      %c0_172 = arith.constant 0 : index
      %398 = vector.load %arg3[%c38, %c0_172] : memref<49x256xf32, #tpu.memory_space<vmem>>, vector<1x256xf32>
      %399 = vector.broadcast %398 : vector<1x256xf32> to vector<2x256xf32>
      %400 = arith.mulf %399, %396 : vector<2x256xf32>
      %401 = arith.addf %395, %400 : vector<2x256xf32>
      %c38_173 = arith.constant 38 : index
      %c0_174 = arith.constant 0 : index
      %402 = vector.load %arg4[%c38_173, %c0_174] : memref<49x256xf32, #tpu.memory_space<vmem>>, vector<1x256xf32>
      %403 = vector.broadcast %402 : vector<1x256xf32> to vector<2x256xf32>
      %404 = arith.mulf %403, %397 : vector<2x256xf32>
      %405 = arith.addf %401, %404 : vector<2x256xf32>
      %c223_i32 = arith.constant 223 : i32
      %406 = tpu.dynamic_rotate %15 by %c223_i32 dim 1 : vector<2x256xf32>, i32 -> vector<2x256xf32>
      %c223_i32_175 = arith.constant 223 : i32
      %407 = tpu.dynamic_rotate %16 by %c223_i32_175 dim 1 : vector<2x256xf32>, i32 -> vector<2x256xf32>
      %c39 = arith.constant 39 : index
      %c0_176 = arith.constant 0 : index
      %408 = vector.load %arg3[%c39, %c0_176] : memref<49x256xf32, #tpu.memory_space<vmem>>, vector<1x256xf32>
      %409 = vector.broadcast %408 : vector<1x256xf32> to vector<2x256xf32>
      %410 = arith.mulf %409, %406 : vector<2x256xf32>
      %411 = arith.addf %405, %410 : vector<2x256xf32>
      %c39_177 = arith.constant 39 : index
      %c0_178 = arith.constant 0 : index
      %412 = vector.load %arg4[%c39_177, %c0_178] : memref<49x256xf32, #tpu.memory_space<vmem>>, vector<1x256xf32>
      %413 = vector.broadcast %412 : vector<1x256xf32> to vector<2x256xf32>
      %414 = arith.mulf %413, %407 : vector<2x256xf32>
      %415 = arith.addf %411, %414 : vector<2x256xf32>
      %c222_i32 = arith.constant 222 : i32
      %416 = tpu.dynamic_rotate %15 by %c222_i32 dim 1 : vector<2x256xf32>, i32 -> vector<2x256xf32>
      %c222_i32_179 = arith.constant 222 : i32
      %417 = tpu.dynamic_rotate %16 by %c222_i32_179 dim 1 : vector<2x256xf32>, i32 -> vector<2x256xf32>
      %c40 = arith.constant 40 : index
      %c0_180 = arith.constant 0 : index
      %418 = vector.load %arg3[%c40, %c0_180] : memref<49x256xf32, #tpu.memory_space<vmem>>, vector<1x256xf32>
      %419 = vector.broadcast %418 : vector<1x256xf32> to vector<2x256xf32>
      %420 = arith.mulf %419, %416 : vector<2x256xf32>
      %421 = arith.addf %415, %420 : vector<2x256xf32>
      %c40_181 = arith.constant 40 : index
      %c0_182 = arith.constant 0 : index
      %422 = vector.load %arg4[%c40_181, %c0_182] : memref<49x256xf32, #tpu.memory_space<vmem>>, vector<1x256xf32>
      %423 = vector.broadcast %422 : vector<1x256xf32> to vector<2x256xf32>
      %424 = arith.mulf %423, %417 : vector<2x256xf32>
      %425 = arith.addf %421, %424 : vector<2x256xf32>
      %c221_i32 = arith.constant 221 : i32
      %426 = tpu.dynamic_rotate %15 by %c221_i32 dim 1 : vector<2x256xf32>, i32 -> vector<2x256xf32>
      %c221_i32_183 = arith.constant 221 : i32
      %427 = tpu.dynamic_rotate %16 by %c221_i32_183 dim 1 : vector<2x256xf32>, i32 -> vector<2x256xf32>
      %c41 = arith.constant 41 : index
      %c0_184 = arith.constant 0 : index
      %428 = vector.load %arg3[%c41, %c0_184] : memref<49x256xf32, #tpu.memory_space<vmem>>, vector<1x256xf32>
      %429 = vector.broadcast %428 : vector<1x256xf32> to vector<2x256xf32>
      %430 = arith.mulf %429, %426 : vector<2x256xf32>
      %431 = arith.addf %425, %430 : vector<2x256xf32>
      %c41_185 = arith.constant 41 : index
      %c0_186 = arith.constant 0 : index
      %432 = vector.load %arg4[%c41_185, %c0_186] : memref<49x256xf32, #tpu.memory_space<vmem>>, vector<1x256xf32>
      %433 = vector.broadcast %432 : vector<1x256xf32> to vector<2x256xf32>
      %434 = arith.mulf %433, %427 : vector<2x256xf32>
      %435 = arith.addf %431, %434 : vector<2x256xf32>
      %c211_i32 = arith.constant 211 : i32
      %436 = tpu.dynamic_rotate %15 by %c211_i32 dim 1 : vector<2x256xf32>, i32 -> vector<2x256xf32>
      %c211_i32_187 = arith.constant 211 : i32
      %437 = tpu.dynamic_rotate %16 by %c211_i32_187 dim 1 : vector<2x256xf32>, i32 -> vector<2x256xf32>
      %c42 = arith.constant 42 : index
      %c0_188 = arith.constant 0 : index
      %438 = vector.load %arg3[%c42, %c0_188] : memref<49x256xf32, #tpu.memory_space<vmem>>, vector<1x256xf32>
      %439 = vector.broadcast %438 : vector<1x256xf32> to vector<2x256xf32>
      %440 = arith.mulf %439, %436 : vector<2x256xf32>
      %441 = arith.addf %435, %440 : vector<2x256xf32>
      %c42_189 = arith.constant 42 : index
      %c0_190 = arith.constant 0 : index
      %442 = vector.load %arg4[%c42_189, %c0_190] : memref<49x256xf32, #tpu.memory_space<vmem>>, vector<1x256xf32>
      %443 = vector.broadcast %442 : vector<1x256xf32> to vector<2x256xf32>
      %444 = arith.mulf %443, %437 : vector<2x256xf32>
      %445 = arith.addf %441, %444 : vector<2x256xf32>
      %c210_i32 = arith.constant 210 : i32
      %446 = tpu.dynamic_rotate %15 by %c210_i32 dim 1 : vector<2x256xf32>, i32 -> vector<2x256xf32>
      %c210_i32_191 = arith.constant 210 : i32
      %447 = tpu.dynamic_rotate %16 by %c210_i32_191 dim 1 : vector<2x256xf32>, i32 -> vector<2x256xf32>
      %c43 = arith.constant 43 : index
      %c0_192 = arith.constant 0 : index
      %448 = vector.load %arg3[%c43, %c0_192] : memref<49x256xf32, #tpu.memory_space<vmem>>, vector<1x256xf32>
      %449 = vector.broadcast %448 : vector<1x256xf32> to vector<2x256xf32>
      %450 = arith.mulf %449, %446 : vector<2x256xf32>
      %451 = arith.addf %445, %450 : vector<2x256xf32>
      %c43_193 = arith.constant 43 : index
      %c0_194 = arith.constant 0 : index
      %452 = vector.load %arg4[%c43_193, %c0_194] : memref<49x256xf32, #tpu.memory_space<vmem>>, vector<1x256xf32>
      %453 = vector.broadcast %452 : vector<1x256xf32> to vector<2x256xf32>
      %454 = arith.mulf %453, %447 : vector<2x256xf32>
      %455 = arith.addf %451, %454 : vector<2x256xf32>
      %c209_i32 = arith.constant 209 : i32
      %456 = tpu.dynamic_rotate %15 by %c209_i32 dim 1 : vector<2x256xf32>, i32 -> vector<2x256xf32>
      %c209_i32_195 = arith.constant 209 : i32
      %457 = tpu.dynamic_rotate %16 by %c209_i32_195 dim 1 : vector<2x256xf32>, i32 -> vector<2x256xf32>
      %c44 = arith.constant 44 : index
      %c0_196 = arith.constant 0 : index
      %458 = vector.load %arg3[%c44, %c0_196] : memref<49x256xf32, #tpu.memory_space<vmem>>, vector<1x256xf32>
      %459 = vector.broadcast %458 : vector<1x256xf32> to vector<2x256xf32>
      %460 = arith.mulf %459, %456 : vector<2x256xf32>
      %461 = arith.addf %455, %460 : vector<2x256xf32>
      %c44_197 = arith.constant 44 : index
      %c0_198 = arith.constant 0 : index
      %462 = vector.load %arg4[%c44_197, %c0_198] : memref<49x256xf32, #tpu.memory_space<vmem>>, vector<1x256xf32>
      %463 = vector.broadcast %462 : vector<1x256xf32> to vector<2x256xf32>
      %464 = arith.mulf %463, %457 : vector<2x256xf32>
      %465 = arith.addf %461, %464 : vector<2x256xf32>
      %c208_i32 = arith.constant 208 : i32
      %466 = tpu.dynamic_rotate %15 by %c208_i32 dim 1 : vector<2x256xf32>, i32 -> vector<2x256xf32>
      %c208_i32_199 = arith.constant 208 : i32
      %467 = tpu.dynamic_rotate %16 by %c208_i32_199 dim 1 : vector<2x256xf32>, i32 -> vector<2x256xf32>
      %c45 = arith.constant 45 : index
      %c0_200 = arith.constant 0 : index
      %468 = vector.load %arg3[%c45, %c0_200] : memref<49x256xf32, #tpu.memory_space<vmem>>, vector<1x256xf32>
      %469 = vector.broadcast %468 : vector<1x256xf32> to vector<2x256xf32>
      %470 = arith.mulf %469, %466 : vector<2x256xf32>
      %471 = arith.addf %465, %470 : vector<2x256xf32>
      %c45_201 = arith.constant 45 : index
      %c0_202 = arith.constant 0 : index
      %472 = vector.load %arg4[%c45_201, %c0_202] : memref<49x256xf32, #tpu.memory_space<vmem>>, vector<1x256xf32>
      %473 = vector.broadcast %472 : vector<1x256xf32> to vector<2x256xf32>
      %474 = arith.mulf %473, %467 : vector<2x256xf32>
      %475 = arith.addf %471, %474 : vector<2x256xf32>
      %c207_i32 = arith.constant 207 : i32
      %476 = tpu.dynamic_rotate %15 by %c207_i32 dim 1 : vector<2x256xf32>, i32 -> vector<2x256xf32>
      %c207_i32_203 = arith.constant 207 : i32
      %477 = tpu.dynamic_rotate %16 by %c207_i32_203 dim 1 : vector<2x256xf32>, i32 -> vector<2x256xf32>
      %c46 = arith.constant 46 : index
      %c0_204 = arith.constant 0 : index
      %478 = vector.load %arg3[%c46, %c0_204] : memref<49x256xf32, #tpu.memory_space<vmem>>, vector<1x256xf32>
      %479 = vector.broadcast %478 : vector<1x256xf32> to vector<2x256xf32>
      %480 = arith.mulf %479, %476 : vector<2x256xf32>
      %481 = arith.addf %475, %480 : vector<2x256xf32>
      %c46_205 = arith.constant 46 : index
      %c0_206 = arith.constant 0 : index
      %482 = vector.load %arg4[%c46_205, %c0_206] : memref<49x256xf32, #tpu.memory_space<vmem>>, vector<1x256xf32>
      %483 = vector.broadcast %482 : vector<1x256xf32> to vector<2x256xf32>
      %484 = arith.mulf %483, %477 : vector<2x256xf32>
      %485 = arith.addf %481, %484 : vector<2x256xf32>
      %c206_i32 = arith.constant 206 : i32
      %486 = tpu.dynamic_rotate %15 by %c206_i32 dim 1 : vector<2x256xf32>, i32 -> vector<2x256xf32>
      %c206_i32_207 = arith.constant 206 : i32
      %487 = tpu.dynamic_rotate %16 by %c206_i32_207 dim 1 : vector<2x256xf32>, i32 -> vector<2x256xf32>
      %c47 = arith.constant 47 : index
      %c0_208 = arith.constant 0 : index
      %488 = vector.load %arg3[%c47, %c0_208] : memref<49x256xf32, #tpu.memory_space<vmem>>, vector<1x256xf32>
      %489 = vector.broadcast %488 : vector<1x256xf32> to vector<2x256xf32>
      %490 = arith.mulf %489, %486 : vector<2x256xf32>
      %491 = arith.addf %485, %490 : vector<2x256xf32>
      %c47_209 = arith.constant 47 : index
      %c0_210 = arith.constant 0 : index
      %492 = vector.load %arg4[%c47_209, %c0_210] : memref<49x256xf32, #tpu.memory_space<vmem>>, vector<1x256xf32>
      %493 = vector.broadcast %492 : vector<1x256xf32> to vector<2x256xf32>
      %494 = arith.mulf %493, %487 : vector<2x256xf32>
      %495 = arith.addf %491, %494 : vector<2x256xf32>
      %c205_i32 = arith.constant 205 : i32
      %496 = tpu.dynamic_rotate %15 by %c205_i32 dim 1 : vector<2x256xf32>, i32 -> vector<2x256xf32>
      %c205_i32_211 = arith.constant 205 : i32
      %497 = tpu.dynamic_rotate %16 by %c205_i32_211 dim 1 : vector<2x256xf32>, i32 -> vector<2x256xf32>
      %c48 = arith.constant 48 : index
      %c0_212 = arith.constant 0 : index
      %498 = vector.load %arg3[%c48, %c0_212] : memref<49x256xf32, #tpu.memory_space<vmem>>, vector<1x256xf32>
      %499 = vector.broadcast %498 : vector<1x256xf32> to vector<2x256xf32>
      %500 = arith.mulf %499, %496 : vector<2x256xf32>
      %501 = arith.addf %495, %500 : vector<2x256xf32>
      %c48_213 = arith.constant 48 : index
      %c0_214 = arith.constant 0 : index
      %502 = vector.load %arg4[%c48_213, %c0_214] : memref<49x256xf32, #tpu.memory_space<vmem>>, vector<1x256xf32>
      %503 = vector.broadcast %502 : vector<1x256xf32> to vector<2x256xf32>
      %504 = arith.mulf %503, %497 : vector<2x256xf32>
      %505 = arith.addf %501, %504 : vector<2x256xf32>
      %c0_215 = arith.constant 0 : index
      %c0_216 = arith.constant 0 : index
      %506 = vector.load %arg5[%c0_215, %c0_216] : memref<2x256xf32, #tpu.memory_space<vmem>>, vector<2x256xf32>
      tpu.vector_store %arg5[%c0_215, %c0_216], %505 {strides = array<i32>} : memref<2x256xf32, #tpu.memory_space<vmem>>, vector<2x256xf32>,
    } else {
    }
    return
  }
  func.func @transform_0(%arg0: i32, %arg1: i32) -> (i32, i32, i32) {
    %c0_i32 = arith.constant 0 : i32
    %c0_i32_0 = arith.constant 0 : i32
    return %arg0, %arg1, %c0_i32 : i32, i32, i32
  }
  func.func @transform_1(%arg0: i32, %arg1: i32) -> (i32, i32) {
    %c0_i32 = arith.constant 0 : i32
    %c0_i32_0 = arith.constant 0 : i32
    %c0_i32_1 = arith.constant 0 : i32
    return %c0_i32, %c0_i32_0 : i32, i32
  }
  func.func @transform_2(%arg0: i32, %arg1: i32) -> (i32, i32) {
    %c0_i32 = arith.constant 0 : i32
    %c0_i32_0 = arith.constant 0 : i32
    %c0_i32_1 = arith.constant 0 : i32
    return %c0_i32, %c0_i32_0 : i32, i32
  }
  func.func @transform_3(%arg0: i32, %arg1: i32) -> (i32, i32) {
    %c0_i32 = arith.constant 0 : i32
    %c0_i32_0 = arith.constant 0 : i32
    return %arg0, %c0_i32 : i32, i32
  }
}

</mosaic_0001>

<llo_original>
// kernel: spatial_attention.3
$region0: #{spatial_attention.3}
  #allocation0 [shape = 'u32[]', space=smem, size = 0x4, offset = 0x4, fixed_abs, tag = 'smem constant byte address 0x4 - core index']
  #allocation1 [shape = 'u32[144,128]{1,0:T(1,128)}', space=vmem, size = 0x12000, scoped, tag = 'internal scratch']
  %s0 = inlined_call_operand.vmem [shape: f32[2,4,256], index: 0, kind: input, shape index: {}]
  %s1 = inlined_call_operand.vmem [shape: f32[2,1,256], index: 1, kind: input, shape index: {}]
  %s2 = inlined_call_operand.vmem [shape: f32[2,4,256], index: 2, kind: output, shape index: {}]
  %s3 = sld [smem:[#allocation0]]
  $region41: #{spatial_attention.3} parent=0
    _
  %s5 = ssub.s32 1, %s3
  %s6 = scalar_select 0, %s5, %s3
  loop: start=0, step=1, limit=4
  $region2: #{spatial_attention.3} parent=0 // loop_pre_header
    _
  $region3: #{spatial_attention.3} parent=0 // loop_header
    %s8 = sphi 0, %s12
    %p9 = scmp.ge.s32.totalorder %s8, 4
    %s15 = sphi 0, %s27
    %s16 = sphi 0, %s23
    %s17 = sphi 0, %s15
    %s18 = sphi 0, %s16
    %s19 = sphi 0, %s17
    %s20 = sphi 0, %s18
    %s32 = sphi 0, %s34
    %s35 = sphi 0, %s32
    %s36 = sphi 0, %s35
    %s52 = sphi 0, %s36
    %s58 = sphi 0, %s60
    %s61 = sphi 0, %s58
    %s62 = sphi 0, %s61
    %s78 = sphi 0, %s62
    %s86 = sphi 0, %s88
    %s89 = sphi 0, %s86
    %s90 = sphi 0, %s89
    %s106 = sphi 0, %s90
  $region4: #{spatial_attention.3} parent=0 // loop_header_branch
    %11 = sbr.rel (%p9) target = $region8
  $region5: #{spatial_attention.3} parent=0 // loop_body
    %s13 = ssub.s32 %s8, 1
    %s14 = ssub.s32 %s8, 2
    %s21 = sadd.s32 1, %s16
    %p22 = scmp.ge.s32.totalorder %s21, 1
    %s23 = scalar_select %p22, 0, %s21
    %s24 = sadd.s32 1, %s15
    %s25 = scalar_select %p22, %s24, %s15
    %p26 = scmp.ge.s32.totalorder %s25, 2
    %s27 = scalar_select %p26, 0, %s25
    %s28 = ssub.s32 %s15, %s27
    %s29 = ssub.s32 %s16, %s23
    %s30 = sor.u32 %s28, %s29
    %p31 = scmp.eq.s32.totalorder %s30, 0
    %s33 = sadd.s32 %s32, 1
    %s34 = scalar_select %p31, %s32, %s33
    %p37 = pneg %p31
    %p38 = scmp.eq.s32.totalorder %s8, 1
    %p39 = por %p37, %p38
    %p40 = scmp.ne.s32.totalorder %s32, %s35
    %p41 = scmp.eq.s32.totalorder %s8, 0
    %p42 = por %p40, %p41
    %p43 = scmp.ne.s32.totalorder %s32, %s35
    %p44 = scmp.eq.s32.totalorder %s13, 1
    %p45 = por %p43, %p44
    %p46 = scmp.ne.s32.totalorder %s35, %s36
    %p47 = scmp.eq.s32.totalorder %s13, 0
    %p48 = por %p46, %p47
    %p49 = scmp.ne.s32.totalorder %s35, %s36
    %p50 = scmp.eq.s32.totalorder %s14, 1
    %p51 = por %p49, %p50
    %p53 = scmp.ne.s32.totalorder %s36, %s52
    %p54 = scmp.eq.s32.totalorder %s14, 0
    %p55 = por %p53, %p54
    %s56 = ssub.s32 %s15, %s27
    %p57 = scmp.eq.s32.totalorder %s56, 0
    %s59 = sadd.s32 %s58, 1
    %s60 = scalar_select %p57, %s58, %s59
    %p63 = pneg %p57
    %p64 = scmp.eq.s32.totalorder %s8, 1
    %p65 = por %p63, %p64
    %p66 = scmp.ne.s32.totalorder %s58, %s61
    %p67 = scmp.eq.s32.totalorder %s8, 0
    %p68 = por %p66, %p67
    %p69 = scmp.ne.s32.totalorder %s58, %s61
    %p70 = scmp.eq.s32.totalorder %s13, 1
    %p71 = por %p69, %p70
    %p72 = scmp.ne.s32.totalorder %s61, %s62
    %p73 = scmp.eq.s32.totalorder %s13, 0
    %p74 = por %p72, %p73
    %p75 = scmp.ne.s32.totalorder %s61, %s62
    %p76 = scmp.eq.s32.totalorder %s14, 1
    %p77 = por %p75, %p76
    %p79 = scmp.ne.s32.totalorder %s62, %s78
    %p80 = scmp.eq.s32.totalorder %s14, 0
    %p81 = por %p79, %p80
    %s82 = ssub.s32 %s15, %s27
    %s83 = ssub.s32 %s16, %s23
    %s84 = sor.u32 %s82, %s83
    %p85 = scmp.eq.s32.totalorder %s84, 0
    %s87 = sadd.s32 %s86, 1
    %s88 = scalar_select %p85, %s86, %s87
    %p91 = pneg %p85
    %p92 = scmp.eq.s32.totalorder %s8, 1
    %p93 = por %p91, %p92
    %p94 = scmp.ne.s32.totalorder %s86, %s89
    %p95 = scmp.eq.s32.totalorder %s8, 0
    %p96 = por %p94, %p95
    %p97 = scmp.ne.s32.totalorder %s86, %s89
    %p98 = scmp.eq.s32.totalorder %s13, 1
    %p99 = por %p97, %p98
    %p100 = scmp.ne.s32.totalorder %s89, %s90
    %p101 = scmp.eq.s32.totalorder %s13, 0
    %p102 = por %p100, %p101
    %p103 = scmp.ne.s32.totalorder %s89, %s90
    %p104 = scmp.eq.s32.totalorder %s14, 1
    %p105 = por %p103, %p104
    %p107 = scmp.ne.s32.totalorder %s90, %s106
    %p108 = scmp.eq.s32.totalorder %s14, 0
    %p109 = por %p107, %p108
    %p110 = scmp.le.s32.totalorder 1, %s8
    %p111 = scmp.lt.s32.totalorder %s8, 3
    %p112 = pnand %p110, %p111
    %p113 = pneg %p112
    // Predicated region
    $region9: #{spatial_attention.3} parent=5 // pred_check
      _
    $region10: #{spatial_attention.3} parent=5 // pred_check_branch
      %115 = sbr.rel (%p112) target = $region12
    $region11: #{spatial_attention.3} parent=5 // pred_region
      %s116 = ssub.s32 %s8, 1
    $region12: #{spatial_attention.3} parent=5 // pred_fallthru
      _
    %p117 = scmp.lt.s32.totalorder %s8, 2
    // Predicated region
    $region13: #{spatial_attention.3} parent=5 // pred_check
      %p118 = pneg %p117
    $region14: #{spatial_attention.3} parent=5 // pred_check_branch
      %120 = sbr.rel (%p118) target = $region16
    $region15: #{spatial_attention.3} parent=5 // pred_region
      // Predicated region
      $region17: #{spatial_attention.3} parent=15 // pred_check
        %p121 = pneg %p42
      $region18: #{spatial_attention.3} parent=15 // pred_check_branch
        %123 = sbr.rel (%p121) target = $region20
      $region19: #{spatial_attention.3} parent=15 // pred_region
        %p124 = scmp.lt.s32.totalorder %s15, 1
        %s125 = scalar_select %p124, %s15, 1
        %p126 = scmp.lt.s32.totalorder %s16, 0
        %s127 = scalar_select %p126, %s16, 0
        %s128 = smul.addr %s127, 2
        %s129 = smul.addr %s125, 2
        %s130 = sadd.s32 %s128, %s129
        %s131 = smul.addr %s130, 4
        %s132 = scalar_lea.vmem %s0, %s131
      $region20: #{spatial_attention.3} parent=15 // pred_fallthru
        _
      // Predicated region
      $region21: #{spatial_attention.3} parent=15 // pred_check
        %p133 = pneg %p68
      $region22: #{spatial_attention.3} parent=15 // pred_check_branch
        %135 = sbr.rel (%p133) target = $region24
      $region23: #{spatial_attention.3} parent=15 // pred_region
        %p136 = scmp.lt.s32.totalorder %s15, 1
        %s137 = scalar_select %p136, %s15, 1
        %s138 = smul.addr %s137, 2
        %s139 = scalar_lea.vmem %s1, %s138
      $region24: #{spatial_attention.3} parent=15 // pred_fallthru
        _
    $region16: #{spatial_attention.3} parent=5 // pred_fallthru
      _
    %p140 = scmp.le.s32.totalorder 1, %s8
    %p141 = scmp.lt.s32.totalorder %s8, 3
    %p142 = pnand %p140, %p141
    %p143 = pneg %p142
    // Predicated region
    $region25: #{spatial_attention.3} parent=5 // pred_check
      _
    $region26: #{spatial_attention.3} parent=5 // pred_check_branch
      %145 = sbr.rel (%p142) target = $region28
    $region27: #{spatial_attention.3} parent=5 // pred_region
      %s146 = ssub.s32 %s8, 1
      %p147 = scmp.lt.s32.totalorder %s17, 1
      %s148 = scalar_select %p147, %s17, 1
      %p149 = scmp.lt.s32.totalorder %s18, 0
      %s150 = scalar_select %p149, %s18, 0
      %s151 = smul.addr %s150, 2
      %s152 = smul.addr %s148, 2
      %s153 = sadd.s32 %s151, %s152
      %s154 = smul.addr %s153, 4
      %s155 = scalar_lea.vmem %s0, %s154
      %p156 = pneg %p48
      %p157 = pneg %p45
      %p158 = scmp.lt.s32.totalorder %s17, 1
      %s159 = scalar_select %p158, %s17, 1
      %s160 = smul.addr %s159, 2
      %s161 = scalar_lea.vmem %s1, %s160
      %p162 = pneg %p74
      %p163 = pneg %p71
      %p164 = pneg %p102
      %p165 = pneg %p99
      %p166 = scmp.lt.s32.totalorder %s17, 1
      %s167 = scalar_select %p166, %s17, 1
      %p168 = scmp.lt.s32.totalorder %s18, 0
      %s169 = scalar_select %p168, %s18, 0
      %s170 = smul.addr %s169, 2
      %s171 = smul.addr %s167, 2
      %s172 = sadd.s32 %s170, %s171
      %s173 = smul.addr %s172, 4
      %s174 = scalar_lea.vmem %s2, %s173
      %p175 = scmp.lt.s32.totalorder %s17, 1
      %s176 = scalar_select %p175, %s17, 1
      %p177 = scmp.lt.s32.totalorder %s18, 0
      %s178 = scalar_select %p177, %s18, 0
      %s179 = smul.addr %s178, 2
      %s180 = smul.addr %s176, 2
      %s181 = sadd.s32 %s179, %s180
      %s182 = smul.addr %s181, 4
      %s183 = scalar_lea.vmem %s0, %s182
      %p184 = scmp.lt.s32.totalorder %s17, 1
      %s185 = scalar_select %p184, %s17, 1
      %s186 = smul.addr %s185, 2
      %s187 = scalar_lea.vmem %s1, %s186
      %p188 = scmp.lt.s32.totalorder %s17, 1
      %s189 = scalar_select %p188, %s17, 1
      %p190 = scmp.lt.s32.totalorder %s18, 0
      %s191 = scalar_select %p190, %s18, 0
      %s192 = smul.addr %s191, 2
      %s193 = smul.addr %s189, 2
      %s194 = sadd.s32 %s192, %s193
      %s195 = smul.addr %s194, 4
      %s196 = scalar_lea.vmem %s2, %s195
      %v197 = vld [vmem:[%s183] sm:$0xff]
      %v198 = vld [vmem:[%s187] sm:$0x3]
      %v200 = vlaneseq
      %v201 = vshrl.u32 %v200, 7
      %v202 = vsub.s32 0, %v201
      %v203 = vrot.slane %v198, %v202
      %v204 = vlaneseq
      %v205 = vshrl.u32 %v204, 7
      %v206 = vsub.s32 1, %v205
      %v207 = vrot.slane %v198, %v206
      %v208 = vcombine.low %v203, %v207
      %v210 = vmul.f32 %v197, %v208
      %211 = vst [vmem:[%s196] sm:$0xff] %v210
      %p212 = scmp.lt.s32.totalorder %s17, 1
      %s213 = scalar_select %p212, %s17, 1
      %p214 = scmp.lt.s32.totalorder %s18, 0
      %s215 = scalar_select %p214, %s18, 0
      %s216 = smul.addr %s215, 2
      %s217 = smul.addr %s213, 2
      %s218 = sadd.s32 %s216, %s217
      %s219 = smul.addr %s218, 4
      %s220 = scalar_lea.vmem %s2, %s219
      // Predicated region
      $region29: #{spatial_attention.3} parent=27 // pred_check
        %p221 = pneg %p99
      $region30: #{spatial_attention.3} parent=27 // pred_check_branch
        %223 = sbr.rel (%p221) target = $region32
      $region31: #{spatial_attention.3} parent=27 // pred_region
        _
      $region32: #{spatial_attention.3} parent=27 // pred_fallthru
        _
    $region28: #{spatial_attention.3} parent=5 // pred_fallthru
      _
    %p224 = scmp.le.s32.totalorder 2, %s8
    // Predicated region
    $region33: #{spatial_attention.3} parent=5 // pred_check
      %p225 = pneg %p224
    $region34: #{spatial_attention.3} parent=5 // pred_check_branch
      %227 = sbr.rel (%p225) target = $region36
    $region35: #{spatial_attention.3} parent=5 // pred_region
      %s228 = ssub.s32 %s8, 2
      // Predicated region
      $region37: #{spatial_attention.3} parent=35 // pred_check
        %p229 = pneg %p105
      $region38: #{spatial_attention.3} parent=35 // pred_check_branch
        %231 = sbr.rel (%p229) target = $region40
      $region39: #{spatial_attention.3} parent=35 // pred_region
        %p232 = scmp.lt.s32.totalorder %s19, 1
        %s233 = scalar_select %p232, %s19, 1
        %p234 = scmp.lt.s32.totalorder %s20, 0
        %s235 = scalar_select %p234, %s20, 0
        %s236 = smul.addr %s235, 2
        %s237 = smul.addr %s233, 2
        %s238 = sadd.s32 %s236, %s237
        %s239 = smul.addr %s238, 4
        %s240 = scalar_lea.vmem %s2, %s239
      $region40: #{spatial_attention.3} parent=35 // pred_fallthru
        _
    $region36: #{spatial_attention.3} parent=5 // pred_fallthru
      _
  $region6: #{spatial_attention.3} parent=0 // loop_footer
    %s12 = sadd.s32 1, %s8
  $region7: #{spatial_attention.3} parent=0 // loop_footer_branch
    %7 = sbr.rel target = $region3
  $region8: #{spatial_attention.3} parent=0 // loop_exit
    _

// kernel: spatial_attention.2
$region0: #{spatial_attention.2}
  #allocation0 [shape = 'u32[]', space=smem, size = 0x4, offset = 0x4, fixed_abs, tag = 'smem constant byte address 0x4 - core index']
  #allocation1 [shape = 'u32[144,128]{1,0:T(1,128)}', space=vmem, size = 0x12000, scoped, tag = 'internal scratch']
  #allocation2 [shape = 'f32[2,256]{1,0:T(2,128)}', space=vmem, size = 0x800, scoped, tag = 'scratch operand']
  #allocation3 [shape = 'f32[2,256]{1,0:T(2,128)}', space=vmem, size = 0x800, scoped, tag = 'scratch operand']
  %s0 = inlined_call_operand.vmem [shape: f32[2,4,256], index: 0, kind: input, shape index: {}]
  %s1 = inlined_call_operand.vmem [shape: f32[49,256], index: 1, kind: input, shape index: {}]
  %s2 = inlined_call_operand.vmem [shape: f32[49,256], index: 2, kind: input, shape index: {}]
  %s3 = inlined_call_operand.vmem [shape: f32[2,256], index: 3, kind: output, shape index: {}]
  %s4 = sld [smem:[#allocation0]]
  $region30: #{spatial_attention.2} parent=0
    _
  %s6 = ssub.s32 1, %s4
  %s7 = scalar_select 0, %s6, %s4
  // Predicated region
  $region2: #{spatial_attention.2} parent=0 // pred_check
    _
  $region3: #{spatial_attention.2} parent=0 // pred_check_branch
    %9 = sbr.rel (0) target = $region5
  $region4: #{spatial_attention.2} parent=0 // pred_region
    _
  $region5: #{spatial_attention.2} parent=0 // pred_fallthru
    _
  // Predicated region
  $region6: #{spatial_attention.2} parent=0 // pred_check
    _
  $region7: #{spatial_attention.2} parent=0 // pred_check_branch
    %11 = sbr.rel (0) target = $region9
  $region8: #{spatial_attention.2} parent=0 // pred_region
    _
  $region9: #{spatial_attention.2} parent=0 // pred_fallthru
    _
  // Predicated region
  $region10: #{spatial_attention.2} parent=0 // pred_check
    _
  $region11: #{spatial_attention.2} parent=0 // pred_check_branch
    %13 = sbr.rel (0) target = $region13
  $region12: #{spatial_attention.2} parent=0 // pred_region
    _
  $region13: #{spatial_attention.2} parent=0 // pred_fallthru
    _
  %p14 = scmp.eq.s32.totalorder 0, 0
  // Predicated region
  $region14: #{spatial_attention.2} parent=0 // pred_check
    %p15 = pneg %p14
  $region15: #{spatial_attention.2} parent=0 // pred_check_branch
    %17 = sbr.rel (%p15) target = $region17
  $region16: #{spatial_attention.2} parent=0 // pred_region
    %18 = vst [vmem:[#allocation2] sm:$0xf] 0.0
    %19 = vst [vmem:[#allocation3] sm:$0xf] -inf
  $region17: #{spatial_attention.2} parent=0 // pred_fallthru
    _
  %v20 = vld [vmem:[%s0] sm:$0xff]
  %v21 = vld [vmem:[%s0 + $0x8] sm:$0xff]
  %v22 = vld [vmem:[#allocation2] sm:$0xf]
  %v25 = vcombine.high %v20, %v20
  %v26 = vcombine.high %v21, %v21
  %vm29 = vcmask 1043456
  %v30 = vsel %vm29, %v20, 0.0
  %v31 = vrot.slane %v30, 4
  %v32 = vadd.f32 %v30, %v31
  %v33 = vrot.slane %v32, 2
  %v34 = vadd.f32 %v32, %v33
  %v35 = vrot.slane %v34, 1
  %v36 = vadd.f32 %v34, %v35
  %v37 = vsel %vm29, %v25, 0.0
  %v38 = vrot.slane %v37, 4
  %v39 = vadd.f32 %v37, %v38
  %v40 = vrot.slane %v39, 2
  %v41 = vadd.f32 %v39, %v40
  %v42 = vrot.slane %v41, 1
  %v43 = vadd.f32 %v41, %v42
  %v44 = vsel %vm29, %v21, 0.0
  %v45 = vrot.slane %v44, 4
  %v46 = vadd.f32 %v44, %v45
  %v47 = vrot.slane %v46, 2
  %v48 = vadd.f32 %v46, %v47
  %v49 = vrot.slane %v48, 1
  %v50 = vadd.f32 %v48, %v49
  %v51 = vsel %vm29, %v26, 0.0
  %v52 = vrot.slane %v51, 4
  %v53 = vadd.f32 %v51, %v52
  %v54 = vrot.slane %v53, 2
  %v55 = vadd.f32 %v53, %v54
  %v56 = vrot.slane %v55, 1
  %v57 = vadd.f32 %v55, %v56
  %v62 = vcombine.low %v36, %v43
  %v64 = vunpack.c.l.s4 1983009808
  %v65 = vunpack.c.0.s8 %v64
  %v66 = vlaneseq
  %v67 = vshrl.u32 %v66, 7
  %v68 = vsub.s32 %v65, %v67
  %v69 = vrot.slane %v62, %v68
  %v70 = vcombine.low %v50, %v57
  %v72 = vunpack.c.l.s4 1983009808
  %v73 = vunpack.c.0.s8 %v72
  %v74 = vlaneseq
  %v75 = vshrl.u32 %v74, 7
  %v76 = vsub.s32 %v73, %v75
  %v77 = vrot.slane %v70, %v76
  %vm78 = vcmask 1044484
  %v79 = vsel %vm78, %v69, %v69
  %vm80 = vcmask 1046534
  %v81 = vsel %vm80, %v69, %v79
  %v82 = vrot.slane %v77, 7
  %vm83 = vcmask 1041409
  %v84 = vsel %vm83, %v82, %v81
  %vm85 = vcmask 1043459
  %v86 = vsel %vm85, %v82, %v84
  %vm87 = vcmask 1045509
  %v88 = vsel %vm87, %v82, %v86
  %vm89 = vcmask 1047559
  %v90 = vsel %vm89, %v82, %v88
  %v92 = vadd.f32 %v22, %v90
  %93 = vst [vmem:[#allocation2] sm:$0xf] %v92
  %v94 = vld [vmem:[#allocation3] sm:$0xf]
  %v95 = vsel %vm29, %v20, -inf
  %v96 = vrot.slane %v95, 4
  %v97 = vmax.f32 %v95, %v96
  %v98 = vrot.slane %v97, 2
  %v99 = vmax.f32 %v97, %v98
  %v100 = vrot.slane %v99, 1
  %v101 = vmax.f32 %v99, %v100
  %v102 = vsel %vm29, %v25, -inf
  %v103 = vrot.slane %v102, 4
  %v104 = vmax.f32 %v102, %v103
  %v105 = vrot.slane %v104, 2
  %v106 = vmax.f32 %v104, %v105
  %v107 = vrot.slane %v106, 1
  %v108 = vmax.f32 %v106, %v107
  %v109 = vsel %vm29, %v21, -inf
  %v110 = vrot.slane %v109, 4
  %v111 = vmax.f32 %v109, %v110
  %v112 = vrot.slane %v111, 2
  %v113 = vmax.f32 %v111, %v112
  %v114 = vrot.slane %v113, 1
  %v115 = vmax.f32 %v113, %v114
  %v116 = vsel %vm29, %v26, -inf
  %v117 = vrot.slane %v116, 4
  %v118 = vmax.f32 %v116, %v117
  %v119 = vrot.slane %v118, 2
  %v120 = vmax.f32 %v118, %v119
  %v121 = vrot.slane %v120, 1
  %v122 = vmax.f32 %v120, %v121
  %v127 = vcombine.low %v101, %v108
  %v129 = vunpack.c.l.s4 1983009808
  %v130 = vunpack.c.0.s8 %v129
  %v131 = vlaneseq
  %v132 = vshrl.u32 %v131, 7
  %v133 = vsub.s32 %v130, %v132
  %v134 = vrot.slane %v127, %v133
  %v135 = vcombine.low %v115, %v122
  %v137 = vunpack.c.l.s4 1983009808
  %v138 = vunpack.c.0.s8 %v137
  %v139 = vlaneseq
  %v140 = vshrl.u32 %v139, 7
  %v141 = vsub.s32 %v138, %v140
  %v142 = vrot.slane %v135, %v141
  %v143 = vsel %vm78, %v134, %v134
  %v144 = vsel %vm80, %v134, %v143
  %v145 = vrot.slane %v142, 7
  %v146 = vsel %vm83, %v145, %v144
  %v147 = vsel %vm85, %v145, %v146
  %v148 = vsel %vm87, %v145, %v147
  %v149 = vsel %vm89, %v145, %v148
  %v151 = vmax.f32 %v94, %v149
  %152 = vst [vmem:[#allocation3] sm:$0xf] %v151
  // Predicated region
  $region18: #{spatial_attention.2} parent=0 // pred_check
    %p153 = pneg %p14
  $region19: #{spatial_attention.2} parent=0 // pred_check_branch
    %155 = sbr.rel (%p153) target = $region21
  $region20: #{spatial_attention.2} parent=0 // pred_region
    %v156 = vld [vmem:[#allocation2] sm:$0xf]
    %v157 = vld [vmem:[#allocation3] sm:$0xf]
    %v160 = vunpack.c.l.s4 1983009808
    %v161 = vunpack.c.0.s8 %v160
    %v162 = vlaneseq
    %v163 = vshrl.u32 %v162, 7
    %v164 = vsub.s32 %v161, %v163
    %v165 = vrot.slane %v156, %v164
    %v166 = vcombine.high %v165, %v165
    %169 = vrot.lane.b32.xlu0 %v165, 51
    %v170 = vpop.permute.xlu0 %169
    %171 = vrot.lane.b32.xlu0 %v166, 51
    %v172 = vpop.permute.xlu0 %171
    %v173 = vlaneseq
    %v174 = vand.u32 %v173, 127
    %vm175 = vcmp.lt.s32.totalorder %v174, 51
    %v176 = vsel %vm175, %v170, %v172
    %v177 = vsel %vm175, %v172, %v170
    %v180 = vunpack.c.l.s4 1983009808
    %v181 = vunpack.c.0.s8 %v180
    %v182 = vlaneseq
    %v183 = vshrl.u32 %v182, 7
    %v184 = vsub.s32 %v181, %v183
    %v185 = vrot.slane %v157, %v184
    %v186 = vcombine.high %v185, %v185
    %189 = vrot.lane.b32.xlu0 %v185, 51
    %v190 = vpop.permute.xlu0 %189
    %191 = vrot.lane.b32.xlu0 %v186, 51
    %v192 = vpop.permute.xlu0 %191
    %v193 = vsel %vm175, %v190, %v192
    %v194 = vsel %vm175, %v192, %v190
    %v195 = vld [vmem:[%s1] ss:$8 sm:$0x3]
    %v197 = vlaneseq
    %v198 = vshrl.u32 %v197, 7
    %v199 = vsub.s32 0, %v198
    %v200 = vrot.slane %v195, %v199
    %v201 = vlaneseq
    %v202 = vshrl.u32 %v201, 7
    %v203 = vsub.s32 1, %v202
    %v204 = vrot.slane %v195, %v203
    %v207 = vmul.f32 %v200, %v177
    %v208 = vmul.f32 %v204, %v176
    %v209 = vadd.f32 %v207, 0.0
    %v210 = vadd.f32 %v208, 0.0
    %v211 = vld [vmem:[%s2] ss:$8 sm:$0x3]
    %v213 = vlaneseq
    %v214 = vshrl.u32 %v213, 7
    %v215 = vsub.s32 0, %v214
    %v216 = vrot.slane %v211, %v215
    %v217 = vlaneseq
    %v218 = vshrl.u32 %v217, 7
    %v219 = vsub.s32 1, %v218
    %v220 = vrot.slane %v211, %v219
    %v223 = vmul.f32 %v216, %v194
    %v224 = vmul.f32 %v220, %v193
    %v225 = vadd.f32 %v209, %v223
    %v226 = vadd.f32 %v210, %v224
    %227 = vrot.lane.b32.xlu0 %v165, 50
    %v228 = vpop.permute.xlu0 %227
    %229 = vrot.lane.b32.xlu0 %v166, 50
    %v230 = vpop.permute.xlu0 %229
    %vm231 = vcmp.lt.s32.totalorder %v174, 50
    %v232 = vsel %vm231, %v228, %v230
    %v233 = vsel %vm231, %v230, %v228
    %234 = vrot.lane.b32.xlu0 %v185, 50
    %v235 = vpop.permute.xlu0 %234
    %236 = vrot.lane.b32.xlu0 %v186, 50
    %v237 = vpop.permute.xlu0 %236
    %v238 = vsel %vm231, %v235, %v237
    %v239 = vsel %vm231, %v237, %v235
    %s240 = scalar_lea.vmem %s1, 1
    %v241 = vld [vmem:[%s240] ss:$8 sm:$0x3]
    %v243 = vlaneseq
    %v244 = vshrl.u32 %v243, 7
    %v245 = vsub.s32 0, %v244
    %v246 = vrot.slane %v241, %v245
    %v247 = vlaneseq
    %v248 = vshrl.u32 %v247, 7
    %v249 = vsub.s32 1, %v248
    %v250 = vrot.slane %v241, %v249
    %v253 = vmul.f32 %v246, %v233
    %v254 = vmul.f32 %v250, %v232
    %v255 = vadd.f32 %v225, %v253
    %v256 = vadd.f32 %v226, %v254
    %s257 = scalar_lea.vmem %s2, 1
    %v258 = vld [vmem:[%s257] ss:$8 sm:$0x3]
    %v260 = vlaneseq
    %v261 = vshrl.u32 %v260, 7
    %v262 = vsub.s32 0, %v261
    %v263 = vrot.slane %v258, %v262
    %v264 = vlaneseq
    %v265 = vshrl.u32 %v264, 7
    %v266 = vsub.s32 1, %v265
    %v267 = vrot.slane %v258, %v266
    %v270 = vmul.f32 %v263, %v239
    %v271 = vmul.f32 %v267, %v238
    %v272 = vadd.f32 %v255, %v270
    %v273 = vadd.f32 %v256, %v271
    %274 = vrot.lane.b32.xlu0 %v165, 49
    %v275 = vpop.permute.xlu0 %274
    %276 = vrot.lane.b32.xlu0 %v166, 49
    %v277 = vpop.permute.xlu0 %276
    %vm278 = vcmp.lt.s32.totalorder %v174, 49
    %v279 = vsel %vm278, %v275, %v277
    %v280 = vsel %vm278, %v277, %v275
    %281 = vrot.lane.b32.xlu0 %v185, 49
    %v282 = vpop.permute.xlu0 %281
    %283 = vrot.lane.b32.xlu0 %v186, 49
    %v284 = vpop.permute.xlu0 %283
    %v285 = vsel %vm278, %v282, %v284
    %v286 = vsel %vm278, %v284, %v282
    %s287 = scalar_lea.vmem %s1, 2
    %v288 = vld [vmem:[%s287] ss:$8 sm:$0x3]
    %v290 = vlaneseq
    %v291 = vshrl.u32 %v290, 7
    %v292 = vsub.s32 0, %v291
    %v293 = vrot.slane %v288, %v292
    %v294 = vlaneseq
    %v295 = vshrl.u32 %v294, 7
    %v296 = vsub.s32 1, %v295
    %v297 = vrot.slane %v288, %v296
    %v300 = vmul.f32 %v293, %v280
    %v301 = vmul.f32 %v297, %v279
    %v302 = vadd.f32 %v272, %v300
    %v303 = vadd.f32 %v273, %v301
    %s304 = scalar_lea.vmem %s2, 2
    %v305 = vld [vmem:[%s304] ss:$8 sm:$0x3]
    %v307 = vlaneseq
    %v308 = vshrl.u32 %v307, 7
    %v309 = vsub.s32 0, %v308
    %v310 = vrot.slane %v305, %v309
    %v311 = vlaneseq
    %v312 = vshrl.u32 %v311, 7
    %v313 = vsub.s32 1, %v312
    %v314 = vrot.slane %v305, %v313
    %v317 = vmul.f32 %v310, %v286
    %v318 = vmul.f32 %v314, %v285
    %v319 = vadd.f32 %v302, %v317
    %v320 = vadd.f32 %v303, %v318
    %321 = vrot.lane.b32.xlu0 %v165, 48
    %v322 = vpop.permute.xlu0 %321
    %323 = vrot.lane.b32.xlu0 %v166, 48
    %v324 = vpop.permute.xlu0 %323
    %vm325 = vcmp.lt.s32.totalorder %v174, 48
    %v326 = vsel %vm325, %v322, %v324
    %v327 = vsel %vm325, %v324, %v322
    %328 = vrot.lane.b32.xlu0 %v185, 48
    %v329 = vpop.permute.xlu0 %328
    %330 = vrot.lane.b32.xlu0 %v186, 48
    %v331 = vpop.permute.xlu0 %330
    %v332 = vsel %vm325, %v329, %v331
    %v333 = vsel %vm325, %v331, %v329
    %s334 = scalar_lea.vmem %s1, 3
    %v335 = vld [vmem:[%s334] ss:$8 sm:$0x3]
    %v337 = vlaneseq
    %v338 = vshrl.u32 %v337, 7
    %v339 = vsub.s32 0, %v338
    %v340 = vrot.slane %v335, %v339
    %v341 = vlaneseq
    %v342 = vshrl.u32 %v341, 7
    %v343 = vsub.s32 1, %v342
    %v344 = vrot.slane %v335, %v343
    %v347 = vmul.f32 %v340, %v327
    %v348 = vmul.f32 %v344, %v326
    %v349 = vadd.f32 %v319, %v347
    %v350 = vadd.f32 %v320, %v348
    %s351 = scalar_lea.vmem %s2, 3
    %v352 = vld [vmem:[%s351] ss:$8 sm:$0x3]
    %v354 = vlaneseq
    %v355 = vshrl.u32 %v354, 7
    %v356 = vsub.s32 0, %v355
    %v357 = vrot.slane %v352, %v356
    %v358 = vlaneseq
    %v359 = vshrl.u32 %v358, 7
    %v360 = vsub.s32 1, %v359
    %v361 = vrot.slane %v352, %v360
    %v364 = vmul.f32 %v357, %v333
    %v365 = vmul.f32 %v361, %v332
    %v366 = vadd.f32 %v349, %v364
    %v367 = vadd.f32 %v350, %v365
    %368 = vrot.lane.b32.xlu0 %v165, 47
    %v369 = vpop.permute.xlu0 %368
    %370 = vrot.lane.b32.xlu0 %v166, 47
    %v371 = vpop.permute.xlu0 %370
    %vm372 = vcmp.lt.s32.totalorder %v174, 47
    %v373 = vsel %vm372, %v369, %v371
    %v374 = vsel %vm372, %v371, %v369
    %375 = vrot.lane.b32.xlu0 %v185, 47
    %v376 = vpop.permute.xlu0 %375
    %377 = vrot.lane.b32.xlu0 %v186, 47
    %v378 = vpop.permute.xlu0 %377
    %v379 = vsel %vm372, %v376, %v378
    %v380 = vsel %vm372, %v378, %v376
    %s381 = scalar_lea.vmem %s1, 4
    %v382 = vld [vmem:[%s381] ss:$8 sm:$0x3]
    %v384 = vlaneseq
    %v385 = vshrl.u32 %v384, 7
    %v386 = vsub.s32 0, %v385
    %v387 = vrot.slane %v382, %v386
    %v388 = vlaneseq
    %v389 = vshrl.u32 %v388, 7
    %v390 = vsub.s32 1, %v389
    %v391 = vrot.slane %v382, %v390
    %v394 = vmul.f32 %v387, %v374
    %v395 = vmul.f32 %v391, %v373
    %v396 = vadd.f32 %v366, %v394
    %v397 = vadd.f32 %v367, %v395
    %s398 = scalar_lea.vmem %s2, 4
    %v399 = vld [vmem:[%s398] ss:$8 sm:$0x3]
    %v401 = vlaneseq
    %v402 = vshrl.u32 %v401, 7
    %v403 = vsub.s32 0, %v402
    %v404 = vrot.slane %v399, %v403
    %v405 = vlaneseq
    %v406 = vshrl.u32 %v405, 7
    %v407 = vsub.s32 1, %v406
    %v408 = vrot.slane %v399, %v407
    %v411 = vmul.f32 %v404, %v380
    %v412 = vmul.f32 %v408, %v379
    %v413 = vadd.f32 %v396, %v411
    %v414 = vadd.f32 %v397, %v412
    %415 = vrot.lane.b32.xlu0 %v165, 46
    %v416 = vpop.permute.xlu0 %415
    %417 = vrot.lane.b32.xlu0 %v166, 46
    %v418 = vpop.permute.xlu0 %417
    %vm419 = vcmp.lt.s32.totalorder %v174, 46
    %v420 = vsel %vm419, %v416, %v418
    %v421 = vsel %vm419, %v418, %v416
    %422 = vrot.lane.b32.xlu0 %v185, 46
    %v423 = vpop.permute.xlu0 %422
    %424 = vrot.lane.b32.xlu0 %v186, 46
    %v425 = vpop.permute.xlu0 %424
    %v426 = vsel %vm419, %v423, %v425
    %v427 = vsel %vm419, %v425, %v423
    %s428 = scalar_lea.vmem %s1, 5
    %v429 = vld [vmem:[%s428] ss:$8 sm:$0x3]
    %v431 = vlaneseq
    %v432 = vshrl.u32 %v431, 7
    %v433 = vsub.s32 0, %v432
    %v434 = vrot.slane %v429, %v433
    %v435 = vlaneseq
    %v436 = vshrl.u32 %v435, 7
    %v437 = vsub.s32 1, %v436
    %v438 = vrot.slane %v429, %v437
    %v441 = vmul.f32 %v434, %v421
    %v442 = vmul.f32 %v438, %v420
    %v443 = vadd.f32 %v413, %v441
    %v444 = vadd.f32 %v414, %v442
    %s445 = scalar_lea.vmem %s2, 5
    %v446 = vld [vmem:[%s445] ss:$8 sm:$0x3]
    %v448 = vlaneseq
    %v449 = vshrl.u32 %v448, 7
    %v450 = vsub.s32 0, %v449
    %v451 = vrot.slane %v446, %v450
    %v452 = vlaneseq
    %v453 = vshrl.u32 %v452, 7
    %v454 = vsub.s32 1, %v453
    %v455 = vrot.slane %v446, %v454
    %v458 = vmul.f32 %v451, %v427
    %v459 = vmul.f32 %v455, %v426
    %v460 = vadd.f32 %v443, %v458
    %v461 = vadd.f32 %v444, %v459
    %462 = vrot.lane.b32.xlu0 %v165, 45
    %v463 = vpop.permute.xlu0 %462
    %464 = vrot.lane.b32.xlu0 %v166, 45
    %v465 = vpop.permute.xlu0 %464
    %vm466 = vcmp.lt.s32.totalorder %v174, 45
    %v467 = vsel %vm466, %v463, %v465
    %v468 = vsel %vm466, %v465, %v463
    %469 = vrot.lane.b32.xlu0 %v185, 45
    %v470 = vpop.permute.xlu0 %469
    %471 = vrot.lane.b32.xlu0 %v186, 45
    %v472 = vpop.permute.xlu0 %471
    %v473 = vsel %vm466, %v470, %v472
    %v474 = vsel %vm466, %v472, %v470
    %s475 = scalar_lea.vmem %s1, 6
    %v476 = vld [vmem:[%s475] ss:$8 sm:$0x3]
    %v478 = vlaneseq
    %v479 = vshrl.u32 %v478, 7
    %v480 = vsub.s32 0, %v479
    %v481 = vrot.slane %v476, %v480
    %v482 = vlaneseq
    %v483 = vshrl.u32 %v482, 7
    %v484 = vsub.s32 1, %v483
    %v485 = vrot.slane %v476, %v484
    %v488 = vmul.f32 %v481, %v468
    %v489 = vmul.f32 %v485, %v467
    %v490 = vadd.f32 %v460, %v488
    %v491 = vadd.f32 %v461, %v489
    %s492 = scalar_lea.vmem %s2, 6
    %v493 = vld [vmem:[%s492] ss:$8 sm:$0x3]
    %v495 = vlaneseq
    %v496 = vshrl.u32 %v495, 7
    %v497 = vsub.s32 0, %v496
    %v498 = vrot.slane %v493, %v497
    %v499 = vlaneseq
    %v500 = vshrl.u32 %v499, 7
    %v501 = vsub.s32 1, %v500
    %v502 = vrot.slane %v493, %v501
    %v505 = vmul.f32 %v498, %v474
    %v506 = vmul.f32 %v502, %v473
    %v507 = vadd.f32 %v490, %v505
    %v508 = vadd.f32 %v491, %v506
    %509 = vrot.lane.b32.xlu0 %v165, 35
    %v510 = vpop.permute.xlu0 %509
    %511 = vrot.lane.b32.xlu0 %v166, 35
    %v512 = vpop.permute.xlu0 %511
    %vm513 = vcmp.lt.s32.totalorder %v174, 35
    %v514 = vsel %vm513, %v510, %v512
    %v515 = vsel %vm513, %v512, %v510
    %516 = vrot.lane.b32.xlu0 %v185, 35
    %v517 = vpop.permute.xlu0 %516
    %518 = vrot.lane.b32.xlu0 %v186, 35
    %v519 = vpop.permute.xlu0 %518
    %v520 = vsel %vm513, %v517, %v519
    %v521 = vsel %vm513, %v519, %v517
    %s522 = scalar_lea.vmem %s1, 7
    %v523 = vld [vmem:[%s522] ss:$8 sm:$0x3]
    %v525 = vlaneseq
    %v526 = vshrl.u32 %v525, 7
    %v527 = vsub.s32 0, %v526
    %v528 = vrot.slane %v523, %v527
    %v529 = vlaneseq
    %v530 = vshrl.u32 %v529, 7
    %v531 = vsub.s32 1, %v530
    %v532 = vrot.slane %v523, %v531
    %v535 = vmul.f32 %v528, %v515
    %v536 = vmul.f32 %v532, %v514
    %v537 = vadd.f32 %v507, %v535
    %v538 = vadd.f32 %v508, %v536
    %s539 = scalar_lea.vmem %s2, 7
    %v540 = vld [vmem:[%s539] ss:$8 sm:$0x3]
    %v542 = vlaneseq
    %v543 = vshrl.u32 %v542, 7
    %v544 = vsub.s32 0, %v543
    %v545 = vrot.slane %v540, %v544
    %v546 = vlaneseq
    %v547 = vshrl.u32 %v546, 7
    %v548 = vsub.s32 1, %v547
    %v549 = vrot.slane %v540, %v548
    %v552 = vmul.f32 %v545, %v521
    %v553 = vmul.f32 %v549, %v520
    %v554 = vadd.f32 %v537, %v552
    %v555 = vadd.f32 %v538, %v553
    %556 = vrot.lane.b32.xlu0 %v165, 34
    %v557 = vpop.permute.xlu0 %556
    %558 = vrot.lane.b32.xlu0 %v166, 34
    %v559 = vpop.permute.xlu0 %558
    %vm560 = vcmp.lt.s32.totalorder %v174, 34
    %v561 = vsel %vm560, %v557, %v559
    %v562 = vsel %vm560, %v559, %v557
    %563 = vrot.lane.b32.xlu0 %v185, 34
    %v564 = vpop.permute.xlu0 %563
    %565 = vrot.lane.b32.xlu0 %v186, 34
    %v566 = vpop.permute.xlu0 %565
    %v567 = vsel %vm560, %v564, %v566
    %v568 = vsel %vm560, %v566, %v564
    %s569 = scalar_lea.vmem %s1, 16
    %v570 = vld [vmem:[%s569] ss:$8 sm:$0x3]
    %v572 = vlaneseq
    %v573 = vshrl.u32 %v572, 7
    %v574 = vsub.s32 0, %v573
    %v575 = vrot.slane %v570, %v574
    %v576 = vlaneseq
    %v577 = vshrl.u32 %v576, 7
    %v578 = vsub.s32 1, %v577
    %v579 = vrot.slane %v570, %v578
    %v582 = vmul.f32 %v575, %v562
    %v583 = vmul.f32 %v579, %v561
    %v584 = vadd.f32 %v554, %v582
    %v585 = vadd.f32 %v555, %v583
    %s586 = scalar_lea.vmem %s2, 16
    %v587 = vld [vmem:[%s586] ss:$8 sm:$0x3]
    %v589 = vlaneseq
    %v590 = vshrl.u32 %v589, 7
    %v591 = vsub.s32 0, %v590
    %v592 = vrot.slane %v587, %v591
    %v593 = vlaneseq
    %v594 = vshrl.u32 %v593, 7
    %v595 = vsub.s32 1, %v594
    %v596 = vrot.slane %v587, %v595
    %v599 = vmul.f32 %v592, %v568
    %v600 = vmul.f32 %v596, %v567
    %v601 = vadd.f32 %v584, %v599
    %v602 = vadd.f32 %v585, %v600
    %603 = vrot.lane.b32.xlu0 %v165, 33
    %v604 = vpop.permute.xlu0 %603
    %605 = vrot.lane.b32.xlu0 %v166, 33
    %v606 = vpop.permute.xlu0 %605
    %vm607 = vcmp.lt.s32.totalorder %v174, 33
    %v608 = vsel %vm607, %v604, %v606
    %v609 = vsel %vm607, %v606, %v604
    %610 = vrot.lane.b32.xlu0 %v185, 33
    %v611 = vpop.permute.xlu0 %610
    %612 = vrot.lane.b32.xlu0 %v186, 33
    %v613 = vpop.permute.xlu0 %612
    %v614 = vsel %vm607, %v611, %v613
    %v615 = vsel %vm607, %v613, %v611
    %s616 = scalar_lea.vmem %s1, 17
    %v617 = vld [vmem:[%s616] ss:$8 sm:$0x3]
    %v619 = vlaneseq
    %v620 = vshrl.u32 %v619, 7
    %v621 = vsub.s32 0, %v620
    %v622 = vrot.slane %v617, %v621
    %v623 = vlaneseq
    %v624 = vshrl.u32 %v623, 7
    %v625 = vsub.s32 1, %v624
    %v626 = vrot.slane %v617, %v625
    %v629 = vmul.f32 %v622, %v609
    %v630 = vmul.f32 %v626, %v608
    %v631 = vadd.f32 %v601, %v629
    %v632 = vadd.f32 %v602, %v630
    %s633 = scalar_lea.vmem %s2, 17
    %v634 = vld [vmem:[%s633] ss:$8 sm:$0x3]
    %v636 = vlaneseq
    %v637 = vshrl.u32 %v636, 7
    %v638 = vsub.s32 0, %v637
    %v639 = vrot.slane %v634, %v638
    %v640 = vlaneseq
    %v641 = vshrl.u32 %v640, 7
    %v642 = vsub.s32 1, %v641
    %v643 = vrot.slane %v634, %v642
    %v646 = vmul.f32 %v639, %v615
    %v647 = vmul.f32 %v643, %v614
    %v648 = vadd.f32 %v631, %v646
    %v649 = vadd.f32 %v632, %v647
    %650 = vrot.lane.b32.xlu0 %v165, 32
    %v651 = vpop.permute.xlu0 %650
    %652 = vrot.lane.b32.xlu0 %v166, 32
    %v653 = vpop.permute.xlu0 %652
    %vm654 = vcmp.lt.s32.totalorder %v174, 32
    %v655 = vsel %vm654, %v651, %v653
    %v656 = vsel %vm654, %v653, %v651
    %657 = vrot.lane.b32.xlu0 %v185, 32
    %v658 = vpop.permute.xlu0 %657
    %659 = vrot.lane.b32.xlu0 %v186, 32
    %v660 = vpop.permute.xlu0 %659
    %v661 = vsel %vm654, %v658, %v660
    %v662 = vsel %vm654, %v660, %v658
    %s663 = scalar_lea.vmem %s1, 18
    %v664 = vld [vmem:[%s663] ss:$8 sm:$0x3]
    %v666 = vlaneseq
    %v667 = vshrl.u32 %v666, 7
    %v668 = vsub.s32 0, %v667
    %v669 = vrot.slane %v664, %v668
    %v670 = vlaneseq
    %v671 = vshrl.u32 %v670, 7
    %v672 = vsub.s32 1, %v671
    %v673 = vrot.slane %v664, %v672
    %v676 = vmul.f32 %v669, %v656
    %v677 = vmul.f32 %v673, %v655
    %v678 = vadd.f32 %v648, %v676
    %v679 = vadd.f32 %v649, %v677
    %s680 = scalar_lea.vmem %s2, 18
    %v681 = vld [vmem:[%s680] ss:$8 sm:$0x3]
    %v683 = vlaneseq
    %v684 = vshrl.u32 %v683, 7
    %v685 = vsub.s32 0, %v684
    %v686 = vrot.slane %v681, %v685
    %v687 = vlaneseq
    %v688 = vshrl.u32 %v687, 7
    %v689 = vsub.s32 1, %v688
    %v690 = vrot.slane %v681, %v689
    %v693 = vmul.f32 %v686, %v662
    %v694 = vmul.f32 %v690, %v661
    %v695 = vadd.f32 %v678, %v693
    %v696 = vadd.f32 %v679, %v694
    %697 = vrot.lane.b32.xlu0 %v165, 31
    %v698 = vpop.permute.xlu0 %697
    %699 = vrot.lane.b32.xlu0 %v166, 31
    %v700 = vpop.permute.xlu0 %699
    %vm701 = vcmp.lt.s32.totalorder %v174, 31
    %v702 = vsel %vm701, %v698, %v700
    %v703 = vsel %vm701, %v700, %v698
    %704 = vrot.lane.b32.xlu0 %v185, 31
    %v705 = vpop.permute.xlu0 %704
    %706 = vrot.lane.b32.xlu0 %v186, 31
    %v707 = vpop.permute.xlu0 %706
    %v708 = vsel %vm701, %v705, %v707
    %v709 = vsel %vm701, %v707, %v705
    %s710 = scalar_lea.vmem %s1, 19
    %v711 = vld [vmem:[%s710] ss:$8 sm:$0x3]
    %v713 = vlaneseq
    %v714 = vshrl.u32 %v713, 7
    %v715 = vsub.s32 0, %v714
    %v716 = vrot.slane %v711, %v715
    %v717 = vlaneseq
    %v718 = vshrl.u32 %v717, 7
    %v719 = vsub.s32 1, %v718
    %v720 = vrot.slane %v711, %v719
    %v723 = vmul.f32 %v716, %v703
    %v724 = vmul.f32 %v720, %v702
    %v725 = vadd.f32 %v695, %v723
    %v726 = vadd.f32 %v696, %v724
    %s727 = scalar_lea.vmem %s2, 19
    %v728 = vld [vmem:[%s727] ss:$8 sm:$0x3]
    %v730 = vlaneseq
    %v731 = vshrl.u32 %v730, 7
    %v732 = vsub.s32 0, %v731
    %v733 = vrot.slane %v728, %v732
    %v734 = vlaneseq
    %v735 = vshrl.u32 %v734, 7
    %v736 = vsub.s32 1, %v735
    %v737 = vrot.slane %v728, %v736
    %v740 = vmul.f32 %v733, %v709
    %v741 = vmul.f32 %v737, %v708
    %v742 = vadd.f32 %v725, %v740
    %v743 = vadd.f32 %v726, %v741
    %744 = vrot.lane.b32.xlu0 %v165, 30
    %v745 = vpop.permute.xlu0 %744
    %746 = vrot.lane.b32.xlu0 %v166, 30
    %v747 = vpop.permute.xlu0 %746
    %vm748 = vcmp.lt.s32.totalorder %v174, 30
    %v749 = vsel %vm748, %v745, %v747
    %v750 = vsel %vm748, %v747, %v745
    %751 = vrot.lane.b32.xlu0 %v185, 30
    %v752 = vpop.permute.xlu0 %751
    %753 = vrot.lane.b32.xlu0 %v186, 30
    %v754 = vpop.permute.xlu0 %753
    %v755 = vsel %vm748, %v752, %v754
    %v756 = vsel %vm748, %v754, %v752
    %s757 = scalar_lea.vmem %s1, 20
    %v758 = vld [vmem:[%s757] ss:$8 sm:$0x3]
    %v760 = vlaneseq
    %v761 = vshrl.u32 %v760, 7
    %v762 = vsub.s32 0, %v761
    %v763 = vrot.slane %v758, %v762
    %v764 = vlaneseq
    %v765 = vshrl.u32 %v764, 7
    %v766 = vsub.s32 1, %v765
    %v767 = vrot.slane %v758, %v766
    %v770 = vmul.f32 %v763, %v750
    %v771 = vmul.f32 %v767, %v749
    %v772 = vadd.f32 %v742, %v770
    %v773 = vadd.f32 %v743, %v771
    %s774 = scalar_lea.vmem %s2, 20
    %v775 = vld [vmem:[%s774] ss:$8 sm:$0x3]
    %v777 = vlaneseq
    %v778 = vshrl.u32 %v777, 7
    %v779 = vsub.s32 0, %v778
    %v780 = vrot.slane %v775, %v779
    %v781 = vlaneseq
    %v782 = vshrl.u32 %v781, 7
    %v783 = vsub.s32 1, %v782
    %v784 = vrot.slane %v775, %v783
    %v787 = vmul.f32 %v780, %v756
    %v788 = vmul.f32 %v784, %v755
    %v789 = vadd.f32 %v772, %v787
    %v790 = vadd.f32 %v773, %v788
    %791 = vrot.lane.b32.xlu0 %v165, 29
    %v792 = vpop.permute.xlu0 %791
    %793 = vrot.lane.b32.xlu0 %v166, 29
    %v794 = vpop.permute.xlu0 %793
    %vm795 = vcmp.lt.s32.totalorder %v174, 29
    %v796 = vsel %vm795, %v792, %v794
    %v797 = vsel %vm795, %v794, %v792
    %798 = vrot.lane.b32.xlu0 %v185, 29
    %v799 = vpop.permute.xlu0 %798
    %800 = vrot.lane.b32.xlu0 %v186, 29
    %v801 = vpop.permute.xlu0 %800
    %v802 = vsel %vm795, %v799, %v801
    %v803 = vsel %vm795, %v801, %v799
    %s804 = scalar_lea.vmem %s1, 21
    %v805 = vld [vmem:[%s804] ss:$8 sm:$0x3]
    %v807 = vlaneseq
    %v808 = vshrl.u32 %v807, 7
    %v809 = vsub.s32 0, %v808
    %v810 = vrot.slane %v805, %v809
    %v811 = vlaneseq
    %v812 = vshrl.u32 %v811, 7
    %v813 = vsub.s32 1, %v812
    %v814 = vrot.slane %v805, %v813
    %v817 = vmul.f32 %v810, %v797
    %v818 = vmul.f32 %v814, %v796
    %v819 = vadd.f32 %v789, %v817
    %v820 = vadd.f32 %v790, %v818
    %s821 = scalar_lea.vmem %s2, 21
    %v822 = vld [vmem:[%s821] ss:$8 sm:$0x3]
    %v824 = vlaneseq
    %v825 = vshrl.u32 %v824, 7
    %v826 = vsub.s32 0, %v825
    %v827 = vrot.slane %v822, %v826
    %v828 = vlaneseq
    %v829 = vshrl.u32 %v828, 7
    %v830 = vsub.s32 1, %v829
    %v831 = vrot.slane %v822, %v830
    %v834 = vmul.f32 %v827, %v803
    %v835 = vmul.f32 %v831, %v802
    %v836 = vadd.f32 %v819, %v834
    %v837 = vadd.f32 %v820, %v835
    %838 = vrot.lane.b32.xlu0 %v165, 19
    %v839 = vpop.permute.xlu0 %838
    %840 = vrot.lane.b32.xlu0 %v166, 19
    %v841 = vpop.permute.xlu0 %840
    %vm842 = vcmp.lt.s32.totalorder %v174, 19
    %v843 = vsel %vm842, %v839, %v841
    %v844 = vsel %vm842, %v841, %v839
    %845 = vrot.lane.b32.xlu0 %v185, 19
    %v846 = vpop.permute.xlu0 %845
    %847 = vrot.lane.b32.xlu0 %v186, 19
    %v848 = vpop.permute.xlu0 %847
    %v849 = vsel %vm842, %v846, %v848
    %v850 = vsel %vm842, %v848, %v846
    %s851 = scalar_lea.vmem %s1, 22
    %v852 = vld [vmem:[%s851] ss:$8 sm:$0x3]
    %v854 = vlaneseq
    %v855 = vshrl.u32 %v854, 7
    %v856 = vsub.s32 0, %v855
    %v857 = vrot.slane %v852, %v856
    %v858 = vlaneseq
    %v859 = vshrl.u32 %v858, 7
    %v860 = vsub.s32 1, %v859
    %v861 = vrot.slane %v852, %v860
    %v864 = vmul.f32 %v857, %v844
    %v865 = vmul.f32 %v861, %v843
    %v866 = vadd.f32 %v836, %v864
    %v867 = vadd.f32 %v837, %v865
    %s868 = scalar_lea.vmem %s2, 22
    %v869 = vld [vmem:[%s868] ss:$8 sm:$0x3]
    %v871 = vlaneseq
    %v872 = vshrl.u32 %v871, 7
    %v873 = vsub.s32 0, %v872
    %v874 = vrot.slane %v869, %v873
    %v875 = vlaneseq
    %v876 = vshrl.u32 %v875, 7
    %v877 = vsub.s32 1, %v876
    %v878 = vrot.slane %v869, %v877
    %v881 = vmul.f32 %v874, %v850
    %v882 = vmul.f32 %v878, %v849
    %v883 = vadd.f32 %v866, %v881
    %v884 = vadd.f32 %v867, %v882
    %885 = vrot.lane.b32.xlu0 %v165, 18
    %v886 = vpop.permute.xlu0 %885
    %887 = vrot.lane.b32.xlu0 %v166, 18
    %v888 = vpop.permute.xlu0 %887
    %vm889 = vcmp.lt.s32.totalorder %v174, 18
    %v890 = vsel %vm889, %v886, %v888
    %v891 = vsel %vm889, %v888, %v886
    %892 = vrot.lane.b32.xlu0 %v185, 18
    %v893 = vpop.permute.xlu0 %892
    %894 = vrot.lane.b32.xlu0 %v186, 18
    %v895 = vpop.permute.xlu0 %894
    %v896 = vsel %vm889, %v893, %v895
    %v897 = vsel %vm889, %v895, %v893
    %s898 = scalar_lea.vmem %s1, 23
    %v899 = vld [vmem:[%s898] ss:$8 sm:$0x3]
    %v901 = vlaneseq
    %v902 = vshrl.u32 %v901, 7
    %v903 = vsub.s32 0, %v902
    %v904 = vrot.slane %v899, %v903
    %v905 = vlaneseq
    %v906 = vshrl.u32 %v905, 7
    %v907 = vsub.s32 1, %v906
    %v908 = vrot.slane %v899, %v907
    %v911 = vmul.f32 %v904, %v891
    %v912 = vmul.f32 %v908, %v890
    %v913 = vadd.f32 %v883, %v911
    %v914 = vadd.f32 %v884, %v912
    %s915 = scalar_lea.vmem %s2, 23
    %v916 = vld [vmem:[%s915] ss:$8 sm:$0x3]
    %v918 = vlaneseq
    %v919 = vshrl.u32 %v918, 7
    %v920 = vsub.s32 0, %v919
    %v921 = vrot.slane %v916, %v920
    %v922 = vlaneseq
    %v923 = vshrl.u32 %v922, 7
    %v924 = vsub.s32 1, %v923
    %v925 = vrot.slane %v916, %v924
    %v928 = vmul.f32 %v921, %v897
    %v929 = vmul.f32 %v925, %v896
    %v930 = vadd.f32 %v913, %v928
    %v931 = vadd.f32 %v914, %v929
    %932 = vrot.lane.b32.xlu0 %v165, 17
    %v933 = vpop.permute.xlu0 %932
    %934 = vrot.lane.b32.xlu0 %v166, 17
    %v935 = vpop.permute.xlu0 %934
    %vm936 = vcmp.lt.s32.totalorder %v174, 17
    %v937 = vsel %vm936, %v933, %v935
    %v938 = vsel %vm936, %v935, %v933
    %939 = vrot.lane.b32.xlu0 %v185, 17
    %v940 = vpop.permute.xlu0 %939
    %941 = vrot.lane.b32.xlu0 %v186, 17
    %v942 = vpop.permute.xlu0 %941
    %v943 = vsel %vm936, %v940, %v942
    %v944 = vsel %vm936, %v942, %v940
    %s945 = scalar_lea.vmem %s1, 32
    %v946 = vld [vmem:[%s945] ss:$8 sm:$0x3]
    %v948 = vlaneseq
    %v949 = vshrl.u32 %v948, 7
    %v950 = vsub.s32 0, %v949
    %v951 = vrot.slane %v946, %v950
    %v952 = vlaneseq
    %v953 = vshrl.u32 %v952, 7
    %v954 = vsub.s32 1, %v953
    %v955 = vrot.slane %v946, %v954
    %v958 = vmul.f32 %v951, %v938
    %v959 = vmul.f32 %v955, %v937
    %v960 = vadd.f32 %v930, %v958
    %v961 = vadd.f32 %v931, %v959
    %s962 = scalar_lea.vmem %s2, 32
    %v963 = vld [vmem:[%s962] ss:$8 sm:$0x3]
    %v965 = vlaneseq
    %v966 = vshrl.u32 %v965, 7
    %v967 = vsub.s32 0, %v966
    %v968 = vrot.slane %v963, %v967
    %v969 = vlaneseq
    %v970 = vshrl.u32 %v969, 7
    %v971 = vsub.s32 1, %v970
    %v972 = vrot.slane %v963, %v971
    %v975 = vmul.f32 %v968, %v944
    %v976 = vmul.f32 %v972, %v943
    %v977 = vadd.f32 %v960, %v975
    %v978 = vadd.f32 %v961, %v976
    %979 = vrot.lane.b32.xlu0 %v165, 16
    %v980 = vpop.permute.xlu0 %979
    %981 = vrot.lane.b32.xlu0 %v166, 16
    %v982 = vpop.permute.xlu0 %981
    %vm983 = vcmp.lt.s32.totalorder %v174, 16
    %v984 = vsel %vm983, %v980, %v982
    %v985 = vsel %vm983, %v982, %v980
    %986 = vrot.lane.b32.xlu0 %v185, 16
    %v987 = vpop.permute.xlu0 %986
    %988 = vrot.lane.b32.xlu0 %v186, 16
    %v989 = vpop.permute.xlu0 %988
    %v990 = vsel %vm983, %v987, %v989
    %v991 = vsel %vm983, %v989, %v987
    %s992 = scalar_lea.vmem %s1, 33
    %v993 = vld [vmem:[%s992] ss:$8 sm:$0x3]
    %v995 = vlaneseq
    %v996 = vshrl.u32 %v995, 7
    %v997 = vsub.s32 0, %v996
    %v998 = vrot.slane %v993, %v997
    %v999 = vlaneseq
    %v1000 = vshrl.u32 %v999, 7
    %v1001 = vsub.s32 1, %v1000
    %v1002 = vrot.slane %v993, %v1001
    %v1005 = vmul.f32 %v998, %v985
    %v1006 = vmul.f32 %v1002, %v984
    %v1007 = vadd.f32 %v977, %v1005
    %v1008 = vadd.f32 %v978, %v1006
    %s1009 = scalar_lea.vmem %s2, 33
    %v1010 = vld [vmem:[%s1009] ss:$8 sm:$0x3]
    %v1012 = vlaneseq
    %v1013 = vshrl.u32 %v1012, 7
    %v1014 = vsub.s32 0, %v1013
    %v1015 = vrot.slane %v1010, %v1014
    %v1016 = vlaneseq
    %v1017 = vshrl.u32 %v1016, 7
    %v1018 = vsub.s32 1, %v1017
    %v1019 = vrot.slane %v1010, %v1018
    %v1022 = vmul.f32 %v1015, %v991
    %v1023 = vmul.f32 %v1019, %v990
    %v1024 = vadd.f32 %v1007, %v1022
    %v1025 = vadd.f32 %v1008, %v1023
    %1026 = vrot.lane.b32.xlu0 %v165, 15
    %v1027 = vpop.permute.xlu0 %1026
    %1028 = vrot.lane.b32.xlu0 %v166, 15
    %v1029 = vpop.permute.xlu0 %1028
    %vm1030 = vcmp.lt.s32.totalorder %v174, 15
    %v1031 = vsel %vm1030, %v1027, %v1029
    %v1032 = vsel %vm1030, %v1029, %v1027
    %1033 = vrot.lane.b32.xlu0 %v185, 15
    %v1034 = vpop.permute.xlu0 %1033
    %1035 = vrot.lane.b32.xlu0 %v186, 15
    %v1036 = vpop.permute.xlu0 %1035
    %v1037 = vsel %vm1030, %v1034, %v1036
    %v1038 = vsel %vm1030, %v1036, %v1034
    %s1039 = scalar_lea.vmem %s1, 34
    %v1040 = vld [vmem:[%s1039] ss:$8 sm:$0x3]
    %v1042 = vlaneseq
    %v1043 = vshrl.u32 %v1042, 7
    %v1044 = vsub.s32 0, %v1043
    %v1045 = vrot.slane %v1040, %v1044
    %v1046 = vlaneseq
    %v1047 = vshrl.u32 %v1046, 7
    %v1048 = vsub.s32 1, %v1047
    %v1049 = vrot.slane %v1040, %v1048
    %v1052 = vmul.f32 %v1045, %v1032
    %v1053 = vmul.f32 %v1049, %v1031
    %v1054 = vadd.f32 %v1024, %v1052
    %v1055 = vadd.f32 %v1025, %v1053
    %s1056 = scalar_lea.vmem %s2, 34
    %v1057 = vld [vmem:[%s1056] ss:$8 sm:$0x3]
    %v1059 = vlaneseq
    %v1060 = vshrl.u32 %v1059, 7
    %v1061 = vsub.s32 0, %v1060
    %v1062 = vrot.slane %v1057, %v1061
    %v1063 = vlaneseq
    %v1064 = vshrl.u32 %v1063, 7
    %v1065 = vsub.s32 1, %v1064
    %v1066 = vrot.slane %v1057, %v1065
    %v1069 = vmul.f32 %v1062, %v1038
    %v1070 = vmul.f32 %v1066, %v1037
    %v1071 = vadd.f32 %v1054, %v1069
    %v1072 = vadd.f32 %v1055, %v1070
    %1073 = vrot.lane.b32.xlu0 %v165, 14
    %v1074 = vpop.permute.xlu0 %1073
    %1075 = vrot.lane.b32.xlu0 %v166, 14
    %v1076 = vpop.permute.xlu0 %1075
    %vm1077 = vcmp.lt.s32.totalorder %v174, 14
    %v1078 = vsel %vm1077, %v1074, %v1076
    %v1079 = vsel %vm1077, %v1076, %v1074
    %1080 = vrot.lane.b32.xlu0 %v185, 14
    %v1081 = vpop.permute.xlu0 %1080
    %1082 = vrot.lane.b32.xlu0 %v186, 14
    %v1083 = vpop.permute.xlu0 %1082
    %v1084 = vsel %vm1077, %v1081, %v1083
    %v1085 = vsel %vm1077, %v1083, %v1081
    %s1086 = scalar_lea.vmem %s1, 35
    %v1087 = vld [vmem:[%s1086] ss:$8 sm:$0x3]
    %v1089 = vlaneseq
    %v1090 = vshrl.u32 %v1089, 7
    %v1091 = vsub.s32 0, %v1090
    %v1092 = vrot.slane %v1087, %v1091
    %v1093 = vlaneseq
    %v1094 = vshrl.u32 %v1093, 7
    %v1095 = vsub.s32 1, %v1094
    %v1096 = vrot.slane %v1087, %v1095
    %v1099 = vmul.f32 %v1092, %v1079
    %v1100 = vmul.f32 %v1096, %v1078
    %v1101 = vadd.f32 %v1071, %v1099
    %v1102 = vadd.f32 %v1072, %v1100
    %s1103 = scalar_lea.vmem %s2, 35
    %v1104 = vld [vmem:[%s1103] ss:$8 sm:$0x3]
    %v1106 = vlaneseq
    %v1107 = vshrl.u32 %v1106, 7
    %v1108 = vsub.s32 0, %v1107
    %v1109 = vrot.slane %v1104, %v1108
    %v1110 = vlaneseq
    %v1111 = vshrl.u32 %v1110, 7
    %v1112 = vsub.s32 1, %v1111
    %v1113 = vrot.slane %v1104, %v1112
    %v1116 = vmul.f32 %v1109, %v1085
    %v1117 = vmul.f32 %v1113, %v1084
    %v1118 = vadd.f32 %v1101, %v1116
    %v1119 = vadd.f32 %v1102, %v1117
    %1120 = vrot.lane.b32.xlu0 %v165, 13
    %v1121 = vpop.permute.xlu0 %1120
    %1122 = vrot.lane.b32.xlu0 %v166, 13
    %v1123 = vpop.permute.xlu0 %1122
    %vm1124 = vcmp.lt.s32.totalorder %v174, 13
    %v1125 = vsel %vm1124, %v1121, %v1123
    %v1126 = vsel %vm1124, %v1123, %v1121
    %1127 = vrot.lane.b32.xlu0 %v185, 13
    %v1128 = vpop.permute.xlu0 %1127
    %1129 = vrot.lane.b32.xlu0 %v186, 13
    %v1130 = vpop.permute.xlu0 %1129
    %v1131 = vsel %vm1124, %v1128, %v1130
    %v1132 = vsel %vm1124, %v1130, %v1128
    %s1133 = scalar_lea.vmem %s1, 36
    %v1134 = vld [vmem:[%s1133] ss:$8 sm:$0x3]
    %v1136 = vlaneseq
    %v1137 = vshrl.u32 %v1136, 7
    %v1138 = vsub.s32 0, %v1137
    %v1139 = vrot.slane %v1134, %v1138
    %v1140 = vlaneseq
    %v1141 = vshrl.u32 %v1140, 7
    %v1142 = vsub.s32 1, %v1141
    %v1143 = vrot.slane %v1134, %v1142
    %v1146 = vmul.f32 %v1139, %v1126
    %v1147 = vmul.f32 %v1143, %v1125
    %v1148 = vadd.f32 %v1118, %v1146
    %v1149 = vadd.f32 %v1119, %v1147
    %s1150 = scalar_lea.vmem %s2, 36
    %v1151 = vld [vmem:[%s1150] ss:$8 sm:$0x3]
    %v1153 = vlaneseq
    %v1154 = vshrl.u32 %v1153, 7
    %v1155 = vsub.s32 0, %v1154
    %v1156 = vrot.slane %v1151, %v1155
    %v1157 = vlaneseq
    %v1158 = vshrl.u32 %v1157, 7
    %v1159 = vsub.s32 1, %v1158
    %v1160 = vrot.slane %v1151, %v1159
    %v1163 = vmul.f32 %v1156, %v1132
    %v1164 = vmul.f32 %v1160, %v1131
    %v1165 = vadd.f32 %v1148, %v1163
    %v1166 = vadd.f32 %v1149, %v1164
    %1167 = vrot.lane.b32.xlu0 %v165, 3
    %v1168 = vpop.permute.xlu0 %1167
    %1169 = vrot.lane.b32.xlu0 %v166, 3
    %v1170 = vpop.permute.xlu0 %1169
    %vm1171 = vcmp.lt.s32.totalorder %v174, 3
    %v1172 = vsel %vm1171, %v1168, %v1170
    %v1173 = vsel %vm1171, %v1170, %v1168
    %1174 = vrot.lane.b32.xlu0 %v185, 3
    %v1175 = vpop.permute.xlu0 %1174
    %1176 = vrot.lane.b32.xlu0 %v186, 3
    %v1177 = vpop.permute.xlu0 %1176
    %v1178 = vsel %vm1171, %v1175, %v1177
    %v1179 = vsel %vm1171, %v1177, %v1175
    %s1180 = scalar_lea.vmem %s1, 37
    %v1181 = vld [vmem:[%s1180] ss:$8 sm:$0x3]
    %v1183 = vlaneseq
    %v1184 = vshrl.u32 %v1183, 7
    %v1185 = vsub.s32 0, %v1184
    %v1186 = vrot.slane %v1181, %v1185
    %v1187 = vlaneseq
    %v1188 = vshrl.u32 %v1187, 7
    %v1189 = vsub.s32 1, %v1188
    %v1190 = vrot.slane %v1181, %v1189
    %v1193 = vmul.f32 %v1186, %v1173
    %v1194 = vmul.f32 %v1190, %v1172
    %v1195 = vadd.f32 %v1165, %v1193
    %v1196 = vadd.f32 %v1166, %v1194
    %s1197 = scalar_lea.vmem %s2, 37
    %v1198 = vld [vmem:[%s1197] ss:$8 sm:$0x3]
    %v1200 = vlaneseq
    %v1201 = vshrl.u32 %v1200, 7
    %v1202 = vsub.s32 0, %v1201
    %v1203 = vrot.slane %v1198, %v1202
    %v1204 = vlaneseq
    %v1205 = vshrl.u32 %v1204, 7
    %v1206 = vsub.s32 1, %v1205
    %v1207 = vrot.slane %v1198, %v1206
    %v1210 = vmul.f32 %v1203, %v1179
    %v1211 = vmul.f32 %v1207, %v1178
    %v1212 = vadd.f32 %v1195, %v1210
    %v1213 = vadd.f32 %v1196, %v1211
    %1214 = vrot.lane.b32.xlu0 %v165, 2
    %v1215 = vpop.permute.xlu0 %1214
    %1216 = vrot.lane.b32.xlu0 %v166, 2
    %v1217 = vpop.permute.xlu0 %1216
    %vm1218 = vcmp.lt.s32.totalorder %v174, 2
    %v1219 = vsel %vm1218, %v1215, %v1217
    %v1220 = vsel %vm1218, %v1217, %v1215
    %1221 = vrot.lane.b32.xlu0 %v185, 2
    %v1222 = vpop.permute.xlu0 %1221
    %1223 = vrot.lane.b32.xlu0 %v186, 2
    %v1224 = vpop.permute.xlu0 %1223
    %v1225 = vsel %vm1218, %v1222, %v1224
    %v1226 = vsel %vm1218, %v1224, %v1222
    %s1227 = scalar_lea.vmem %s1, 38
    %v1228 = vld [vmem:[%s1227] ss:$8 sm:$0x3]
    %v1230 = vlaneseq
    %v1231 = vshrl.u32 %v1230, 7
    %v1232 = vsub.s32 0, %v1231
    %v1233 = vrot.slane %v1228, %v1232
    %v1234 = vlaneseq
    %v1235 = vshrl.u32 %v1234, 7
    %v1236 = vsub.s32 1, %v1235
    %v1237 = vrot.slane %v1228, %v1236
    %v1240 = vmul.f32 %v1233, %v1220
    %v1241 = vmul.f32 %v1237, %v1219
    %v1242 = vadd.f32 %v1212, %v1240
    %v1243 = vadd.f32 %v1213, %v1241
    %s1244 = scalar_lea.vmem %s2, 38
    %v1245 = vld [vmem:[%s1244] ss:$8 sm:$0x3]
    %v1247 = vlaneseq
    %v1248 = vshrl.u32 %v1247, 7
    %v1249 = vsub.s32 0, %v1248
    %v1250 = vrot.slane %v1245, %v1249
    %v1251 = vlaneseq
    %v1252 = vshrl.u32 %v1251, 7
    %v1253 = vsub.s32 1, %v1252
    %v1254 = vrot.slane %v1245, %v1253
    %v1257 = vmul.f32 %v1250, %v1226
    %v1258 = vmul.f32 %v1254, %v1225
    %v1259 = vadd.f32 %v1242, %v1257
    %v1260 = vadd.f32 %v1243, %v1258
    %1261 = vrot.lane.b32.xlu0 %v165, 1
    %v1262 = vpop.permute.xlu0 %1261
    %1263 = vrot.lane.b32.xlu0 %v166, 1
    %v1264 = vpop.permute.xlu0 %1263
    %vm1265 = vcmp.lt.s32.totalorder %v174, 1
    %v1266 = vsel %vm1265, %v1262, %v1264
    %v1267 = vsel %vm1265, %v1264, %v1262
    %1268 = vrot.lane.b32.xlu0 %v185, 1
    %v1269 = vpop.permute.xlu0 %1268
    %1270 = vrot.lane.b32.xlu0 %v186, 1
    %v1271 = vpop.permute.xlu0 %1270
    %v1272 = vsel %vm1265, %v1269, %v1271
    %v1273 = vsel %vm1265, %v1271, %v1269
    %s1274 = scalar_lea.vmem %s1, 39
    %v1275 = vld [vmem:[%s1274] ss:$8 sm:$0x3]
    %v1277 = vlaneseq
    %v1278 = vshrl.u32 %v1277, 7
    %v1279 = vsub.s32 0, %v1278
    %v1280 = vrot.slane %v1275, %v1279
    %v1281 = vlaneseq
    %v1282 = vshrl.u32 %v1281, 7
    %v1283 = vsub.s32 1, %v1282
    %v1284 = vrot.slane %v1275, %v1283
    %v1287 = vmul.f32 %v1280, %v1267
    %v1288 = vmul.f32 %v1284, %v1266
    %v1289 = vadd.f32 %v1259, %v1287
    %v1290 = vadd.f32 %v1260, %v1288
    %s1291 = scalar_lea.vmem %s2, 39
    %v1292 = vld [vmem:[%s1291] ss:$8 sm:$0x3]
    %v1294 = vlaneseq
    %v1295 = vshrl.u32 %v1294, 7
    %v1296 = vsub.s32 0, %v1295
    %v1297 = vrot.slane %v1292, %v1296
    %v1298 = vlaneseq
    %v1299 = vshrl.u32 %v1298, 7
    %v1300 = vsub.s32 1, %v1299
    %v1301 = vrot.slane %v1292, %v1300
    %v1304 = vmul.f32 %v1297, %v1273
    %v1305 = vmul.f32 %v1301, %v1272
    %v1306 = vadd.f32 %v1289, %v1304
    %v1307 = vadd.f32 %v1290, %v1305
    %s1308 = scalar_lea.vmem %s1, 48
    %v1309 = vld [vmem:[%s1308] ss:$8 sm:$0x3]
    %v1311 = vlaneseq
    %v1312 = vshrl.u32 %v1311, 7
    %v1313 = vsub.s32 0, %v1312
    %v1314 = vrot.slane %v1309, %v1313
    %v1315 = vlaneseq
    %v1316 = vshrl.u32 %v1315, 7
    %v1317 = vsub.s32 1, %v1316
    %v1318 = vrot.slane %v1309, %v1317
    %v1321 = vmul.f32 %v1314, %v165
    %v1322 = vmul.f32 %v1318, %v166
    %v1323 = vadd.f32 %v1306, %v1321
    %v1324 = vadd.f32 %v1307, %v1322
    %s1325 = scalar_lea.vmem %s2, 48
    %v1326 = vld [vmem:[%s1325] ss:$8 sm:$0x3]
    %v1328 = vlaneseq
    %v1329 = vshrl.u32 %v1328, 7
    %v1330 = vsub.s32 0, %v1329
    %v1331 = vrot.slane %v1326, %v1330
    %v1332 = vlaneseq
    %v1333 = vshrl.u32 %v1332, 7
    %v1334 = vsub.s32 1, %v1333
    %v1335 = vrot.slane %v1326, %v1334
    %v1338 = vmul.f32 %v1331, %v185
    %v1339 = vmul.f32 %v1335, %v186
    %v1340 = vadd.f32 %v1323, %v1338
    %v1341 = vadd.f32 %v1324, %v1339
    %1342 = vrot.lane.b32.xlu0 %v165, 127
    %v1343 = vpop.permute.xlu0 %1342
    %1344 = vrot.lane.b32.xlu0 %v166, 127
    %v1345 = vpop.permute.xlu0 %1344
    %vm1346 = vcmp.lt.s32.totalorder %v174, 127
    %v1347 = vsel %vm1346, %v1343, %v1345
    %v1348 = vsel %vm1346, %v1345, %v1343
    %1349 = vrot.lane.b32.xlu0 %v185, 127
    %v1350 = vpop.permute.xlu0 %1349
    %1351 = vrot.lane.b32.xlu0 %v186, 127
    %v1352 = vpop.permute.xlu0 %1351
    %v1353 = vsel %vm1346, %v1350, %v1352
    %v1354 = vsel %vm1346, %v1352, %v1350
    %s1355 = scalar_lea.vmem %s1, 49
    %v1356 = vld [vmem:[%s1355] ss:$8 sm:$0x3]
    %v1358 = vlaneseq
    %v1359 = vshrl.u32 %v1358, 7
    %v1360 = vsub.s32 0, %v1359
    %v1361 = vrot.slane %v1356, %v1360
    %v1362 = vlaneseq
    %v1363 = vshrl.u32 %v1362, 7
    %v1364 = vsub.s32 1, %v1363
    %v1365 = vrot.slane %v1356, %v1364
    %v1368 = vmul.f32 %v1361, %v1347
    %v1369 = vmul.f32 %v1365, %v1348
    %v1370 = vadd.f32 %v1340, %v1368
    %v1371 = vadd.f32 %v1341, %v1369
    %s1372 = scalar_lea.vmem %s2, 49
    %v1373 = vld [vmem:[%s1372] ss:$8 sm:$0x3]
    %v1375 = vlaneseq
    %v1376 = vshrl.u32 %v1375, 7
    %v1377 = vsub.s32 0, %v1376
    %v1378 = vrot.slane %v1373, %v1377
    %v1379 = vlaneseq
    %v1380 = vshrl.u32 %v1379, 7
    %v1381 = vsub.s32 1, %v1380
    %v1382 = vrot.slane %v1373, %v1381
    %v1385 = vmul.f32 %v1378, %v1353
    %v1386 = vmul.f32 %v1382, %v1354
    %v1387 = vadd.f32 %v1370, %v1385
    %v1388 = vadd.f32 %v1371, %v1386
    %1389 = vrot.lane.b32.xlu0 %v165, 126
    %v1390 = vpop.permute.xlu0 %1389
    %1391 = vrot.lane.b32.xlu0 %v166, 126
    %v1392 = vpop.permute.xlu0 %1391
    %vm1393 = vcmp.lt.s32.totalorder %v174, 126
    %v1394 = vsel %vm1393, %v1390, %v1392
    %v1395 = vsel %vm1393, %v1392, %v1390
    %1396 = vrot.lane.b32.xlu0 %v185, 126
    %v1397 = vpop.permute.xlu0 %1396
    %1398 = vrot.lane.b32.xlu0 %v186, 126
    %v1399 = vpop.permute.xlu0 %1398
    %v1400 = vsel %vm1393, %v1397, %v1399
    %v1401 = vsel %vm1393, %v1399, %v1397
    %s1402 = scalar_lea.vmem %s1, 50
    %v1403 = vld [vmem:[%s1402] ss:$8 sm:$0x3]
    %v1405 = vlaneseq
    %v1406 = vshrl.u32 %v1405, 7
    %v1407 = vsub.s32 0, %v1406
    %v1408 = vrot.slane %v1403, %v1407
    %v1409 = vlaneseq
    %v1410 = vshrl.u32 %v1409, 7
    %v1411 = vsub.s32 1, %v1410
    %v1412 = vrot.slane %v1403, %v1411
    %v1415 = vmul.f32 %v1408, %v1394
    %v1416 = vmul.f32 %v1412, %v1395
    %v1417 = vadd.f32 %v1387, %v1415
    %v1418 = vadd.f32 %v1388, %v1416
    %s1419 = scalar_lea.vmem %s2, 50
    %v1420 = vld [vmem:[%s1419] ss:$8 sm:$0x3]
    %v1422 = vlaneseq
    %v1423 = vshrl.u32 %v1422, 7
    %v1424 = vsub.s32 0, %v1423
    %v1425 = vrot.slane %v1420, %v1424
    %v1426 = vlaneseq
    %v1427 = vshrl.u32 %v1426, 7
    %v1428 = vsub.s32 1, %v1427
    %v1429 = vrot.slane %v1420, %v1428
    %v1432 = vmul.f32 %v1425, %v1400
    %v1433 = vmul.f32 %v1429, %v1401
    %v1434 = vadd.f32 %v1417, %v1432
    %v1435 = vadd.f32 %v1418, %v1433
    %1436 = vrot.lane.b32.xlu0 %v165, 125
    %v1437 = vpop.permute.xlu0 %1436
    %1438 = vrot.lane.b32.xlu0 %v166, 125
    %v1439 = vpop.permute.xlu0 %1438
    %vm1440 = vcmp.lt.s32.totalorder %v174, 125
    %v1441 = vsel %vm1440, %v1437, %v1439
    %v1442 = vsel %vm1440, %v1439, %v1437
    %1443 = vrot.lane.b32.xlu0 %v185, 125
    %v1444 = vpop.permute.xlu0 %1443
    %1445 = vrot.lane.b32.xlu0 %v186, 125
    %v1446 = vpop.permute.xlu0 %1445
    %v1447 = vsel %vm1440, %v1444, %v1446
    %v1448 = vsel %vm1440, %v1446, %v1444
    %s1449 = scalar_lea.vmem %s1, 51
    %v1450 = vld [vmem:[%s1449] ss:$8 sm:$0x3]
    %v1452 = vlaneseq
    %v1453 = vshrl.u32 %v1452, 7
    %v1454 = vsub.s32 0, %v1453
    %v1455 = vrot.slane %v1450, %v1454
    %v1456 = vlaneseq
    %v1457 = vshrl.u32 %v1456, 7
    %v1458 = vsub.s32 1, %v1457
    %v1459 = vrot.slane %v1450, %v1458
    %v1462 = vmul.f32 %v1455, %v1441
    %v1463 = vmul.f32 %v1459, %v1442
    %v1464 = vadd.f32 %v1434, %v1462
    %v1465 = vadd.f32 %v1435, %v1463
    %s1466 = scalar_lea.vmem %s2, 51
    %v1467 = vld [vmem:[%s1466] ss:$8 sm:$0x3]
    %v1469 = vlaneseq
    %v1470 = vshrl.u32 %v1469, 7
    %v1471 = vsub.s32 0, %v1470
    %v1472 = vrot.slane %v1467, %v1471
    %v1473 = vlaneseq
    %v1474 = vshrl.u32 %v1473, 7
    %v1475 = vsub.s32 1, %v1474
    %v1476 = vrot.slane %v1467, %v1475
    %v1479 = vmul.f32 %v1472, %v1447
    %v1480 = vmul.f32 %v1476, %v1448
    %v1481 = vadd.f32 %v1464, %v1479
    %v1482 = vadd.f32 %v1465, %v1480
    %1483 = vrot.lane.b32.xlu0 %v165, 115
    %v1484 = vpop.permute.xlu0 %1483
    %1485 = vrot.lane.b32.xlu0 %v166, 115
    %v1486 = vpop.permute.xlu0 %1485
    %vm1487 = vcmp.lt.s32.totalorder %v174, 115
    %v1488 = vsel %vm1487, %v1484, %v1486
    %v1489 = vsel %vm1487, %v1486, %v1484
    %1490 = vrot.lane.b32.xlu0 %v185, 115
    %v1491 = vpop.permute.xlu0 %1490
    %1492 = vrot.lane.b32.xlu0 %v186, 115
    %v1493 = vpop.permute.xlu0 %1492
    %v1494 = vsel %vm1487, %v1491, %v1493
    %v1495 = vsel %vm1487, %v1493, %v1491
    %s1496 = scalar_lea.vmem %s1, 52
    %v1497 = vld [vmem:[%s1496] ss:$8 sm:$0x3]
    %v1499 = vlaneseq
    %v1500 = vshrl.u32 %v1499, 7
    %v1501 = vsub.s32 0, %v1500
    %v1502 = vrot.slane %v1497, %v1501
    %v1503 = vlaneseq
    %v1504 = vshrl.u32 %v1503, 7
    %v1505 = vsub.s32 1, %v1504
    %v1506 = vrot.slane %v1497, %v1505
    %v1509 = vmul.f32 %v1502, %v1488
    %v1510 = vmul.f32 %v1506, %v1489
    %v1511 = vadd.f32 %v1481, %v1509
    %v1512 = vadd.f32 %v1482, %v1510
    %s1513 = scalar_lea.vmem %s2, 52
    %v1514 = vld [vmem:[%s1513] ss:$8 sm:$0x3]
    %v1516 = vlaneseq
    %v1517 = vshrl.u32 %v1516, 7
    %v1518 = vsub.s32 0, %v1517
    %v1519 = vrot.slane %v1514, %v1518
    %v1520 = vlaneseq
    %v1521 = vshrl.u32 %v1520, 7
    %v1522 = vsub.s32 1, %v1521
    %v1523 = vrot.slane %v1514, %v1522
    %v1526 = vmul.f32 %v1519, %v1494
    %v1527 = vmul.f32 %v1523, %v1495
    %v1528 = vadd.f32 %v1511, %v1526
    %v1529 = vadd.f32 %v1512, %v1527
    %1530 = vrot.lane.b32.xlu0 %v165, 114
    %v1531 = vpop.permute.xlu0 %1530
    %1532 = vrot.lane.b32.xlu0 %v166, 114
    %v1533 = vpop.permute.xlu0 %1532
    %vm1534 = vcmp.lt.s32.totalorder %v174, 114
    %v1535 = vsel %vm1534, %v1531, %v1533
    %v1536 = vsel %vm1534, %v1533, %v1531
    %1537 = vrot.lane.b32.xlu0 %v185, 114
    %v1538 = vpop.permute.xlu0 %1537
    %1539 = vrot.lane.b32.xlu0 %v186, 114
    %v1540 = vpop.permute.xlu0 %1539
    %v1541 = vsel %vm1534, %v1538, %v1540
    %v1542 = vsel %vm1534, %v1540, %v1538
    %s1543 = scalar_lea.vmem %s1, 53
    %v1544 = vld [vmem:[%s1543] ss:$8 sm:$0x3]
    %v1546 = vlaneseq
    %v1547 = vshrl.u32 %v1546, 7
    %v1548 = vsub.s32 0, %v1547
    %v1549 = vrot.slane %v1544, %v1548
    %v1550 = vlaneseq
    %v1551 = vshrl.u32 %v1550, 7
    %v1552 = vsub.s32 1, %v1551
    %v1553 = vrot.slane %v1544, %v1552
    %v1556 = vmul.f32 %v1549, %v1535
    %v1557 = vmul.f32 %v1553, %v1536
    %v1558 = vadd.f32 %v1528, %v1556
    %v1559 = vadd.f32 %v1529, %v1557
    %s1560 = scalar_lea.vmem %s2, 53
    %v1561 = vld [vmem:[%s1560] ss:$8 sm:$0x3]
    %v1563 = vlaneseq
    %v1564 = vshrl.u32 %v1563, 7
    %v1565 = vsub.s32 0, %v1564
    %v1566 = vrot.slane %v1561, %v1565
    %v1567 = vlaneseq
    %v1568 = vshrl.u32 %v1567, 7
    %v1569 = vsub.s32 1, %v1568
    %v1570 = vrot.slane %v1561, %v1569
    %v1573 = vmul.f32 %v1566, %v1541
    %v1574 = vmul.f32 %v1570, %v1542
    %v1575 = vadd.f32 %v1558, %v1573
    %v1576 = vadd.f32 %v1559, %v1574
    %1577 = vrot.lane.b32.xlu0 %v165, 113
    %v1578 = vpop.permute.xlu0 %1577
    %1579 = vrot.lane.b32.xlu0 %v166, 113
    %v1580 = vpop.permute.xlu0 %1579
    %vm1581 = vcmp.lt.s32.totalorder %v174, 113
    %v1582 = vsel %vm1581, %v1578, %v1580
    %v1583 = vsel %vm1581, %v1580, %v1578
    %1584 = vrot.lane.b32.xlu0 %v185, 113
    %v1585 = vpop.permute.xlu0 %1584
    %1586 = vrot.lane.b32.xlu0 %v186, 113
    %v1587 = vpop.permute.xlu0 %1586
    %v1588 = vsel %vm1581, %v1585, %v1587
    %v1589 = vsel %vm1581, %v1587, %v1585
    %s1590 = scalar_lea.vmem %s1, 54
    %v1591 = vld [vmem:[%s1590] ss:$8 sm:$0x3]
    %v1593 = vlaneseq
    %v1594 = vshrl.u32 %v1593, 7
    %v1595 = vsub.s32 0, %v1594
    %v1596 = vrot.slane %v1591, %v1595
    %v1597 = vlaneseq
    %v1598 = vshrl.u32 %v1597, 7
    %v1599 = vsub.s32 1, %v1598
    %v1600 = vrot.slane %v1591, %v1599
    %v1603 = vmul.f32 %v1596, %v1582
    %v1604 = vmul.f32 %v1600, %v1583
    %v1605 = vadd.f32 %v1575, %v1603
    %v1606 = vadd.f32 %v1576, %v1604
    %s1607 = scalar_lea.vmem %s2, 54
    %v1608 = vld [vmem:[%s1607] ss:$8 sm:$0x3]
    %v1610 = vlaneseq
    %v1611 = vshrl.u32 %v1610, 7
    %v1612 = vsub.s32 0, %v1611
    %v1613 = vrot.slane %v1608, %v1612
    %v1614 = vlaneseq
    %v1615 = vshrl.u32 %v1614, 7
    %v1616 = vsub.s32 1, %v1615
    %v1617 = vrot.slane %v1608, %v1616
    %v1620 = vmul.f32 %v1613, %v1588
    %v1621 = vmul.f32 %v1617, %v1589
    %v1622 = vadd.f32 %v1605, %v1620
    %v1623 = vadd.f32 %v1606, %v1621
    %1624 = vrot.lane.b32.xlu0 %v165, 112
    %v1625 = vpop.permute.xlu0 %1624
    %1626 = vrot.lane.b32.xlu0 %v166, 112
    %v1627 = vpop.permute.xlu0 %1626
    %vm1628 = vcmp.lt.s32.totalorder %v174, 112
    %v1629 = vsel %vm1628, %v1625, %v1627
    %v1630 = vsel %vm1628, %v1627, %v1625
    %1631 = vrot.lane.b32.xlu0 %v185, 112
    %v1632 = vpop.permute.xlu0 %1631
    %1633 = vrot.lane.b32.xlu0 %v186, 112
    %v1634 = vpop.permute.xlu0 %1633
    %v1635 = vsel %vm1628, %v1632, %v1634
    %v1636 = vsel %vm1628, %v1634, %v1632
    %s1637 = scalar_lea.vmem %s1, 55
    %v1638 = vld [vmem:[%s1637] ss:$8 sm:$0x3]
    %v1640 = vlaneseq
    %v1641 = vshrl.u32 %v1640, 7
    %v1642 = vsub.s32 0, %v1641
    %v1643 = vrot.slane %v1638, %v1642
    %v1644 = vlaneseq
    %v1645 = vshrl.u32 %v1644, 7
    %v1646 = vsub.s32 1, %v1645
    %v1647 = vrot.slane %v1638, %v1646
    %v1650 = vmul.f32 %v1643, %v1629
    %v1651 = vmul.f32 %v1647, %v1630
    %v1652 = vadd.f32 %v1622, %v1650
    %v1653 = vadd.f32 %v1623, %v1651
    %s1654 = scalar_lea.vmem %s2, 55
    %v1655 = vld [vmem:[%s1654] ss:$8 sm:$0x3]
    %v1657 = vlaneseq
    %v1658 = vshrl.u32 %v1657, 7
    %v1659 = vsub.s32 0, %v1658
    %v1660 = vrot.slane %v1655, %v1659
    %v1661 = vlaneseq
    %v1662 = vshrl.u32 %v1661, 7
    %v1663 = vsub.s32 1, %v1662
    %v1664 = vrot.slane %v1655, %v1663
    %v1667 = vmul.f32 %v1660, %v1635
    %v1668 = vmul.f32 %v1664, %v1636
    %v1669 = vadd.f32 %v1652, %v1667
    %v1670 = vadd.f32 %v1653, %v1668
    %1671 = vrot.lane.b32.xlu0 %v165, 111
    %v1672 = vpop.permute.xlu0 %1671
    %1673 = vrot.lane.b32.xlu0 %v166, 111
    %v1674 = vpop.permute.xlu0 %1673
    %vm1675 = vcmp.lt.s32.totalorder %v174, 111
    %v1676 = vsel %vm1675, %v1672, %v1674
    %v1677 = vsel %vm1675, %v1674, %v1672
    %1678 = vrot.lane.b32.xlu0 %v185, 111
    %v1679 = vpop.permute.xlu0 %1678
    %1680 = vrot.lane.b32.xlu0 %v186, 111
    %v1681 = vpop.permute.xlu0 %1680
    %v1682 = vsel %vm1675, %v1679, %v1681
    %v1683 = vsel %vm1675, %v1681, %v1679
    %s1684 = scalar_lea.vmem %s1, 64
    %v1685 = vld [vmem:[%s1684] ss:$8 sm:$0x3]
    %v1687 = vlaneseq
    %v1688 = vshrl.u32 %v1687, 7
    %v1689 = vsub.s32 0, %v1688
    %v1690 = vrot.slane %v1685, %v1689
    %v1691 = vlaneseq
    %v1692 = vshrl.u32 %v1691, 7
    %v1693 = vsub.s32 1, %v1692
    %v1694 = vrot.slane %v1685, %v1693
    %v1697 = vmul.f32 %v1690, %v1676
    %v1698 = vmul.f32 %v1694, %v1677
    %v1699 = vadd.f32 %v1669, %v1697
    %v1700 = vadd.f32 %v1670, %v1698
    %s1701 = scalar_lea.vmem %s2, 64
    %v1702 = vld [vmem:[%s1701] ss:$8 sm:$0x3]
    %v1704 = vlaneseq
    %v1705 = vshrl.u32 %v1704, 7
    %v1706 = vsub.s32 0, %v1705
    %v1707 = vrot.slane %v1702, %v1706
    %v1708 = vlaneseq
    %v1709 = vshrl.u32 %v1708, 7
    %v1710 = vsub.s32 1, %v1709
    %v1711 = vrot.slane %v1702, %v1710
    %v1714 = vmul.f32 %v1707, %v1682
    %v1715 = vmul.f32 %v1711, %v1683
    %v1716 = vadd.f32 %v1699, %v1714
    %v1717 = vadd.f32 %v1700, %v1715
    %1718 = vrot.lane.b32.xlu0 %v165, 110
    %v1719 = vpop.permute.xlu0 %1718
    %1720 = vrot.lane.b32.xlu0 %v166, 110
    %v1721 = vpop.permute.xlu0 %1720
    %vm1722 = vcmp.lt.s32.totalorder %v174, 110
    %v1723 = vsel %vm1722, %v1719, %v1721
    %v1724 = vsel %vm1722, %v1721, %v1719
    %1725 = vrot.lane.b32.xlu0 %v185, 110
    %v1726 = vpop.permute.xlu0 %1725
    %1727 = vrot.lane.b32.xlu0 %v186, 110
    %v1728 = vpop.permute.xlu0 %1727
    %v1729 = vsel %vm1722, %v1726, %v1728
    %v1730 = vsel %vm1722, %v1728, %v1726
    %s1731 = scalar_lea.vmem %s1, 65
    %v1732 = vld [vmem:[%s1731] ss:$8 sm:$0x3]
    %v1734 = vlaneseq
    %v1735 = vshrl.u32 %v1734, 7
    %v1736 = vsub.s32 0, %v1735
    %v1737 = vrot.slane %v1732, %v1736
    %v1738 = vlaneseq
    %v1739 = vshrl.u32 %v1738, 7
    %v1740 = vsub.s32 1, %v1739
    %v1741 = vrot.slane %v1732, %v1740
    %v1744 = vmul.f32 %v1737, %v1723
    %v1745 = vmul.f32 %v1741, %v1724
    %v1746 = vadd.f32 %v1716, %v1744
    %v1747 = vadd.f32 %v1717, %v1745
    %s1748 = scalar_lea.vmem %s2, 65
    %v1749 = vld [vmem:[%s1748] ss:$8 sm:$0x3]
    %v1751 = vlaneseq
    %v1752 = vshrl.u32 %v1751, 7
    %v1753 = vsub.s32 0, %v1752
    %v1754 = vrot.slane %v1749, %v1753
    %v1755 = vlaneseq
    %v1756 = vshrl.u32 %v1755, 7
    %v1757 = vsub.s32 1, %v1756
    %v1758 = vrot.slane %v1749, %v1757
    %v1761 = vmul.f32 %v1754, %v1729
    %v1762 = vmul.f32 %v1758, %v1730
    %v1763 = vadd.f32 %v1746, %v1761
    %v1764 = vadd.f32 %v1747, %v1762
    %1765 = vrot.lane.b32.xlu0 %v165, 109
    %v1766 = vpop.permute.xlu0 %1765
    %1767 = vrot.lane.b32.xlu0 %v166, 109
    %v1768 = vpop.permute.xlu0 %1767
    %vm1769 = vcmp.lt.s32.totalorder %v174, 109
    %v1770 = vsel %vm1769, %v1766, %v1768
    %v1771 = vsel %vm1769, %v1768, %v1766
    %1772 = vrot.lane.b32.xlu0 %v185, 109
    %v1773 = vpop.permute.xlu0 %1772
    %1774 = vrot.lane.b32.xlu0 %v186, 109
    %v1775 = vpop.permute.xlu0 %1774
    %v1776 = vsel %vm1769, %v1773, %v1775
    %v1777 = vsel %vm1769, %v1775, %v1773
    %s1778 = scalar_lea.vmem %s1, 66
    %v1779 = vld [vmem:[%s1778] ss:$8 sm:$0x3]
    %v1781 = vlaneseq
    %v1782 = vshrl.u32 %v1781, 7
    %v1783 = vsub.s32 0, %v1782
    %v1784 = vrot.slane %v1779, %v1783
    %v1785 = vlaneseq
    %v1786 = vshrl.u32 %v1785, 7
    %v1787 = vsub.s32 1, %v1786
    %v1788 = vrot.slane %v1779, %v1787
    %v1791 = vmul.f32 %v1784, %v1770
    %v1792 = vmul.f32 %v1788, %v1771
    %v1793 = vadd.f32 %v1763, %v1791
    %v1794 = vadd.f32 %v1764, %v1792
    %s1795 = scalar_lea.vmem %s2, 66
    %v1796 = vld [vmem:[%s1795] ss:$8 sm:$0x3]
    %v1798 = vlaneseq
    %v1799 = vshrl.u32 %v1798, 7
    %v1800 = vsub.s32 0, %v1799
    %v1801 = vrot.slane %v1796, %v1800
    %v1802 = vlaneseq
    %v1803 = vshrl.u32 %v1802, 7
    %v1804 = vsub.s32 1, %v1803
    %v1805 = vrot.slane %v1796, %v1804
    %v1808 = vmul.f32 %v1801, %v1776
    %v1809 = vmul.f32 %v1805, %v1777
    %v1810 = vadd.f32 %v1793, %v1808
    %v1811 = vadd.f32 %v1794, %v1809
    %1812 = vrot.lane.b32.xlu0 %v165, 99
    %v1813 = vpop.permute.xlu0 %1812
    %1814 = vrot.lane.b32.xlu0 %v166, 99
    %v1815 = vpop.permute.xlu0 %1814
    %vm1816 = vcmp.lt.s32.totalorder %v174, 99
    %v1817 = vsel %vm1816, %v1813, %v1815
    %v1818 = vsel %vm1816, %v1815, %v1813
    %1819 = vrot.lane.b32.xlu0 %v185, 99
    %v1820 = vpop.permute.xlu0 %1819
    %1821 = vrot.lane.b32.xlu0 %v186, 99
    %v1822 = vpop.permute.xlu0 %1821
    %v1823 = vsel %vm1816, %v1820, %v1822
    %v1824 = vsel %vm1816, %v1822, %v1820
    %s1825 = scalar_lea.vmem %s1, 67
    %v1826 = vld [vmem:[%s1825] ss:$8 sm:$0x3]
    %v1828 = vlaneseq
    %v1829 = vshrl.u32 %v1828, 7
    %v1830 = vsub.s32 0, %v1829
    %v1831 = vrot.slane %v1826, %v1830
    %v1832 = vlaneseq
    %v1833 = vshrl.u32 %v1832, 7
    %v1834 = vsub.s32 1, %v1833
    %v1835 = vrot.slane %v1826, %v1834
    %v1838 = vmul.f32 %v1831, %v1817
    %v1839 = vmul.f32 %v1835, %v1818
    %v1840 = vadd.f32 %v1810, %v1838
    %v1841 = vadd.f32 %v1811, %v1839
    %s1842 = scalar_lea.vmem %s2, 67
    %v1843 = vld [vmem:[%s1842] ss:$8 sm:$0x3]
    %v1845 = vlaneseq
    %v1846 = vshrl.u32 %v1845, 7
    %v1847 = vsub.s32 0, %v1846
    %v1848 = vrot.slane %v1843, %v1847
    %v1849 = vlaneseq
    %v1850 = vshrl.u32 %v1849, 7
    %v1851 = vsub.s32 1, %v1850
    %v1852 = vrot.slane %v1843, %v1851
    %v1855 = vmul.f32 %v1848, %v1823
    %v1856 = vmul.f32 %v1852, %v1824
    %v1857 = vadd.f32 %v1840, %v1855
    %v1858 = vadd.f32 %v1841, %v1856
    %1859 = vrot.lane.b32.xlu0 %v165, 98
    %v1860 = vpop.permute.xlu0 %1859
    %1861 = vrot.lane.b32.xlu0 %v166, 98
    %v1862 = vpop.permute.xlu0 %1861
    %vm1863 = vcmp.lt.s32.totalorder %v174, 98
    %v1864 = vsel %vm1863, %v1860, %v1862
    %v1865 = vsel %vm1863, %v1862, %v1860
    %1866 = vrot.lane.b32.xlu0 %v185, 98
    %v1867 = vpop.permute.xlu0 %1866
    %1868 = vrot.lane.b32.xlu0 %v186, 98
    %v1869 = vpop.permute.xlu0 %1868
    %v1870 = vsel %vm1863, %v1867, %v1869
    %v1871 = vsel %vm1863, %v1869, %v1867
    %s1872 = scalar_lea.vmem %s1, 68
    %v1873 = vld [vmem:[%s1872] ss:$8 sm:$0x3]
    %v1875 = vlaneseq
    %v1876 = vshrl.u32 %v1875, 7
    %v1877 = vsub.s32 0, %v1876
    %v1878 = vrot.slane %v1873, %v1877
    %v1879 = vlaneseq
    %v1880 = vshrl.u32 %v1879, 7
    %v1881 = vsub.s32 1, %v1880
    %v1882 = vrot.slane %v1873, %v1881
    %v1885 = vmul.f32 %v1878, %v1864
    %v1886 = vmul.f32 %v1882, %v1865
    %v1887 = vadd.f32 %v1857, %v1885
    %v1888 = vadd.f32 %v1858, %v1886
    %s1889 = scalar_lea.vmem %s2, 68
    %v1890 = vld [vmem:[%s1889] ss:$8 sm:$0x3]
    %v1892 = vlaneseq
    %v1893 = vshrl.u32 %v1892, 7
    %v1894 = vsub.s32 0, %v1893
    %v1895 = vrot.slane %v1890, %v1894
    %v1896 = vlaneseq
    %v1897 = vshrl.u32 %v1896, 7
    %v1898 = vsub.s32 1, %v1897
    %v1899 = vrot.slane %v1890, %v1898
    %v1902 = vmul.f32 %v1895, %v1870
    %v1903 = vmul.f32 %v1899, %v1871
    %v1904 = vadd.f32 %v1887, %v1902
    %v1905 = vadd.f32 %v1888, %v1903
    %1906 = vrot.lane.b32.xlu0 %v165, 97
    %v1907 = vpop.permute.xlu0 %1906
    %1908 = vrot.lane.b32.xlu0 %v166, 97
    %v1909 = vpop.permute.xlu0 %1908
    %vm1910 = vcmp.lt.s32.totalorder %v174, 97
    %v1911 = vsel %vm1910, %v1907, %v1909
    %v1912 = vsel %vm1910, %v1909, %v1907
    %1913 = vrot.lane.b32.xlu0 %v185, 97
    %v1914 = vpop.permute.xlu0 %1913
    %1915 = vrot.lane.b32.xlu0 %v186, 97
    %v1916 = vpop.permute.xlu0 %1915
    %v1917 = vsel %vm1910, %v1914, %v1916
    %v1918 = vsel %vm1910, %v1916, %v1914
    %s1919 = scalar_lea.vmem %s1, 69
    %v1920 = vld [vmem:[%s1919] ss:$8 sm:$0x3]
    %v1922 = vlaneseq
    %v1923 = vshrl.u32 %v1922, 7
    %v1924 = vsub.s32 0, %v1923
    %v1925 = vrot.slane %v1920, %v1924
    %v1926 = vlaneseq
    %v1927 = vshrl.u32 %v1926, 7
    %v1928 = vsub.s32 1, %v1927
    %v1929 = vrot.slane %v1920, %v1928
    %v1932 = vmul.f32 %v1925, %v1911
    %v1933 = vmul.f32 %v1929, %v1912
    %v1934 = vadd.f32 %v1904, %v1932
    %v1935 = vadd.f32 %v1905, %v1933
    %s1936 = scalar_lea.vmem %s2, 69
    %v1937 = vld [vmem:[%s1936] ss:$8 sm:$0x3]
    %v1939 = vlaneseq
    %v1940 = vshrl.u32 %v1939, 7
    %v1941 = vsub.s32 0, %v1940
    %v1942 = vrot.slane %v1937, %v1941
    %v1943 = vlaneseq
    %v1944 = vshrl.u32 %v1943, 7
    %v1945 = vsub.s32 1, %v1944
    %v1946 = vrot.slane %v1937, %v1945
    %v1949 = vmul.f32 %v1942, %v1917
    %v1950 = vmul.f32 %v1946, %v1918
    %v1951 = vadd.f32 %v1934, %v1949
    %v1952 = vadd.f32 %v1935, %v1950
    %1953 = vrot.lane.b32.xlu0 %v165, 96
    %v1954 = vpop.permute.xlu0 %1953
    %1955 = vrot.lane.b32.xlu0 %v166, 96
    %v1956 = vpop.permute.xlu0 %1955
    %vm1957 = vcmp.lt.s32.totalorder %v174, 96
    %v1958 = vsel %vm1957, %v1954, %v1956
    %v1959 = vsel %vm1957, %v1956, %v1954
    %1960 = vrot.lane.b32.xlu0 %v185, 96
    %v1961 = vpop.permute.xlu0 %1960
    %1962 = vrot.lane.b32.xlu0 %v186, 96
    %v1963 = vpop.permute.xlu0 %1962
    %v1964 = vsel %vm1957, %v1961, %v1963
    %v1965 = vsel %vm1957, %v1963, %v1961
    %s1966 = scalar_lea.vmem %s1, 70
    %v1967 = vld [vmem:[%s1966] ss:$8 sm:$0x3]
    %v1969 = vlaneseq
    %v1970 = vshrl.u32 %v1969, 7
    %v1971 = vsub.s32 0, %v1970
    %v1972 = vrot.slane %v1967, %v1971
    %v1973 = vlaneseq
    %v1974 = vshrl.u32 %v1973, 7
    %v1975 = vsub.s32 1, %v1974
    %v1976 = vrot.slane %v1967, %v1975
    %v1979 = vmul.f32 %v1972, %v1958
    %v1980 = vmul.f32 %v1976, %v1959
    %v1981 = vadd.f32 %v1951, %v1979
    %v1982 = vadd.f32 %v1952, %v1980
    %s1983 = scalar_lea.vmem %s2, 70
    %v1984 = vld [vmem:[%s1983] ss:$8 sm:$0x3]
    %v1986 = vlaneseq
    %v1987 = vshrl.u32 %v1986, 7
    %v1988 = vsub.s32 0, %v1987
    %v1989 = vrot.slane %v1984, %v1988
    %v1990 = vlaneseq
    %v1991 = vshrl.u32 %v1990, 7
    %v1992 = vsub.s32 1, %v1991
    %v1993 = vrot.slane %v1984, %v1992
    %v1996 = vmul.f32 %v1989, %v1964
    %v1997 = vmul.f32 %v1993, %v1965
    %v1998 = vadd.f32 %v1981, %v1996
    %v1999 = vadd.f32 %v1982, %v1997
    %2000 = vrot.lane.b32.xlu0 %v165, 95
    %v2001 = vpop.permute.xlu0 %2000
    %2002 = vrot.lane.b32.xlu0 %v166, 95
    %v2003 = vpop.permute.xlu0 %2002
    %vm2004 = vcmp.lt.s32.totalorder %v174, 95
    %v2005 = vsel %vm2004, %v2001, %v2003
    %v2006 = vsel %vm2004, %v2003, %v2001
    %2007 = vrot.lane.b32.xlu0 %v185, 95
    %v2008 = vpop.permute.xlu0 %2007
    %2009 = vrot.lane.b32.xlu0 %v186, 95
    %v2010 = vpop.permute.xlu0 %2009
    %v2011 = vsel %vm2004, %v2008, %v2010
    %v2012 = vsel %vm2004, %v2010, %v2008
    %s2013 = scalar_lea.vmem %s1, 71
    %v2014 = vld [vmem:[%s2013] ss:$8 sm:$0x3]
    %v2016 = vlaneseq
    %v2017 = vshrl.u32 %v2016, 7
    %v2018 = vsub.s32 0, %v2017
    %v2019 = vrot.slane %v2014, %v2018
    %v2020 = vlaneseq
    %v2021 = vshrl.u32 %v2020, 7
    %v2022 = vsub.s32 1, %v2021
    %v2023 = vrot.slane %v2014, %v2022
    %v2026 = vmul.f32 %v2019, %v2005
    %v2027 = vmul.f32 %v2023, %v2006
    %v2028 = vadd.f32 %v1998, %v2026
    %v2029 = vadd.f32 %v1999, %v2027
    %s2030 = scalar_lea.vmem %s2, 71
    %v2031 = vld [vmem:[%s2030] ss:$8 sm:$0x3]
    %v2033 = vlaneseq
    %v2034 = vshrl.u32 %v2033, 7
    %v2035 = vsub.s32 0, %v2034
    %v2036 = vrot.slane %v2031, %v2035
    %v2037 = vlaneseq
    %v2038 = vshrl.u32 %v2037, 7
    %v2039 = vsub.s32 1, %v2038
    %v2040 = vrot.slane %v2031, %v2039
    %v2043 = vmul.f32 %v2036, %v2011
    %v2044 = vmul.f32 %v2040, %v2012
    %v2045 = vadd.f32 %v2028, %v2043
    %v2046 = vadd.f32 %v2029, %v2044
    %2047 = vrot.lane.b32.xlu0 %v165, 94
    %v2048 = vpop.permute.xlu0 %2047
    %2049 = vrot.lane.b32.xlu0 %v166, 94
    %v2050 = vpop.permute.xlu0 %2049
    %vm2051 = vcmp.lt.s32.totalorder %v174, 94
    %v2052 = vsel %vm2051, %v2048, %v2050
    %v2053 = vsel %vm2051, %v2050, %v2048
    %2054 = vrot.lane.b32.xlu0 %v185, 94
    %v2055 = vpop.permute.xlu0 %2054
    %2056 = vrot.lane.b32.xlu0 %v186, 94
    %v2057 = vpop.permute.xlu0 %2056
    %v2058 = vsel %vm2051, %v2055, %v2057
    %v2059 = vsel %vm2051, %v2057, %v2055
    %s2060 = scalar_lea.vmem %s1, 80
    %v2061 = vld [vmem:[%s2060] ss:$8 sm:$0x3]
    %v2063 = vlaneseq
    %v2064 = vshrl.u32 %v2063, 7
    %v2065 = vsub.s32 0, %v2064
    %v2066 = vrot.slane %v2061, %v2065
    %v2067 = vlaneseq
    %v2068 = vshrl.u32 %v2067, 7
    %v2069 = vsub.s32 1, %v2068
    %v2070 = vrot.slane %v2061, %v2069
    %v2073 = vmul.f32 %v2066, %v2052
    %v2074 = vmul.f32 %v2070, %v2053
    %v2075 = vadd.f32 %v2045, %v2073
    %v2076 = vadd.f32 %v2046, %v2074
    %s2077 = scalar_lea.vmem %s2, 80
    %v2078 = vld [vmem:[%s2077] ss:$8 sm:$0x3]
    %v2080 = vlaneseq
    %v2081 = vshrl.u32 %v2080, 7
    %v2082 = vsub.s32 0, %v2081
    %v2083 = vrot.slane %v2078, %v2082
    %v2084 = vlaneseq
    %v2085 = vshrl.u32 %v2084, 7
    %v2086 = vsub.s32 1, %v2085
    %v2087 = vrot.slane %v2078, %v2086
    %v2090 = vmul.f32 %v2083, %v2058
    %v2091 = vmul.f32 %v2087, %v2059
    %v2092 = vadd.f32 %v2075, %v2090
    %v2093 = vadd.f32 %v2076, %v2091
    %2094 = vrot.lane.b32.xlu0 %v165, 93
    %v2095 = vpop.permute.xlu0 %2094
    %2096 = vrot.lane.b32.xlu0 %v166, 93
    %v2097 = vpop.permute.xlu0 %2096
    %vm2098 = vcmp.lt.s32.totalorder %v174, 93
    %v2099 = vsel %vm2098, %v2095, %v2097
    %v2100 = vsel %vm2098, %v2097, %v2095
    %2101 = vrot.lane.b32.xlu0 %v185, 93
    %v2102 = vpop.permute.xlu0 %2101
    %2103 = vrot.lane.b32.xlu0 %v186, 93
    %v2104 = vpop.permute.xlu0 %2103
    %v2105 = vsel %vm2098, %v2102, %v2104
    %v2106 = vsel %vm2098, %v2104, %v2102
    %s2107 = scalar_lea.vmem %s1, 81
    %v2108 = vld [vmem:[%s2107] ss:$8 sm:$0x3]
    %v2110 = vlaneseq
    %v2111 = vshrl.u32 %v2110, 7
    %v2112 = vsub.s32 0, %v2111
    %v2113 = vrot.slane %v2108, %v2112
    %v2114 = vlaneseq
    %v2115 = vshrl.u32 %v2114, 7
    %v2116 = vsub.s32 1, %v2115
    %v2117 = vrot.slane %v2108, %v2116
    %v2120 = vmul.f32 %v2113, %v2099
    %v2121 = vmul.f32 %v2117, %v2100
    %v2122 = vadd.f32 %v2092, %v2120
    %v2123 = vadd.f32 %v2093, %v2121
    %s2124 = scalar_lea.vmem %s2, 81
    %v2125 = vld [vmem:[%s2124] ss:$8 sm:$0x3]
    %v2127 = vlaneseq
    %v2128 = vshrl.u32 %v2127, 7
    %v2129 = vsub.s32 0, %v2128
    %v2130 = vrot.slane %v2125, %v2129
    %v2131 = vlaneseq
    %v2132 = vshrl.u32 %v2131, 7
    %v2133 = vsub.s32 1, %v2132
    %v2134 = vrot.slane %v2125, %v2133
    %v2137 = vmul.f32 %v2130, %v2105
    %v2138 = vmul.f32 %v2134, %v2106
    %v2139 = vadd.f32 %v2122, %v2137
    %v2140 = vadd.f32 %v2123, %v2138
    %2141 = vrot.lane.b32.xlu0 %v165, 83
    %v2142 = vpop.permute.xlu0 %2141
    %2143 = vrot.lane.b32.xlu0 %v166, 83
    %v2144 = vpop.permute.xlu0 %2143
    %vm2145 = vcmp.lt.s32.totalorder %v174, 83
    %v2146 = vsel %vm2145, %v2142, %v2144
    %v2147 = vsel %vm2145, %v2144, %v2142
    %2148 = vrot.lane.b32.xlu0 %v185, 83
    %v2149 = vpop.permute.xlu0 %2148
    %2150 = vrot.lane.b32.xlu0 %v186, 83
    %v2151 = vpop.permute.xlu0 %2150
    %v2152 = vsel %vm2145, %v2149, %v2151
    %v2153 = vsel %vm2145, %v2151, %v2149
    %s2154 = scalar_lea.vmem %s1, 82
    %v2155 = vld [vmem:[%s2154] ss:$8 sm:$0x3]
    %v2157 = vlaneseq
    %v2158 = vshrl.u32 %v2157, 7
    %v2159 = vsub.s32 0, %v2158
    %v2160 = vrot.slane %v2155, %v2159
    %v2161 = vlaneseq
    %v2162 = vshrl.u32 %v2161, 7
    %v2163 = vsub.s32 1, %v2162
    %v2164 = vrot.slane %v2155, %v2163
    %v2167 = vmul.f32 %v2160, %v2146
    %v2168 = vmul.f32 %v2164, %v2147
    %v2169 = vadd.f32 %v2139, %v2167
    %v2170 = vadd.f32 %v2140, %v2168
    %s2171 = scalar_lea.vmem %s2, 82
    %v2172 = vld [vmem:[%s2171] ss:$8 sm:$0x3]
    %v2174 = vlaneseq
    %v2175 = vshrl.u32 %v2174, 7
    %v2176 = vsub.s32 0, %v2175
    %v2177 = vrot.slane %v2172, %v2176
    %v2178 = vlaneseq
    %v2179 = vshrl.u32 %v2178, 7
    %v2180 = vsub.s32 1, %v2179
    %v2181 = vrot.slane %v2172, %v2180
    %v2184 = vmul.f32 %v2177, %v2152
    %v2185 = vmul.f32 %v2181, %v2153
    %v2186 = vadd.f32 %v2169, %v2184
    %v2187 = vadd.f32 %v2170, %v2185
    %2188 = vrot.lane.b32.xlu0 %v165, 82
    %v2189 = vpop.permute.xlu0 %2188
    %2190 = vrot.lane.b32.xlu0 %v166, 82
    %v2191 = vpop.permute.xlu0 %2190
    %vm2192 = vcmp.lt.s32.totalorder %v174, 82
    %v2193 = vsel %vm2192, %v2189, %v2191
    %v2194 = vsel %vm2192, %v2191, %v2189
    %2195 = vrot.lane.b32.xlu0 %v185, 82
    %v2196 = vpop.permute.xlu0 %2195
    %2197 = vrot.lane.b32.xlu0 %v186, 82
    %v2198 = vpop.permute.xlu0 %2197
    %v2199 = vsel %vm2192, %v2196, %v2198
    %v2200 = vsel %vm2192, %v2198, %v2196
    %s2201 = scalar_lea.vmem %s1, 83
    %v2202 = vld [vmem:[%s2201] ss:$8 sm:$0x3]
    %v2204 = vlaneseq
    %v2205 = vshrl.u32 %v2204, 7
    %v2206 = vsub.s32 0, %v2205
    %v2207 = vrot.slane %v2202, %v2206
    %v2208 = vlaneseq
    %v2209 = vshrl.u32 %v2208, 7
    %v2210 = vsub.s32 1, %v2209
    %v2211 = vrot.slane %v2202, %v2210
    %v2214 = vmul.f32 %v2207, %v2193
    %v2215 = vmul.f32 %v2211, %v2194
    %v2216 = vadd.f32 %v2186, %v2214
    %v2217 = vadd.f32 %v2187, %v2215
    %s2218 = scalar_lea.vmem %s2, 83
    %v2219 = vld [vmem:[%s2218] ss:$8 sm:$0x3]
    %v2221 = vlaneseq
    %v2222 = vshrl.u32 %v2221, 7
    %v2223 = vsub.s32 0, %v2222
    %v2224 = vrot.slane %v2219, %v2223
    %v2225 = vlaneseq
    %v2226 = vshrl.u32 %v2225, 7
    %v2227 = vsub.s32 1, %v2226
    %v2228 = vrot.slane %v2219, %v2227
    %v2231 = vmul.f32 %v2224, %v2199
    %v2232 = vmul.f32 %v2228, %v2200
    %v2233 = vadd.f32 %v2216, %v2231
    %v2234 = vadd.f32 %v2217, %v2232
    %2235 = vrot.lane.b32.xlu0 %v165, 81
    %v2236 = vpop.permute.xlu0 %2235
    %2237 = vrot.lane.b32.xlu0 %v166, 81
    %v2238 = vpop.permute.xlu0 %2237
    %vm2239 = vcmp.lt.s32.totalorder %v174, 81
    %v2240 = vsel %vm2239, %v2236, %v2238
    %v2241 = vsel %vm2239, %v2238, %v2236
    %2242 = vrot.lane.b32.xlu0 %v185, 81
    %v2243 = vpop.permute.xlu0 %2242
    %2244 = vrot.lane.b32.xlu0 %v186, 81
    %v2245 = vpop.permute.xlu0 %2244
    %v2246 = vsel %vm2239, %v2243, %v2245
    %v2247 = vsel %vm2239, %v2245, %v2243
    %s2248 = scalar_lea.vmem %s1, 84
    %v2249 = vld [vmem:[%s2248] ss:$8 sm:$0x3]
    %v2251 = vlaneseq
    %v2252 = vshrl.u32 %v2251, 7
    %v2253 = vsub.s32 0, %v2252
    %v2254 = vrot.slane %v2249, %v2253
    %v2255 = vlaneseq
    %v2256 = vshrl.u32 %v2255, 7
    %v2257 = vsub.s32 1, %v2256
    %v2258 = vrot.slane %v2249, %v2257
    %v2261 = vmul.f32 %v2254, %v2240
    %v2262 = vmul.f32 %v2258, %v2241
    %v2263 = vadd.f32 %v2233, %v2261
    %v2264 = vadd.f32 %v2234, %v2262
    %s2265 = scalar_lea.vmem %s2, 84
    %v2266 = vld [vmem:[%s2265] ss:$8 sm:$0x3]
    %v2268 = vlaneseq
    %v2269 = vshrl.u32 %v2268, 7
    %v2270 = vsub.s32 0, %v2269
    %v2271 = vrot.slane %v2266, %v2270
    %v2272 = vlaneseq
    %v2273 = vshrl.u32 %v2272, 7
    %v2274 = vsub.s32 1, %v2273
    %v2275 = vrot.slane %v2266, %v2274
    %v2278 = vmul.f32 %v2271, %v2246
    %v2279 = vmul.f32 %v2275, %v2247
    %v2280 = vadd.f32 %v2263, %v2278
    %v2281 = vadd.f32 %v2264, %v2279
    %2282 = vrot.lane.b32.xlu0 %v165, 80
    %v2283 = vpop.permute.xlu0 %2282
    %2284 = vrot.lane.b32.xlu0 %v166, 80
    %v2285 = vpop.permute.xlu0 %2284
    %vm2286 = vcmp.lt.s32.totalorder %v174, 80
    %v2287 = vsel %vm2286, %v2283, %v2285
    %v2288 = vsel %vm2286, %v2285, %v2283
    %2289 = vrot.lane.b32.xlu0 %v185, 80
    %v2290 = vpop.permute.xlu0 %2289
    %2291 = vrot.lane.b32.xlu0 %v186, 80
    %v2292 = vpop.permute.xlu0 %2291
    %v2293 = vsel %vm2286, %v2290, %v2292
    %v2294 = vsel %vm2286, %v2292, %v2290
    %s2295 = scalar_lea.vmem %s1, 85
    %v2296 = vld [vmem:[%s2295] ss:$8 sm:$0x3]
    %v2298 = vlaneseq
    %v2299 = vshrl.u32 %v2298, 7
    %v2300 = vsub.s32 0, %v2299
    %v2301 = vrot.slane %v2296, %v2300
    %v2302 = vlaneseq
    %v2303 = vshrl.u32 %v2302, 7
    %v2304 = vsub.s32 1, %v2303
    %v2305 = vrot.slane %v2296, %v2304
    %v2308 = vmul.f32 %v2301, %v2287
    %v2309 = vmul.f32 %v2305, %v2288
    %v2310 = vadd.f32 %v2280, %v2308
    %v2311 = vadd.f32 %v2281, %v2309
    %s2312 = scalar_lea.vmem %s2, 85
    %v2313 = vld [vmem:[%s2312] ss:$8 sm:$0x3]
    %v2315 = vlaneseq
    %v2316 = vshrl.u32 %v2315, 7
    %v2317 = vsub.s32 0, %v2316
    %v2318 = vrot.slane %v2313, %v2317
    %v2319 = vlaneseq
    %v2320 = vshrl.u32 %v2319, 7
    %v2321 = vsub.s32 1, %v2320
    %v2322 = vrot.slane %v2313, %v2321
    %v2325 = vmul.f32 %v2318, %v2293
    %v2326 = vmul.f32 %v2322, %v2294
    %v2327 = vadd.f32 %v2310, %v2325
    %v2328 = vadd.f32 %v2311, %v2326
    %2329 = vrot.lane.b32.xlu0 %v165, 79
    %v2330 = vpop.permute.xlu0 %2329
    %2331 = vrot.lane.b32.xlu0 %v166, 79
    %v2332 = vpop.permute.xlu0 %2331
    %vm2333 = vcmp.lt.s32.totalorder %v174, 79
    %v2334 = vsel %vm2333, %v2330, %v2332
    %v2335 = vsel %vm2333, %v2332, %v2330
    %2336 = vrot.lane.b32.xlu0 %v185, 79
    %v2337 = vpop.permute.xlu0 %2336
    %2338 = vrot.lane.b32.xlu0 %v186, 79
    %v2339 = vpop.permute.xlu0 %2338
    %v2340 = vsel %vm2333, %v2337, %v2339
    %v2341 = vsel %vm2333, %v2339, %v2337
    %s2342 = scalar_lea.vmem %s1, 86
    %v2343 = vld [vmem:[%s2342] ss:$8 sm:$0x3]
    %v2345 = vlaneseq
    %v2346 = vshrl.u32 %v2345, 7
    %v2347 = vsub.s32 0, %v2346
    %v2348 = vrot.slane %v2343, %v2347
    %v2349 = vlaneseq
    %v2350 = vshrl.u32 %v2349, 7
    %v2351 = vsub.s32 1, %v2350
    %v2352 = vrot.slane %v2343, %v2351
    %v2355 = vmul.f32 %v2348, %v2334
    %v2356 = vmul.f32 %v2352, %v2335
    %v2357 = vadd.f32 %v2327, %v2355
    %v2358 = vadd.f32 %v2328, %v2356
    %s2359 = scalar_lea.vmem %s2, 86
    %v2360 = vld [vmem:[%s2359] ss:$8 sm:$0x3]
    %v2362 = vlaneseq
    %v2363 = vshrl.u32 %v2362, 7
    %v2364 = vsub.s32 0, %v2363
    %v2365 = vrot.slane %v2360, %v2364
    %v2366 = vlaneseq
    %v2367 = vshrl.u32 %v2366, 7
    %v2368 = vsub.s32 1, %v2367
    %v2369 = vrot.slane %v2360, %v2368
    %v2372 = vmul.f32 %v2365, %v2340
    %v2373 = vmul.f32 %v2369, %v2341
    %v2374 = vadd.f32 %v2357, %v2372
    %v2375 = vadd.f32 %v2358, %v2373
    %2376 = vrot.lane.b32.xlu0 %v165, 78
    %v2377 = vpop.permute.xlu0 %2376
    %2378 = vrot.lane.b32.xlu0 %v166, 78
    %v2379 = vpop.permute.xlu0 %2378
    %vm2380 = vcmp.lt.s32.totalorder %v174, 78
    %v2381 = vsel %vm2380, %v2377, %v2379
    %v2382 = vsel %vm2380, %v2379, %v2377
    %2383 = vrot.lane.b32.xlu0 %v185, 78
    %v2384 = vpop.permute.xlu0 %2383
    %2385 = vrot.lane.b32.xlu0 %v186, 78
    %v2386 = vpop.permute.xlu0 %2385
    %v2387 = vsel %vm2380, %v2384, %v2386
    %v2388 = vsel %vm2380, %v2386, %v2384
    %s2389 = scalar_lea.vmem %s1, 87
    %v2390 = vld [vmem:[%s2389] ss:$8 sm:$0x3]
    %v2392 = vlaneseq
    %v2393 = vshrl.u32 %v2392, 7
    %v2394 = vsub.s32 0, %v2393
    %v2395 = vrot.slane %v2390, %v2394
    %v2396 = vlaneseq
    %v2397 = vshrl.u32 %v2396, 7
    %v2398 = vsub.s32 1, %v2397
    %v2399 = vrot.slane %v2390, %v2398
    %v2402 = vmul.f32 %v2395, %v2381
    %v2403 = vmul.f32 %v2399, %v2382
    %v2404 = vadd.f32 %v2374, %v2402
    %v2405 = vadd.f32 %v2375, %v2403
    %s2406 = scalar_lea.vmem %s2, 87
    %v2407 = vld [vmem:[%s2406] ss:$8 sm:$0x3]
    %v2409 = vlaneseq
    %v2410 = vshrl.u32 %v2409, 7
    %v2411 = vsub.s32 0, %v2410
    %v2412 = vrot.slane %v2407, %v2411
    %v2413 = vlaneseq
    %v2414 = vshrl.u32 %v2413, 7
    %v2415 = vsub.s32 1, %v2414
    %v2416 = vrot.slane %v2407, %v2415
    %v2419 = vmul.f32 %v2412, %v2387
    %v2420 = vmul.f32 %v2416, %v2388
    %v2421 = vadd.f32 %v2404, %v2419
    %v2422 = vadd.f32 %v2405, %v2420
    %2423 = vrot.lane.b32.xlu0 %v165, 77
    %v2424 = vpop.permute.xlu0 %2423
    %2425 = vrot.lane.b32.xlu0 %v166, 77
    %v2426 = vpop.permute.xlu0 %2425
    %vm2427 = vcmp.lt.s32.totalorder %v174, 77
    %v2428 = vsel %vm2427, %v2424, %v2426
    %v2429 = vsel %vm2427, %v2426, %v2424
    %2430 = vrot.lane.b32.xlu0 %v185, 77
    %v2431 = vpop.permute.xlu0 %2430
    %2432 = vrot.lane.b32.xlu0 %v186, 77
    %v2433 = vpop.permute.xlu0 %2432
    %v2434 = vsel %vm2427, %v2431, %v2433
    %v2435 = vsel %vm2427, %v2433, %v2431
    %s2436 = scalar_lea.vmem %s1, 96
    %v2437 = vld [vmem:[%s2436] ss:$8 sm:$0x3]
    %v2439 = vlaneseq
    %v2440 = vshrl.u32 %v2439, 7
    %v2441 = vsub.s32 0, %v2440
    %v2442 = vrot.slane %v2437, %v2441
    %v2443 = vlaneseq
    %v2444 = vshrl.u32 %v2443, 7
    %v2445 = vsub.s32 1, %v2444
    %v2446 = vrot.slane %v2437, %v2445
    %v2449 = vmul.f32 %v2442, %v2428
    %v2450 = vmul.f32 %v2446, %v2429
    %v2451 = vadd.f32 %v2421, %v2449
    %v2452 = vadd.f32 %v2422, %v2450
    %s2453 = scalar_lea.vmem %s2, 96
    %v2454 = vld [vmem:[%s2453] ss:$8 sm:$0x3]
    %v2456 = vlaneseq
    %v2457 = vshrl.u32 %v2456, 7
    %v2458 = vsub.s32 0, %v2457
    %v2459 = vrot.slane %v2454, %v2458
    %v2460 = vlaneseq
    %v2461 = vshrl.u32 %v2460, 7
    %v2462 = vsub.s32 1, %v2461
    %v2463 = vrot.slane %v2454, %v2462
    %v2466 = vmul.f32 %v2459, %v2434
    %v2467 = vmul.f32 %v2463, %v2435
    %v2468 = vadd.f32 %v2451, %v2466
    %v2469 = vadd.f32 %v2452, %v2467
    %v2472 = vcombine.low %v2468, %v2469
    %v2474 = vunpack.c.l.s4 1983009808
    %v2475 = vunpack.c.0.s8 %v2474
    %v2476 = vlaneseq
    %v2477 = vshrl.u32 %v2476, 7
    %v2478 = vsub.s32 %v2475, %v2477
    %v2479 = vrot.slane %v2472, %v2478
    %2481 = vst [vmem:[%s3] sm:$0xf] %v2479
  $region21: #{spatial_attention.2} parent=0 // pred_fallthru
    _
  // Predicated region
  $region22: #{spatial_attention.2} parent=0 // pred_check
    _
  $region23: #{spatial_attention.2} parent=0 // pred_check_branch
    %2483 = sbr.rel (0) target = $region25
  $region24: #{spatial_attention.2} parent=0 // pred_region
    _
  $region25: #{spatial_attention.2} parent=0 // pred_fallthru
    _
  // Predicated region
  $region26: #{spatial_attention.2} parent=0 // pred_check
    _
  $region27: #{spatial_attention.2} parent=0 // pred_check_branch
    %2485 = sbr.rel (0) target = $region29
  $region28: #{spatial_attention.2} parent=0 // pred_region
    _
  $region29: #{spatial_attention.2} parent=0 // pred_fallthru
    _

</llo_original>
